<compile_context>
chip_gen: v5e
topology: v5e:2x2
jax: 0.10.0
libtpu: 0.0.40
codegen_flags: <defaults>
</compile_context>

<pallas_src>
import math

import jax
import jax.numpy as jnp
from jax import lax
from jax.experimental import pallas as pl
from jax.experimental.pallas import tpu as pltpu

# ---- synthetic config (small, but shape-consistent with the PyTorch module) ----
B = 2              # batch
SEQ = 8            # hiddens.shape[1] (<= LAYERS)
LAYERS = 8         # pos_emb table rows
DIM = 128          # hidden_dim (== dim fed to attention context)
LATENT_DIM = 128   # latent_dim (module requires latent_dim == hidden_dim)
HEADS = 4          # num_cross_heads
DIM_HEAD = 32      # cross_dim_head
INNER = HEADS * DIM_HEAD
NUM_LATENTS = 16   # num_latents_value
FF_MULT = 4
LN_EPS = 1e-5


def _layernorm(x, g, b):
    mu = jnp.mean(x, axis=-1, keepdims=True)
    var = jnp.mean((x - mu) ** 2, axis=-1, keepdims=True)
    return (x - mu) * lax.rsqrt(var + LN_EPS) * g + b


def _gelu_exact(x):
    # torch.nn.functional.gelu default (erf form)
    return 0.5 * x * (1.0 + lax.erf(x * (1.0 / math.sqrt(2.0))))


def resampler_kernel(hid_ref, pos_ref, lat_ref,
                     ln1_g, ln1_b, lnc_g, lnc_b,
                     wq_ref, wk_ref, wv_ref, wo_ref,
                     ln2_g, ln2_b,
                     wff1_ref, bff1_ref, wff2_ref, bff2_ref,
                     out_ref):
    f32 = jnp.float32
    bf16 = jnp.bfloat16
    b, s, d = hid_ref.shape
    n = lat_ref.shape[0]
    nh, _, dh = wq_ref.shape
    scale = 1.0 / math.sqrt(dh)

    # ---- pos-emb add + LayerNorm over hiddens, all batches at once ----
    hid = hid_ref[...] + pos_ref[...][None]                   # (B, S, D)
    h_n = _layernorm(hid, ln1_g[...], ln1_b[...])             # (B, S, D) f32
    h_flat = h_n.reshape(b * s, d).astype(bf16)               # (B*S, D) bf16

    # ---- batch-invariant latent path: LayerNorm + Q projection (once) ----
    lat = lat_ref[...]                                        # (N, D) f32
    ctx_n = _layernorm(lat, lnc_g[...], lnc_b[...]).astype(bf16)

    wq = wq_ref[...]                                          # (H, D, dh) bf16
    wk = wk_ref[...]                                          # (H, D, dh) bf16
    wv = wv_ref[...]                                          # (H, D, dh) bf16
    wo = wo_ref[...]                                          # (H, dh, D) bf16

    ctx_b = jnp.broadcast_to(ctx_n[None], (nh, n, d))
    q_h = jnp.einsum("hnd,hde->hne", ctx_b, wq,
                     preferred_element_type=f32)              # (H, N, dh)

    # ---- K/V projections for all batches in one shot (batch folded into S) ----
    hb = jnp.broadcast_to(h_flat[None], (nh, b * s, d))
    k_h = jnp.einsum("hsd,hde->hse", hb, wk,
                     preferred_element_type=f32)              # (H, B*S, dh)
    v_h = jnp.einsum("hsd,hde->hse", hb, wv,
                     preferred_element_type=f32)              # (H, B*S, dh)

    # ---- cross-attention per batch (B is tiny and static; unrolled) ----
    xs = []
    for bi in range(b):
        kb = k_h[:, bi * s:(bi + 1) * s, :]                   # (H, S, dh)
        vb = v_h[:, bi * s:(bi + 1) * s, :]                   # (H, S, dh)

        sc = jnp.einsum("hne,hse->hns", q_h, kb,
                        preferred_element_type=f32) * scale   # (H, N, S)
        sc = sc - jnp.max(sc, axis=-1, keepdims=True)
        p = jnp.exp(sc)
        p = p * pl.reciprocal(jnp.sum(p, axis=-1, keepdims=True), approx=True)

        o_h = jnp.einsum("hns,hse->hne", p.astype(bf16), vb.astype(bf16),
                         preferred_element_type=f32)          # (H, N, dh)
        attn_h = jnp.einsum("hne,hed->hnd", o_h.astype(bf16), wo,
                            preferred_element_type=f32)       # (H, N, D)
        attn_out = jnp.sum(attn_h, axis=0)                    # to_out = sum over heads
        xs.append(attn_out + lat)                             # residual, (N, D)

    x = jnp.concatenate(xs, axis=0)                           # (B*N, D)

    # ---- PreNorm + GEGLU FeedForward over all batches' latents at once ----
    x_n = _layernorm(x, ln2_g[...], ln2_b[...])
    hdn = jnp.dot(x_n.astype(bf16), wff1_ref[...],
                  preferred_element_type=f32) + bff1_ref[...]  # (B*N, 2*mult*D)
    half = wff2_ref.shape[0]                                   # mult * D
    a = hdn[:, :half]
    g = hdn[:, half:]
    ff = a * _gelu_exact(g)
    ff_out = jnp.dot(ff.astype(bf16), wff2_ref[...],
                     preferred_element_type=f32) + bff2_ref[...]
    x = x + ff_out                                             # residual

    # ---- mean over latents + L2 normalize; single dense (B, D) store ----
    rows = []
    for bi in range(b):
        xb = x[bi * n:(bi + 1) * n]                            # (N, D)
        pooled = jnp.mean(xb, axis=0, keepdims=True)           # (1, D)
        ssq = jnp.sum(pooled * pooled, axis=-1, keepdims=True)
        rows.append(pooled * lax.rsqrt(jnp.maximum(ssq, 1e-24)))
    out_ref[...] = jnp.concatenate(rows, axis=0)               # (B, D)


def perceiver_resampler_pallas(hiddens, p):
    b, seq, d = hiddens.shape
    pos = p["pos_table"][:seq]                                 # (S, D)

    # Split kv weight and pre-reshape projection weights to head-major layout
    # (done once on the host), so the kernel uses head-batched einsums with no
    # in-kernel activation reshapes/transposes.
    wkv = p["wkv"]
    wk, wv = wkv[:, :INNER], wkv[:, INNER:]

    def head_major(w):                                         # (D, INNER) -> (H, D, dh)
        return w.reshape(d, HEADS, DIM_HEAD).transpose(1, 0, 2)

    wq_r, wk_r, wv_r = map(head_major, (p["wq"], wk, wv))
    wo_r = p["wo"].reshape(HEADS, DIM_HEAD, LATENT_DIM)        # (H, dh, D)

    args = (hiddens, pos, p["latents"],
            p["ln1_g"], p["ln1_b"], p["lnc_g"], p["lnc_b"],
            wq_r, wk_r, wv_r, wo_r,
            p["ln2_g"], p["ln2_b"],
            p["wff1"], p["bff1"], p["wff2"], p["bff2"])

    vmem = pl.BlockSpec(memory_space=pltpu.MemorySpace.VMEM)
    # Single kernel invocation (no grid): whole operands live in VMEM (<1 MiB
    # total with bf16 weights); all batches handled inside the kernel.
    return pl.pallas_call(
        resampler_kernel,
        out_shape=jax.ShapeDtypeStruct((b, LATENT_DIM), jnp.float32),
        in_specs=[vmem] * len(args),
        out_specs=vmem,
    )(*args)


# ---------------- pure-JAX reference (same math, no Pallas) ----------------
def perceiver_resampler_ref(hiddens, p):
    f32 = jnp.float32
    b = hiddens.shape[0]
    h = hiddens + p["pos_table"][: hiddens.shape[1]]
    lat = jnp.broadcast_to(p["latents"][None], (b, NUM_LATENTS, LATENT_DIM))
    h_n = _layernorm(h, p["ln1_g"][0], p["ln1_b"][0])
    c_n = _layernorm(lat, p["lnc_g"][0], p["lnc_b"][0])
    q = c_n @ p["wq"].astype(f32)
    kv = h_n @ p["wkv"].astype(f32)
    k, v = kv[..., :INNER], kv[..., INNER:]

    def split_heads(t):
        return t.reshape(b, t.shape[1], HEADS, DIM_HEAD).transpose(0, 2, 1, 3)

    qh, kh, vh = map(split_heads, (q, k, v))
    s = jnp.einsum("bhnd,bhld->bhnl", qh, kh) / math.sqrt(DIM_HEAD)
    att = jax.nn.softmax(s, axis=-1)
    o = jnp.einsum("bhnl,bhld->bhnd", att, vh)
    o = o.transpose(0, 2, 1, 3).reshape(b, NUM_LATENTS, INNER)
    x = o @ p["wo"].astype(f32) + lat
    x_n = _layernorm(x, p["ln2_g"][0], p["ln2_b"][0])
    hdn = x_n @ p["wff1"].astype(f32) + p["bff1"][0]
    a, g = hdn[..., : FF_MULT * LATENT_DIM], hdn[..., FF_MULT * LATENT_DIM:]
    x = x + (a * _gelu_exact(g)) @ p["wff2"].astype(f32) + p["bff2"][0]
    pooled = x.mean(axis=1)
    return pooled / jnp.maximum(
        jnp.linalg.norm(pooled, axis=-1, keepdims=True), 1e-12)


def init_params(key):
    ks = jax.random.split(key, 9)
    f32 = jnp.float32
    bf16 = jnp.bfloat16
    return dict(
        latents=jax.random.normal(ks[0], (NUM_LATENTS, LATENT_DIM), f32),
        pos_table=jax.random.normal(ks[1], (LAYERS, DIM), f32),
        ln1_g=jnp.ones((1, DIM), f32), ln1_b=jnp.zeros((1, DIM), f32),
        lnc_g=jnp.ones((1, DIM), f32), lnc_b=jnp.zeros((1, DIM), f32),
        # large Linear weights kept in bf16 (halves HBM->VMEM DMA bytes)
        wq=(0.02 * jax.random.normal(ks[2], (DIM, INNER), f32)).astype(bf16),
        wkv=(0.02 * jax.random.normal(ks[3], (DIM, 2 * INNER), f32)).astype(bf16),
        wo=(0.02 * jax.random.normal(ks[4], (INNER, LATENT_DIM), f32)).astype(bf16),
        ln2_g=jnp.ones((1, LATENT_DIM), f32), ln2_b=jnp.zeros((1, LATENT_DIM), f32),
        wff1=(0.02 * jax.random.normal(
            ks[5], (LATENT_DIM, 2 * FF_MULT * LATENT_DIM), f32)).astype(bf16),
        bff1=0.01 * jax.random.normal(ks[6], (1, 2 * FF_MULT * LATENT_DIM), f32),
        wff2=(0.02 * jax.random.normal(
            ks[7], (FF_MULT * LATENT_DIM, LATENT_DIM), f32)).astype(bf16),
        bff2=0.01 * jax.random.normal(ks[8], (1, LATENT_DIM), f32),
    )


if __name__ == "__main__":
    root = jax.random.PRNGKey(0)
    k_in, k_par = jax.random.split(root)
    hiddens = jax.random.normal(k_in, (B, SEQ, DIM), jnp.float32)
    params = init_params(k_par)

    out = perceiver_resampler_pallas(hiddens, params)
    out = jax.block_until_ready(out)

    ref = perceiver_resampler_ref(hiddens, params)
    assert out.shape == (B, LATENT_DIM)
    err = float(jnp.max(jnp.abs(out - ref)))
    assert bool(jnp.allclose(out, ref, atol=2e-2, rtol=2e-2)), err
    print("KERNEL_OK")
</pallas_src>

<mosaic_0001>
module attributes {stable_mosaic.version = 11 : i64} {
  func.func @resampler_kernel(%arg0: memref<2x8x128xf32, #tpu.memory_space<vmem>>, %arg1: memref<8x128xf32, #tpu.memory_space<vmem>>, %arg2: memref<16x128xf32, #tpu.memory_space<vmem>>, %arg3: memref<1x128xf32, #tpu.memory_space<vmem>>, %arg4: memref<1x128xf32, #tpu.memory_space<vmem>>, %arg5: memref<1x128xf32, #tpu.memory_space<vmem>>, %arg6: memref<1x128xf32, #tpu.memory_space<vmem>>, %arg7: memref<4x128x32xbf16, #tpu.memory_space<vmem>>, %arg8: memref<4x128x32xbf16, #tpu.memory_space<vmem>>, %arg9: memref<4x128x32xbf16, #tpu.memory_space<vmem>>, %arg10: memref<4x32x128xbf16, #tpu.memory_space<vmem>>, %arg11: memref<1x128xf32, #tpu.memory_space<vmem>>, %arg12: memref<1x128xf32, #tpu.memory_space<vmem>>, %arg13: memref<128x1024xbf16, #tpu.memory_space<vmem>>, %arg14: memref<1x1024xf32, #tpu.memory_space<vmem>>, %arg15: memref<512x128xbf16, #tpu.memory_space<vmem>>, %arg16: memref<1x128xf32, #tpu.memory_space<vmem>>, %arg17: memref<2x128xf32, #tpu.memory_space<vmem>>) attributes {dimension_semantics = [], scalar_prefetch = 0 : i64, scratch_operands = 0 : i64, tpu.core_type = #tpu.core_type<tc>} {
    %c0 = arith.constant 0 : index
    %c0_0 = arith.constant 0 : index
    %c0_1 = arith.constant 0 : index
    %0 = vector.load %arg0[%c0, %c0_0, %c0_1] : memref<2x8x128xf32, #tpu.memory_space<vmem>>, vector<2x8x128xf32>
    %c0_2 = arith.constant 0 : index
    %c0_3 = arith.constant 0 : index
    %1 = vector.load %arg1[%c0_2, %c0_3] : memref<8x128xf32, #tpu.memory_space<vmem>>, vector<8x128xf32>
    %2 = vector.shape_cast %1 : vector<8x128xf32> to vector<1x8x128xf32>
    %3 = vector.broadcast %2 : vector<1x8x128xf32> to vector<2x8x128xf32>
    %4 = arith.addf %0, %3 : vector<2x8x128xf32>
    %c0_4 = arith.constant 0 : index
    %c0_5 = arith.constant 0 : index
    %5 = vector.load %arg3[%c0_4, %c0_5] : memref<1x128xf32, #tpu.memory_space<vmem>>, vector<1x128xf32>
    %c0_6 = arith.constant 0 : index
    %c0_7 = arith.constant 0 : index
    %6 = vector.load %arg4[%c0_6, %c0_7] : memref<1x128xf32, #tpu.memory_space<vmem>>, vector<1x128xf32>
    %cst = arith.constant dense<0.000000e+00> : vector<2x8xf32>
    %7 = vector.multi_reduction <add>, %4, %cst [2] : vector<2x8x128xf32> to vector<2x8xf32>
    %8 = vector.shape_cast %7 : vector<2x8xf32> to vector<2x8x1xf32>
    %cst_8 = arith.constant 1.280000e+02 : f32
    %9 = vector.broadcast %cst_8 : f32 to vector<2x8x1xf32>
    %10 = arith.divf %8, %9 : vector<2x8x1xf32>
    %11 = vector.broadcast %10 : vector<2x8x1xf32> to vector<2x8x128xf32>
    %12 = arith.subf %4, %11 : vector<2x8x128xf32>
    %13 = arith.mulf %12, %12 : vector<2x8x128xf32>
    %cst_9 = arith.constant dense<0.000000e+00> : vector<2x8xf32>
    %14 = vector.multi_reduction <add>, %13, %cst_9 [2] : vector<2x8x128xf32> to vector<2x8xf32>
    %15 = vector.shape_cast %14 : vector<2x8xf32> to vector<2x8x1xf32>
    %cst_10 = arith.constant 1.280000e+02 : f32
    %16 = vector.broadcast %cst_10 : f32 to vector<2x8x1xf32>
    %17 = arith.divf %15, %16 : vector<2x8x1xf32>
    %18 = vector.broadcast %10 : vector<2x8x1xf32> to vector<2x8x128xf32>
    %19 = arith.subf %4, %18 : vector<2x8x128xf32>
    %cst_11 = arith.constant 9.99999974E-6 : f32
    %20 = vector.broadcast %cst_11 : f32 to vector<2x8x1xf32>
    %21 = arith.addf %17, %20 : vector<2x8x1xf32>
    %22 = math.rsqrt %21 : vector<2x8x1xf32>
    %23 = vector.broadcast %22 : vector<2x8x1xf32> to vector<2x8x128xf32>
    %24 = arith.mulf %19, %23 : vector<2x8x128xf32>
    %25 = vector.shape_cast %5 : vector<1x128xf32> to vector<1x1x128xf32>
    %26 = vector.broadcast %25 : vector<1x1x128xf32> to vector<2x8x128xf32>
    %27 = arith.mulf %24, %26 : vector<2x8x128xf32>
    %28 = vector.shape_cast %6 : vector<1x128xf32> to vector<1x1x128xf32>
    %29 = vector.broadcast %28 : vector<1x1x128xf32> to vector<2x8x128xf32>
    %30 = arith.addf %27, %29 : vector<2x8x128xf32>
    %31 = vector.shape_cast %30 : vector<2x8x128xf32> to vector<16x128xf32>
    %32 = arith.truncf %31 : vector<16x128xf32> to vector<16x128xbf16>
    %c0_12 = arith.constant 0 : index
    %c0_13 = arith.constant 0 : index
    %33 = vector.load %arg2[%c0_12, %c0_13] : memref<16x128xf32, #tpu.memory_space<vmem>>, vector<16x128xf32>
    %c0_14 = arith.constant 0 : index
    %c0_15 = arith.constant 0 : index
    %34 = vector.load %arg5[%c0_14, %c0_15] : memref<1x128xf32, #tpu.memory_space<vmem>>, vector<1x128xf32>
    %c0_16 = arith.constant 0 : index
    %c0_17 = arith.constant 0 : index
    %35 = vector.load %arg6[%c0_16, %c0_17] : memref<1x128xf32, #tpu.memory_space<vmem>>, vector<1x128xf32>
    %cst_18 = arith.constant dense<0.000000e+00> : vector<16xf32>
    %36 = vector.multi_reduction <add>, %33, %cst_18 [1] : vector<16x128xf32> to vector<16xf32>
    %37 = vector.shape_cast %36 : vector<16xf32> to vector<16x1xf32>
    %cst_19 = arith.constant 1.280000e+02 : f32
    %38 = vector.broadcast %cst_19 : f32 to vector<16x1xf32>
    %39 = arith.divf %37, %38 : vector<16x1xf32>
    %40 = vector.broadcast %39 : vector<16x1xf32> to vector<16x128xf32>
    %41 = arith.subf %33, %40 : vector<16x128xf32>
    %42 = arith.mulf %41, %41 : vector<16x128xf32>
    %cst_20 = arith.constant dense<0.000000e+00> : vector<16xf32>
    %43 = vector.multi_reduction <add>, %42, %cst_20 [1] : vector<16x128xf32> to vector<16xf32>
    %44 = vector.shape_cast %43 : vector<16xf32> to vector<16x1xf32>
    %cst_21 = arith.constant 1.280000e+02 : f32
    %45 = vector.broadcast %cst_21 : f32 to vector<16x1xf32>
    %46 = arith.divf %44, %45 : vector<16x1xf32>
    %47 = vector.broadcast %39 : vector<16x1xf32> to vector<16x128xf32>
    %48 = arith.subf %33, %47 : vector<16x128xf32>
    %cst_22 = arith.constant 9.99999974E-6 : f32
    %49 = vector.broadcast %cst_22 : f32 to vector<16x1xf32>
    %50 = arith.addf %46, %49 : vector<16x1xf32>
    %51 = math.rsqrt %50 : vector<16x1xf32>
    %52 = vector.broadcast %51 : vector<16x1xf32> to vector<16x128xf32>
    %53 = arith.mulf %48, %52 : vector<16x128xf32>
    %54 = vector.broadcast %34 : vector<1x128xf32> to vector<16x128xf32>
    %55 = arith.mulf %53, %54 : vector<16x128xf32>
    %56 = vector.broadcast %35 : vector<1x128xf32> to vector<16x128xf32>
    %57 = arith.addf %55, %56 : vector<16x128xf32>
    %58 = arith.truncf %57 : vector<16x128xf32> to vector<16x128xbf16>
    %c0_23 = arith.constant 0 : index
    %c0_24 = arith.constant 0 : index
    %c0_25 = arith.constant 0 : index
    %59 = vector.load %arg7[%c0_23, %c0_24, %c0_25] : memref<4x128x32xbf16, #tpu.memory_space<vmem>>, vector<4x128x32xbf16>
    %c0_26 = arith.constant 0 : index
    %c0_27 = arith.constant 0 : index
    %c0_28 = arith.constant 0 : index
    %60 = vector.load %arg8[%c0_26, %c0_27, %c0_28] : memref<4x128x32xbf16, #tpu.memory_space<vmem>>, vector<4x128x32xbf16>
    %c0_29 = arith.constant 0 : index
    %c0_30 = arith.constant 0 : index
    %c0_31 = arith.constant 0 : index
    %61 = vector.load %arg9[%c0_29, %c0_30, %c0_31] : memref<4x128x32xbf16, #tpu.memory_space<vmem>>, vector<4x128x32xbf16>
    %c0_32 = arith.constant 0 : index
    %c0_33 = arith.constant 0 : index
    %c0_34 = arith.constant 0 : index
    %62 = vector.load %arg10[%c0_32, %c0_33, %c0_34] : memref<4x32x128xbf16, #tpu.memory_space<vmem>>, vector<4x32x128xbf16>
    %63 = vector.shape_cast %58 : vector<16x128xbf16> to vector<1x16x128xbf16>
    %64 = vector.shape_cast %63 : vector<1x16x128xbf16> to vector<1x16x128xbf16>
    %65 = vector.broadcast %64 : vector<1x16x128xbf16> to vector<4x16x128xbf16>
    "tpu.trace_start"() <{level = 10 : i32, message = "hnd,hde->hne"}> : () -> ()
    %cst_35 = arith.constant dense<0.000000e+00> : vector<4x16x32xf32>
    %66 = tpu.matmul %65, %59, %cst_35 {dimension_numbers = #tpu.dot_dimension_numbers<[2], [1], [1], [2], [0, 0, 0, 1, 1, 2], [0], [0]>} : vector<4x16x128xbf16>, vector<4x128x32xbf16>, vector<4x16x32xf32> -> vector<4x16x32xf32>
    "tpu.trace_stop"() : () -> ()
    %67 = vector.shape_cast %32 : vector<16x128xbf16> to vector<1x16x128xbf16>
    %68 = vector.shape_cast %67 : vector<1x16x128xbf16> to vector<1x16x128xbf16>
    %69 = vector.broadcast %68 : vector<1x16x128xbf16> to vector<4x16x128xbf16>
    "tpu.trace_start"() <{level = 10 : i32, message = "hsd,hde->hse"}> : () -> ()
    %cst_36 = arith.constant dense<0.000000e+00> : vector<4x16x32xf32>
    %70 = tpu.matmul %69, %60, %cst_36 {dimension_numbers = #tpu.dot_dimension_numbers<[2], [1], [1], [2], [0, 0, 0, 1, 1, 2], [0], [0]>} : vector<4x16x128xbf16>, vector<4x128x32xbf16>, vector<4x16x32xf32> -> vector<4x16x32xf32>
    %cst_37 = arith.constant dense<0.000000e+00> : vector<4x16x32xf32>
    %71 = tpu.matmul %69, %61, %cst_37 {dimension_numbers = #tpu.dot_dimension_numbers<[2], [1], [1], [2], [0, 0, 0, 1, 1, 2], [0], [0]>} : vector<4x16x128xbf16>, vector<4x128x32xbf16>, vector<4x16x32xf32> -> vector<4x16x32xf32>
    "tpu.trace_stop"() : () -> ()
    %72 = vector.extract_strided_slice %70 {offsets = [0, 0, 0], sizes = [4, 8, 32], strides = [1, 1, 1]} : vector<4x16x32xf32> to vector<4x8x32xf32>
    %73 = vector.extract_strided_slice %71 {offsets = [0, 0, 0], sizes = [4, 8, 32], strides = [1, 1, 1]} : vector<4x16x32xf32> to vector<4x8x32xf32>
    "tpu.trace_start"() <{level = 10 : i32, message = "hne,hse->hns"}> : () -> ()
    %cst_38 = arith.constant dense<0.000000e+00> : vector<4x16x8xf32>
    %74 = tpu.matmul %66, %72, %cst_38 {dimension_numbers = #tpu.dot_dimension_numbers<[2], [2], [1], [1], [0, 0, 0, 1, 1, 1], [0], [0]>} : vector<4x16x32xf32>, vector<4x8x32xf32>, vector<4x16x8xf32> -> vector<4x16x8xf32>
    "tpu.trace_stop"() : () -> ()
    %cst_39 = arith.constant 0.176776692 : f32
    %75 = vector.broadcast %cst_39 : f32 to vector<4x16x8xf32>
    %76 = arith.mulf %74, %75 : vector<4x16x8xf32>
    %cst_40 = arith.constant dense<0xFF800000> : vector<4x16xf32>
    %77 = vector.multi_reduction <maximumf>, %76, %cst_40 [2] : vector<4x16x8xf32> to vector<4x16xf32>
    %78 = vector.shape_cast %77 : vector<4x16xf32> to vector<4x16x1xf32>
    %79 = vector.broadcast %78 : vector<4x16x1xf32> to vector<4x16x8xf32>
    %80 = arith.subf %76, %79 : vector<4x16x8xf32>
    %81 = math.exp %80 : vector<4x16x8xf32>
    %cst_41 = arith.constant dense<0.000000e+00> : vector<4x16xf32>
    %82 = vector.multi_reduction <add>, %81, %cst_41 [2] : vector<4x16x8xf32> to vector<4x16xf32>
    %83 = vector.shape_cast %82 : vector<4x16xf32> to vector<4x16x1xf32>
    %84 = tpu.reciprocal %83 {approx = true} : vector<4x16x1xf32> -> vector<4x16x1xf32>
    %85 = vector.broadcast %84 : vector<4x16x1xf32> to vector<4x16x8xf32>
    %86 = arith.mulf %81, %85 : vector<4x16x8xf32>
    %87 = arith.truncf %86 : vector<4x16x8xf32> to vector<4x16x8xbf16>
    %88 = arith.truncf %73 : vector<4x8x32xf32> to vector<4x8x32xbf16>
    "tpu.trace_start"() <{level = 10 : i32, message = "hns,hse->hne"}> : () -> ()
    %cst_42 = arith.constant dense<0.000000e+00> : vector<4x16x32xf32>
    %89 = tpu.matmul %87, %88, %cst_42 {dimension_numbers = #tpu.dot_dimension_numbers<[2], [1], [1], [2], [0, 0, 0, 1, 1, 2], [0], [0]>} : vector<4x16x8xbf16>, vector<4x8x32xbf16>, vector<4x16x32xf32> -> vector<4x16x32xf32>
    "tpu.trace_stop"() : () -> ()
    %90 = arith.truncf %89 : vector<4x16x32xf32> to vector<4x16x32xbf16>
    "tpu.trace_start"() <{level = 10 : i32, message = "hne,hed->hnd"}> : () -> ()
    %cst_43 = arith.constant dense<0.000000e+00> : vector<4x16x128xf32>
    %91 = tpu.matmul %90, %62, %cst_43 {dimension_numbers = #tpu.dot_dimension_numbers<[2], [1], [1], [2], [0, 0, 0, 1, 1, 2], [0], [0]>} : vector<4x16x32xbf16>, vector<4x32x128xbf16>, vector<4x16x128xf32> -> vector<4x16x128xf32>
    "tpu.trace_stop"() : () -> ()
    %cst_44 = arith.constant dense<0.000000e+00> : vector<16x128xf32>
    %92 = vector.multi_reduction <add>, %91, %cst_44 [0] : vector<4x16x128xf32> to vector<16x128xf32>
    %93 = arith.addf %92, %33 : vector<16x128xf32>
    %94 = vector.extract_strided_slice %70 {offsets = [0, 8, 0], sizes = [4, 8, 32], strides = [1, 1, 1]} : vector<4x16x32xf32> to vector<4x8x32xf32>
    %95 = vector.extract_strided_slice %71 {offsets = [0, 8, 0], sizes = [4, 8, 32], strides = [1, 1, 1]} : vector<4x16x32xf32> to vector<4x8x32xf32>
    "tpu.trace_start"() <{level = 10 : i32, message = "hne,hse->hns"}> : () -> ()
    %cst_45 = arith.constant dense<0.000000e+00> : vector<4x16x8xf32>
    %96 = tpu.matmul %66, %94, %cst_45 {dimension_numbers = #tpu.dot_dimension_numbers<[2], [2], [1], [1], [0, 0, 0, 1, 1, 1], [0], [0]>} : vector<4x16x32xf32>, vector<4x8x32xf32>, vector<4x16x8xf32> -> vector<4x16x8xf32>
    "tpu.trace_stop"() : () -> ()
    %cst_46 = arith.constant 0.176776692 : f32
    %97 = vector.broadcast %cst_46 : f32 to vector<4x16x8xf32>
    %98 = arith.mulf %96, %97 : vector<4x16x8xf32>
    %cst_47 = arith.constant dense<0xFF800000> : vector<4x16xf32>
    %99 = vector.multi_reduction <maximumf>, %98, %cst_47 [2] : vector<4x16x8xf32> to vector<4x16xf32>
    %100 = vector.shape_cast %99 : vector<4x16xf32> to vector<4x16x1xf32>
    %101 = vector.broadcast %100 : vector<4x16x1xf32> to vector<4x16x8xf32>
    %102 = arith.subf %98, %101 : vector<4x16x8xf32>
    %103 = math.exp %102 : vector<4x16x8xf32>
    %cst_48 = arith.constant dense<0.000000e+00> : vector<4x16xf32>
    %104 = vector.multi_reduction <add>, %103, %cst_48 [2] : vector<4x16x8xf32> to vector<4x16xf32>
    %105 = vector.shape_cast %104 : vector<4x16xf32> to vector<4x16x1xf32>
    %106 = tpu.reciprocal %105 {approx = true} : vector<4x16x1xf32> -> vector<4x16x1xf32>
    %107 = vector.broadcast %106 : vector<4x16x1xf32> to vector<4x16x8xf32>
    %108 = arith.mulf %103, %107 : vector<4x16x8xf32>
    %109 = arith.truncf %108 : vector<4x16x8xf32> to vector<4x16x8xbf16>
    %110 = arith.truncf %95 : vector<4x8x32xf32> to vector<4x8x32xbf16>
    "tpu.trace_start"() <{level = 10 : i32, message = "hns,hse->hne"}> : () -> ()
    %cst_49 = arith.constant dense<0.000000e+00> : vector<4x16x32xf32>
    %111 = tpu.matmul %109, %110, %cst_49 {dimension_numbers = #tpu.dot_dimension_numbers<[2], [1], [1], [2], [0, 0, 0, 1, 1, 2], [0], [0]>} : vector<4x16x8xbf16>, vector<4x8x32xbf16>, vector<4x16x32xf32> -> vector<4x16x32xf32>
    "tpu.trace_stop"() : () -> ()
    %112 = arith.truncf %111 : vector<4x16x32xf32> to vector<4x16x32xbf16>
    "tpu.trace_start"() <{level = 10 : i32, message = "hne,hed->hnd"}> : () -> ()
    %cst_50 = arith.constant dense<0.000000e+00> : vector<4x16x128xf32>
    %113 = tpu.matmul %112, %62, %cst_50 {dimension_numbers = #tpu.dot_dimension_numbers<[2], [1], [1], [2], [0, 0, 0, 1, 1, 2], [0], [0]>} : vector<4x16x32xbf16>, vector<4x32x128xbf16>, vector<4x16x128xf32> -> vector<4x16x128xf32>
    "tpu.trace_stop"() : () -> ()
    %cst_51 = arith.constant dense<0.000000e+00> : vector<16x128xf32>
    %114 = vector.multi_reduction <add>, %113, %cst_51 [0] : vector<4x16x128xf32> to vector<16x128xf32>
    %115 = arith.addf %114, %33 : vector<16x128xf32>
    %116 = tpu.concatenate %93, %115 in 0 : vector<16x128xf32>, vector<16x128xf32> -> vector<32x128xf32>
    %c0_52 = arith.constant 0 : index
    %c0_53 = arith.constant 0 : index
    %117 = vector.load %arg11[%c0_52, %c0_53] : memref<1x128xf32, #tpu.memory_space<vmem>>, vector<1x128xf32>
    %c0_54 = arith.constant 0 : index
    %c0_55 = arith.constant 0 : index
    %118 = vector.load %arg12[%c0_54, %c0_55] : memref<1x128xf32, #tpu.memory_space<vmem>>, vector<1x128xf32>
    %cst_56 = arith.constant dense<0.000000e+00> : vector<32xf32>
    %119 = vector.multi_reduction <add>, %116, %cst_56 [1] : vector<32x128xf32> to vector<32xf32>
    %120 = vector.shape_cast %119 : vector<32xf32> to vector<32x1xf32>
    %cst_57 = arith.constant 1.280000e+02 : f32
    %121 = vector.broadcast %cst_57 : f32 to vector<32x1xf32>
    %122 = arith.divf %120, %121 : vector<32x1xf32>
    %123 = vector.broadcast %122 : vector<32x1xf32> to vector<32x128xf32>
    %124 = arith.subf %116, %123 : vector<32x128xf32>
    %125 = arith.mulf %124, %124 : vector<32x128xf32>
    %cst_58 = arith.constant dense<0.000000e+00> : vector<32xf32>
    %126 = vector.multi_reduction <add>, %125, %cst_58 [1] : vector<32x128xf32> to vector<32xf32>
    %127 = vector.shape_cast %126 : vector<32xf32> to vector<32x1xf32>
    %cst_59 = arith.constant 1.280000e+02 : f32
    %128 = vector.broadcast %cst_59 : f32 to vector<32x1xf32>
    %129 = arith.divf %127, %128 : vector<32x1xf32>
    %130 = vector.broadcast %122 : vector<32x1xf32> to vector<32x128xf32>
    %131 = arith.subf %116, %130 : vector<32x128xf32>
    %cst_60 = arith.constant 9.99999974E-6 : f32
    %132 = vector.broadcast %cst_60 : f32 to vector<32x1xf32>
    %133 = arith.addf %129, %132 : vector<32x1xf32>
    %134 = math.rsqrt %133 : vector<32x1xf32>
    %135 = vector.broadcast %134 : vector<32x1xf32> to vector<32x128xf32>
    %136 = arith.mulf %131, %135 : vector<32x128xf32>
    %137 = vector.broadcast %117 : vector<1x128xf32> to vector<32x128xf32>
    %138 = arith.mulf %136, %137 : vector<32x128xf32>
    %139 = vector.broadcast %118 : vector<1x128xf32> to vector<32x128xf32>
    %140 = arith.addf %138, %139 : vector<32x128xf32>
    %141 = arith.truncf %140 : vector<32x128xf32> to vector<32x128xbf16>
    %c0_61 = arith.constant 0 : index
    %c0_62 = arith.constant 0 : index
    %142 = vector.load %arg13[%c0_61, %c0_62] : memref<128x1024xbf16, #tpu.memory_space<vmem>>, vector<128x1024xbf16>
    %cst_63 = arith.constant dense<0.000000e+00> : vector<32x1024xf32>
    %143 = tpu.matmul %141, %142, %cst_63 {dimension_numbers = #tpu.dot_dimension_numbers<[1], [0], [0], [1], [0, 0, 1, 1], [], []>} : vector<32x128xbf16>, vector<128x1024xbf16>, vector<32x1024xf32> -> vector<32x1024xf32>
    %c0_64 = arith.constant 0 : index
    %c0_65 = arith.constant 0 : index
    %144 = vector.load %arg14[%c0_64, %c0_65] : memref<1x1024xf32, #tpu.memory_space<vmem>>, vector<1x1024xf32>
    %145 = vector.broadcast %144 : vector<1x1024xf32> to vector<32x1024xf32>
    %146 = arith.addf %143, %145 : vector<32x1024xf32>
    %147 = vector.extract_strided_slice %146 {offsets = [0, 0], sizes = [32, 512], strides = [1, 1]} : vector<32x1024xf32> to vector<32x512xf32>
    %148 = vector.extract_strided_slice %146 {offsets = [0, 512], sizes = [32, 512], strides = [1, 1]} : vector<32x1024xf32> to vector<32x512xf32>
    %cst_66 = arith.constant 5.000000e-01 : f32
    %149 = vector.broadcast %cst_66 : f32 to vector<32x512xf32>
    %150 = arith.mulf %149, %148 : vector<32x512xf32>
    %cst_67 = arith.constant 0.707106769 : f32
    %151 = vector.broadcast %cst_67 : f32 to vector<32x512xf32>
    %152 = arith.mulf %148, %151 : vector<32x512xf32>
    %153 = math.erf %152 : vector<32x512xf32>
    %cst_68 = arith.constant 1.000000e+00 : f32
    %154 = vector.broadcast %cst_68 : f32 to vector<32x512xf32>
    %155 = arith.addf %154, %153 : vector<32x512xf32>
    %156 = arith.mulf %150, %155 : vector<32x512xf32>
    %157 = arith.mulf %147, %156 : vector<32x512xf32>
    %158 = arith.truncf %157 : vector<32x512xf32> to vector<32x512xbf16>
    %c0_69 = arith.constant 0 : index
    %c0_70 = arith.constant 0 : index
    %159 = vector.load %arg15[%c0_69, %c0_70] : memref<512x128xbf16, #tpu.memory_space<vmem>>, vector<512x128xbf16>
    %cst_71 = arith.constant dense<0.000000e+00> : vector<32x128xf32>
    %160 = tpu.matmul %158, %159, %cst_71 {dimension_numbers = #tpu.dot_dimension_numbers<[1], [0], [0], [1], [0, 0, 1, 1], [], []>} : vector<32x512xbf16>, vector<512x128xbf16>, vector<32x128xf32> -> vector<32x128xf32>
    %c0_72 = arith.constant 0 : index
    %c0_73 = arith.constant 0 : index
    %161 = vector.load %arg16[%c0_72, %c0_73] : memref<1x128xf32, #tpu.memory_space<vmem>>, vector<1x128xf32>
    %162 = vector.broadcast %161 : vector<1x128xf32> to vector<32x128xf32>
    %163 = arith.addf %160, %162 : vector<32x128xf32>
    %164 = arith.addf %116, %163 : vector<32x128xf32>
    %165 = vector.extract_strided_slice %164 {offsets = [0, 0], sizes = [16, 128], strides = [1, 1]} : vector<32x128xf32> to vector<16x128xf32>
    %cst_74 = arith.constant dense<0.000000e+00> : vector<128xf32>
    %166 = vector.multi_reduction <add>, %165, %cst_74 [0] : vector<16x128xf32> to vector<128xf32>
    %167 = vector.shape_cast %166 : vector<128xf32> to vector<1x128xf32>
    %cst_75 = arith.constant 1.600000e+01 : f32
    %168 = vector.broadcast %cst_75 : f32 to vector<1x128xf32>
    %169 = arith.divf %167, %168 : vector<1x128xf32>
    %170 = arith.mulf %169, %169 : vector<1x128xf32>
    %cst_76 = arith.constant dense<0.000000e+00> : vector<1xf32>
    %171 = vector.multi_reduction <add>, %170, %cst_76 [1] : vector<1x128xf32> to vector<1xf32>
    %172 = vector.shape_cast %171 : vector<1xf32> to vector<1x1xf32>
    %cst_77 = arith.constant 1.000000e-24 : f32
    %173 = vector.broadcast %cst_77 : f32 to vector<1x1xf32>
    %174 = arith.maximumf %172, %173 : vector<1x1xf32>
    %175 = math.rsqrt %174 : vector<1x1xf32>
    %176 = vector.broadcast %175 : vector<1x1xf32> to vector<1x128xf32>
    %177 = arith.mulf %169, %176 : vector<1x128xf32>
    %178 = vector.extract_strided_slice %164 {offsets = [16, 0], sizes = [16, 128], strides = [1, 1]} : vector<32x128xf32> to vector<16x128xf32>
    %cst_78 = arith.constant dense<0.000000e+00> : vector<128xf32>
    %179 = vector.multi_reduction <add>, %178, %cst_78 [0] : vector<16x128xf32> to vector<128xf32>
    %180 = vector.shape_cast %179 : vector<128xf32> to vector<1x128xf32>
    %cst_79 = arith.constant 1.600000e+01 : f32
    %181 = vector.broadcast %cst_79 : f32 to vector<1x128xf32>
    %182 = arith.divf %180, %181 : vector<1x128xf32>
    %183 = arith.mulf %182, %182 : vector<1x128xf32>
    %cst_80 = arith.constant dense<0.000000e+00> : vector<1xf32>
    %184 = vector.multi_reduction <add>, %183, %cst_80 [1] : vector<1x128xf32> to vector<1xf32>
    %185 = vector.shape_cast %184 : vector<1xf32> to vector<1x1xf32>
    %cst_81 = arith.constant 1.000000e-24 : f32
    %186 = vector.broadcast %cst_81 : f32 to vector<1x1xf32>
    %187 = arith.maximumf %185, %186 : vector<1x1xf32>
    %188 = math.rsqrt %187 : vector<1x1xf32>
    %189 = vector.broadcast %188 : vector<1x1xf32> to vector<1x128xf32>
    %190 = arith.mulf %182, %189 : vector<1x128xf32>
    %191 = tpu.concatenate %177, %190 in 0 : vector<1x128xf32>, vector<1x128xf32> -> vector<2x128xf32>
    %c0_82 = arith.constant 0 : index
    %c0_83 = arith.constant 0 : index
    %192 = vector.load %arg17[%c0_82, %c0_83] : memref<2x128xf32, #tpu.memory_space<vmem>>, vector<2x128xf32>
    tpu.vector_store %arg17[%c0_82, %c0_83], %191 {strides = array<i32>} : memref<2x128xf32, #tpu.memory_space<vmem>>, vector<2x128xf32>,
    return
  }
}

</mosaic_0001>

<llo_original>
// kernel: tpu_custom_call.1
$region0: #{tpu_custom_call.1}
  #allocation0 [shape = 'u32[]', space=smem, size = 0x4, offset = 0x4, fixed_abs, tag = 'smem constant byte address 0x4 - core index']
  #allocation1 [shape = 'u32[72,128]{1,0:T(1,128)}', space=vmem, size = 0x9000, scoped, tag = 'internal scratch']
  %s0 = inlined_call_operand.hbm [shape: f32[2,8,128], index: 0, kind: input, shape index: {}]
  %s1 = inlined_call_operand.hbm [shape: f32[8,128], index: 1, kind: input, shape index: {}]
  %s2 = inlined_call_operand.hbm [shape: f32[16,128], index: 2, kind: input, shape index: {}]
  %s3 = inlined_call_operand.hbm [shape: f32[1,128], index: 3, kind: input, shape index: {}]
  %s4 = inlined_call_operand.hbm [shape: f32[1,128], index: 4, kind: input, shape index: {}]
  %s5 = inlined_call_operand.hbm [shape: f32[1,128], index: 5, kind: input, shape index: {}]
  %s6 = inlined_call_operand.hbm [shape: f32[1,128], index: 6, kind: input, shape index: {}]
  %s7 = inlined_call_operand.vmem [shape: bf16[4,128,32], index: 7, kind: input, shape index: {}]
  %s8 = inlined_call_operand.vmem [shape: bf16[4,128,32], index: 8, kind: input, shape index: {}]
  %s9 = inlined_call_operand.vmem [shape: bf16[4,128,32], index: 9, kind: input, shape index: {}]
  %s10 = inlined_call_operand.vmem [shape: bf16[4,32,128], index: 10, kind: input, shape index: {}]
  %s11 = inlined_call_operand.vmem [shape: f32[1,128], index: 11, kind: input, shape index: {}]
  %s12 = inlined_call_operand.vmem [shape: f32[1,128], index: 12, kind: input, shape index: {}]
  %s13 = inlined_call_operand.vmem [shape: bf16[128,1024], index: 13, kind: input, shape index: {}]
  %s14 = inlined_call_operand.vmem [shape: f32[1,1024], index: 14, kind: input, shape index: {}]
  %s15 = inlined_call_operand.vmem [shape: bf16[512,128], index: 15, kind: input, shape index: {}]
  %s16 = inlined_call_operand.hbm [shape: f32[1,128], index: 16, kind: input, shape index: {}]
  %s17 = inlined_call_operand.hbm [shape: f32[2,128], index: 17, kind: output, shape index: {}]
  %s18 = sld [smem:[#allocation0]]
  $region110: #{tpu_custom_call.1} parent=0
    _
  %s20 = ssub.s32 1, %s18
  %s21 = scalar_select 0, %s20, %s18
  $region1: #{tpu_custom_call.1} parent=0
    #allocation2 [shape = 'u8[8192]{0}', space=vmem, size = 0x2000, scoped, tag = 'input window, operand 0, single buffered']
    #allocation3 [shape = 's32[1]{0}', space=sflag, size = 0x4, scoped, tag = 'scoped memory for tpu_custom_call.1']
    #allocation4 [shape = 's32[1]{0}', space=sflag, size = 0x4, scoped, tag = 'scoped memory for tpu_custom_call.1']
    #allocation5 [shape = 'u8[4096]{0}', space=vmem, size = 0x1000, scoped, tag = 'input window, operand 1, single buffered']
    #allocation6 [shape = 's32[1]{0}', space=sflag, size = 0x4, scoped, tag = 'scoped memory for tpu_custom_call.1']
    #allocation7 [shape = 'u8[8192]{0}', space=vmem, size = 0x2000, scoped, tag = 'input window, operand 2, single buffered']
    #allocation8 [shape = 'u8[512]{0}', space=vmem, size = 0x400, scoped, tag = 'input window, operand 3, single buffered']
    #allocation9 [shape = 's32[1]{0}', space=sflag, size = 0x4, scoped, tag = 'scoped memory for tpu_custom_call.1']
    #allocation10 [shape = 'u8[512]{0}', space=vmem, size = 0x400, scoped, tag = 'input window, operand 4, single buffered']
    #allocation11 [shape = 'u8[512]{0}', space=vmem, size = 0x400, scoped, tag = 'input window, operand 5, single buffered']
    #allocation12 [shape = 's32[1]{0}', space=sflag, size = 0x4, scoped, tag = 'scoped memory for tpu_custom_call.1']
    #allocation13 [shape = 'u8[512]{0}', space=vmem, size = 0x400, scoped, tag = 'input window, operand 6, single buffered']
    #allocation14 [shape = 'u8[512]{0}', space=vmem, size = 0x400, scoped, tag = 'input window, operand 16, single buffered']
    #allocation15 [shape = 's32[1]{0}', space=sflag, size = 0x4, scoped, tag = 'scoped memory for tpu_custom_call.1']
    #allocation16 [shape = 'u8[1024]{0}', space=vmem, size = 0x400, scoped, tag = 'output window, operand 0, single buffered']
    %22 = vsyncpa [#allocation3], 0
    %23 = vsyncpa [#allocation6], 0
    %24 = vsyncpa [#allocation9], 0
    %25 = vsyncpa [#allocation12], 0
    %26 = vsyncpa [#allocation15], 0
    %27 = vsyncpa [#allocation4], 0
    // Predicated region
    $region2: #{tpu_custom_call.1} parent=1 // pred_check
      _
    $region3: #{tpu_custom_call.1} parent=1 // pred_check_branch
      %29 = sbr.rel (0) target = $region5
    $region4: #{tpu_custom_call.1} parent=1 // pred_region
      %31 = vsyncadd [#allocation3], 0
      %s32 = sshll.u32 %s0, 4
      %s33 = int_to_ptr.hbm [resolvable:$true] %s32
      %s34 = sshll.u32 [#allocation2], 4
      %s35 = int_to_ptr.vmem [resolvable:$true] %s34
      %40 = dma.hbm_to_vmem [thread:$0]  %s33, 256, %s35, [#allocation3], 128, 128, 8
    $region5: #{tpu_custom_call.1} parent=1 // pred_fallthru
      _
    // Predicated region
    $region6: #{tpu_custom_call.1} parent=1 // pred_check
      _
    $region7: #{tpu_custom_call.1} parent=1 // pred_check_branch
      %42 = sbr.rel (0) target = $region9
    $region8: #{tpu_custom_call.1} parent=1 // pred_region
      %44 = vsyncadd [#allocation6], 0
      %s46 = sshll.u32 %s1, 4
      %s47 = int_to_ptr.hbm [resolvable:$true] %s46
      %s48 = sshll.u32 [#allocation5], 4
      %s49 = int_to_ptr.vmem [resolvable:$true] %s48
      %51 = dma.hbm_to_vmem [thread:$0]  %s47, 128, %s49, [#allocation6]
    $region9: #{tpu_custom_call.1} parent=1 // pred_fallthru
      _
    // Predicated region
    $region10: #{tpu_custom_call.1} parent=1 // pred_check
      _
    $region11: #{tpu_custom_call.1} parent=1 // pred_check_branch
      %53 = sbr.rel (0) target = $region13
    $region12: #{tpu_custom_call.1} parent=1 // pred_region
      %55 = vsyncadd [#allocation6], 0
      %s56 = sshll.u32 %s2, 4
      %s57 = int_to_ptr.hbm [resolvable:$true] %s56
      %s58 = sshll.u32 [#allocation7], 4
      %s59 = int_to_ptr.vmem [resolvable:$true] %s58
      %64 = dma.hbm_to_vmem [thread:$0]  %s57, 256, %s59, [#allocation6], 128, 128, 8
    $region13: #{tpu_custom_call.1} parent=1 // pred_fallthru
      _
    // Predicated region
    $region14: #{tpu_custom_call.1} parent=1 // pred_check
      _
    $region15: #{tpu_custom_call.1} parent=1 // pred_check_branch
      %66 = sbr.rel (0) target = $region17
    $region16: #{tpu_custom_call.1} parent=1 // pred_region
      %68 = vsyncadd [#allocation9], 0
      %s70 = sshll.u32 %s3, 4
      %s71 = int_to_ptr.hbm [resolvable:$true] %s70
      %s72 = sshll.u32 [#allocation8], 4
      %s73 = int_to_ptr.vmem [resolvable:$true] %s72
      %75 = dma.hbm_to_vmem [thread:$0]  %s71, 16, %s73, [#allocation9]
    $region17: #{tpu_custom_call.1} parent=1 // pred_fallthru
      _
    // Predicated region
    $region18: #{tpu_custom_call.1} parent=1 // pred_check
      _
    $region19: #{tpu_custom_call.1} parent=1 // pred_check_branch
      %77 = sbr.rel (0) target = $region21
    $region20: #{tpu_custom_call.1} parent=1 // pred_region
      %79 = vsyncadd [#allocation9], 0
      %s81 = sshll.u32 %s4, 4
      %s82 = int_to_ptr.hbm [resolvable:$true] %s81
      %s83 = sshll.u32 [#allocation10], 4
      %s84 = int_to_ptr.vmem [resolvable:$true] %s83
      %86 = dma.hbm_to_vmem [thread:$0]  %s82, 16, %s84, [#allocation9]
    $region21: #{tpu_custom_call.1} parent=1 // pred_fallthru
      _
    // Predicated region
    $region22: #{tpu_custom_call.1} parent=1 // pred_check
      _
    $region23: #{tpu_custom_call.1} parent=1 // pred_check_branch
      %88 = sbr.rel (0) target = $region25
    $region24: #{tpu_custom_call.1} parent=1 // pred_region
      %90 = vsyncadd [#allocation12], 0
      %s92 = sshll.u32 %s5, 4
      %s93 = int_to_ptr.hbm [resolvable:$true] %s92
      %s94 = sshll.u32 [#allocation11], 4
      %s95 = int_to_ptr.vmem [resolvable:$true] %s94
      %97 = dma.hbm_to_vmem [thread:$0]  %s93, 16, %s95, [#allocation12]
    $region25: #{tpu_custom_call.1} parent=1 // pred_fallthru
      _
    // Predicated region
    $region26: #{tpu_custom_call.1} parent=1 // pred_check
      _
    $region27: #{tpu_custom_call.1} parent=1 // pred_check_branch
      %99 = sbr.rel (0) target = $region29
    $region28: #{tpu_custom_call.1} parent=1 // pred_region
      %101 = vsyncadd [#allocation12], 0
      %s103 = sshll.u32 %s6, 4
      %s104 = int_to_ptr.hbm [resolvable:$true] %s103
      %s105 = sshll.u32 [#allocation13], 4
      %s106 = int_to_ptr.vmem [resolvable:$true] %s105
      %108 = dma.hbm_to_vmem [thread:$0]  %s104, 16, %s106, [#allocation12]
    $region29: #{tpu_custom_call.1} parent=1 // pred_fallthru
      _
    // Predicated region
    $region30: #{tpu_custom_call.1} parent=1 // pred_check
      _
    $region31: #{tpu_custom_call.1} parent=1 // pred_check_branch
      %110 = sbr.rel (0) target = $region33
    $region32: #{tpu_custom_call.1} parent=1 // pred_region
      _
    $region33: #{tpu_custom_call.1} parent=1 // pred_fallthru
      _
    // Predicated region
    $region34: #{tpu_custom_call.1} parent=1 // pred_check
      _
    $region35: #{tpu_custom_call.1} parent=1 // pred_check_branch
      %112 = sbr.rel (0) target = $region37
    $region36: #{tpu_custom_call.1} parent=1 // pred_region
      _
    $region37: #{tpu_custom_call.1} parent=1 // pred_fallthru
      _
    // Predicated region
    $region38: #{tpu_custom_call.1} parent=1 // pred_check
      _
    $region39: #{tpu_custom_call.1} parent=1 // pred_check_branch
      %114 = sbr.rel (0) target = $region41
    $region40: #{tpu_custom_call.1} parent=1 // pred_region
      _
    $region41: #{tpu_custom_call.1} parent=1 // pred_fallthru
      _
    // Predicated region
    $region42: #{tpu_custom_call.1} parent=1 // pred_check
      _
    $region43: #{tpu_custom_call.1} parent=1 // pred_check_branch
      %116 = sbr.rel (0) target = $region45
    $region44: #{tpu_custom_call.1} parent=1 // pred_region
      _
    $region45: #{tpu_custom_call.1} parent=1 // pred_fallthru
      _
    // Predicated region
    $region46: #{tpu_custom_call.1} parent=1 // pred_check
      _
    $region47: #{tpu_custom_call.1} parent=1 // pred_check_branch
      %118 = sbr.rel (0) target = $region49
    $region48: #{tpu_custom_call.1} parent=1 // pred_region
      _
    $region49: #{tpu_custom_call.1} parent=1 // pred_fallthru
      _
    // Predicated region
    $region50: #{tpu_custom_call.1} parent=1 // pred_check
      _
    $region51: #{tpu_custom_call.1} parent=1 // pred_check_branch
      %120 = sbr.rel (0) target = $region53
    $region52: #{tpu_custom_call.1} parent=1 // pred_region
      _
    $region53: #{tpu_custom_call.1} parent=1 // pred_fallthru
      _
    // Predicated region
    $region54: #{tpu_custom_call.1} parent=1 // pred_check
      _
    $region55: #{tpu_custom_call.1} parent=1 // pred_check_branch
      %122 = sbr.rel (0) target = $region57
    $region56: #{tpu_custom_call.1} parent=1 // pred_region
      _
    $region57: #{tpu_custom_call.1} parent=1 // pred_fallthru
      _
    // Predicated region
    $region58: #{tpu_custom_call.1} parent=1 // pred_check
      _
    $region59: #{tpu_custom_call.1} parent=1 // pred_check_branch
      %124 = sbr.rel (0) target = $region61
    $region60: #{tpu_custom_call.1} parent=1 // pred_region
      _
    $region61: #{tpu_custom_call.1} parent=1 // pred_fallthru
      _
    // Predicated region
    $region62: #{tpu_custom_call.1} parent=1 // pred_check
      _
    $region63: #{tpu_custom_call.1} parent=1 // pred_check_branch
      %126 = sbr.rel (0) target = $region65
    $region64: #{tpu_custom_call.1} parent=1 // pred_region
      _
    $region65: #{tpu_custom_call.1} parent=1 // pred_fallthru
      _
    // Predicated region
    $region66: #{tpu_custom_call.1} parent=1 // pred_check
      _
    $region67: #{tpu_custom_call.1} parent=1 // pred_check_branch
      %128 = sbr.rel (0) target = $region69
    $region68: #{tpu_custom_call.1} parent=1 // pred_region
      %130 = vsyncadd [#allocation15], 0
      %s132 = sshll.u32 %s16, 4
      %s133 = int_to_ptr.hbm [resolvable:$true] %s132
      %s134 = sshll.u32 [#allocation14], 4
      %s135 = int_to_ptr.vmem [resolvable:$true] %s134
      %137 = dma.hbm_to_vmem [thread:$0]  %s133, 16, %s135, [#allocation15]
    $region69: #{tpu_custom_call.1} parent=1 // pred_fallthru
      _
    // Predicated region
    $region70: #{tpu_custom_call.1} parent=1 // pred_check
      _
    $region71: #{tpu_custom_call.1} parent=1 // pred_check_branch
      %139 = sbr.rel (0) target = $region73
    $region72: #{tpu_custom_call.1} parent=1 // pred_region
      %141 = dma.done [#allocation3], 256
    $region73: #{tpu_custom_call.1} parent=1 // pred_fallthru
      _
    // Predicated region
    $region74: #{tpu_custom_call.1} parent=1 // pred_check
      _
    $region75: #{tpu_custom_call.1} parent=1 // pred_check_branch
      %143 = sbr.rel (0) target = $region77
    $region76: #{tpu_custom_call.1} parent=1 // pred_region
      %145 = dma.done [#allocation6], 128
    $region77: #{tpu_custom_call.1} parent=1 // pred_fallthru
      _
    // Predicated region
    $region78: #{tpu_custom_call.1} parent=1 // pred_check
      _
    $region79: #{tpu_custom_call.1} parent=1 // pred_check_branch
      %147 = sbr.rel (0) target = $region81
    $region80: #{tpu_custom_call.1} parent=1 // pred_region
      %149 = dma.done [#allocation6], 256
    $region81: #{tpu_custom_call.1} parent=1 // pred_fallthru
      _
    // Predicated region
    $region82: #{tpu_custom_call.1} parent=1 // pred_check
      _
    $region83: #{tpu_custom_call.1} parent=1 // pred_check_branch
      %151 = sbr.rel (0) target = $region85
    $region84: #{tpu_custom_call.1} parent=1 // pred_region
      %153 = dma.done [#allocation9], 16
    $region85: #{tpu_custom_call.1} parent=1 // pred_fallthru
      _
    // Predicated region
    $region86: #{tpu_custom_call.1} parent=1 // pred_check
      _
    $region87: #{tpu_custom_call.1} parent=1 // pred_check_branch
      %155 = sbr.rel (0) target = $region89
    $region88: #{tpu_custom_call.1} parent=1 // pred_region
      %157 = dma.done [#allocation9], 16
    $region89: #{tpu_custom_call.1} parent=1 // pred_fallthru
      _
    // Predicated region
    $region90: #{tpu_custom_call.1} parent=1 // pred_check
      _
    $region91: #{tpu_custom_call.1} parent=1 // pred_check_branch
      %159 = sbr.rel (0) target = $region93
    $region92: #{tpu_custom_call.1} parent=1 // pred_region
      %161 = dma.done [#allocation12], 16
    $region93: #{tpu_custom_call.1} parent=1 // pred_fallthru
      _
    // Predicated region
    $region94: #{tpu_custom_call.1} parent=1 // pred_check
      _
    $region95: #{tpu_custom_call.1} parent=1 // pred_check_branch
      %163 = sbr.rel (0) target = $region97
    $region96: #{tpu_custom_call.1} parent=1 // pred_region
      %165 = dma.done [#allocation12], 16
    $region97: #{tpu_custom_call.1} parent=1 // pred_fallthru
      _
    // Predicated region
    $region98: #{tpu_custom_call.1} parent=1 // pred_check
      _
    $region99: #{tpu_custom_call.1} parent=1 // pred_check_branch
      %167 = sbr.rel (0) target = $region101
    $region100: #{tpu_custom_call.1} parent=1 // pred_region
      %169 = dma.done [#allocation15], 16
    $region101: #{tpu_custom_call.1} parent=1 // pred_fallthru
      _
    %v171 = vld [vmem:[#allocation2] sm:$0xff]
    %v172 = vld [vmem:[#allocation2 + $0x8] sm:$0xff]
    %v173 = vld [vmem:[#allocation5] sm:$0xff]
    %v174 = vadd.f32 %v171, %v173
    %v175 = vadd.f32 %v172, %v173
    %v176 = vld [vmem:[#allocation8] sm:$0x1]
    %v177 = vld [vmem:[#allocation10] sm:$0x1]
    %178 = vadd.xlane.f32.xlu0 %v174
    %v179 = vpop.xlane.xlu0 %178
    %180 = vadd.xlane.f32.xlu0 %v175
    %v181 = vpop.xlane.xlu0 %180
    %v182 = vrcp.pop 128.0
    %v183 = vmul.f32 128.0, %v182
    %v184 = vsub.f32 1.0, %v183
    %v185 = vmul.f32 %v182, %v184
    %v186 = vadd.f32 %v182, %v185
    %vm187 = vweird.f32 %v182
    %v188 = vsel %vm187, %v182, %v186
    %v189 = vmul.f32 %v179, %v188
    %v190 = vmul.f32 %v181, %v188
    %v191 = vsub.f32 %v174, %v189
    %v192 = vsub.f32 %v175, %v190
    %v193 = vmul.f32 %v191, %v191
    %v194 = vmul.f32 %v192, %v192
    %195 = vadd.xlane.f32.xlu0 %v193
    %v196 = vpop.xlane.xlu0 %195
    %197 = vadd.xlane.f32.xlu0 %v194
    %v198 = vpop.xlane.xlu0 %197
    %v199 = vmul.f32 %v196, %v188
    %v200 = vmul.f32 %v198, %v188
    %v201 = vadd.f32 %v199, 1e-05
    %v202 = vadd.f32 %v200, 1e-05
    %v203 = vrsqrt.pop %v201
    %v204 = vmul.f32 %v203, %v201
    %v205 = vmul.f32 %v204, %v203
    %v206 = vmul.f32 0.5, %v205
    %v207 = vsub.f32 1.5, %v206
    %v208 = vmul.f32 %v203, %v207
    %vm209 = vweird.f32 %v201
    %vm210 = vweird.f32 %v203
    %vm211 = vmor %vm209, %vm210
    %v212 = vsel %vm211, %v203, %v208
    %v213 = vrsqrt.pop %v202
    %v214 = vmul.f32 %v213, %v202
    %v215 = vmul.f32 %v214, %v213
    %v216 = vmul.f32 0.5, %v215
    %v217 = vsub.f32 1.5, %v216
    %v218 = vmul.f32 %v213, %v217
    %vm219 = vweird.f32 %v202
    %vm220 = vweird.f32 %v213
    %vm221 = vmor %vm219, %vm220
    %v222 = vsel %vm221, %v213, %v218
    %v223 = vmul.f32 %v191, %v212
    %v224 = vmul.f32 %v192, %v222
    %v226 = vperm.slane %v176, 0
    %v228 = vmul.f32 %v223, %v226
    %v229 = vmul.f32 %v224, %v226
    %v231 = vperm.slane %v177, 0
    %v233 = vadd.f32 %v228, %v231
    %v234 = vadd.f32 %v229, %v231
    %v235 = vpack.c.bf16 %v233, %v233
    %v236 = vpack.c.bf16 %v234, %v234
    %v237 = vld [vmem:[#allocation7] sm:$0xff]
    %v238 = vld [vmem:[#allocation7 + $0x8] sm:$0xff]
    %v239 = vld [vmem:[#allocation11] sm:$0x1]
    %v240 = vld [vmem:[#allocation13] sm:$0x1]
    %241 = vadd.xlane.f32.xlu0 %v237
    %v242 = vpop.xlane.xlu0 %241
    %243 = vadd.xlane.f32.xlu0 %v238
    %v244 = vpop.xlane.xlu0 %243
    %v245 = vmul.f32 %v242, %v188
    %v246 = vmul.f32 %v244, %v188
    %v247 = vsub.f32 %v237, %v245
    %v248 = vsub.f32 %v238, %v246
    %v249 = vmul.f32 %v247, %v247
    %v250 = vmul.f32 %v248, %v248
    %251 = vadd.xlane.f32.xlu0 %v249
    %v252 = vpop.xlane.xlu0 %251
    %253 = vadd.xlane.f32.xlu0 %v250
    %v254 = vpop.xlane.xlu0 %253
    %v255 = vmul.f32 %v252, %v188
    %v256 = vmul.f32 %v254, %v188
    %v257 = vadd.f32 %v255, 1e-05
    %v258 = vadd.f32 %v256, 1e-05
    %v259 = vrsqrt.pop %v257
    %v260 = vmul.f32 %v259, %v257
    %v261 = vmul.f32 %v260, %v259
    %v262 = vmul.f32 0.5, %v261
    %v263 = vsub.f32 1.5, %v262
    %v264 = vmul.f32 %v259, %v263
    %vm265 = vweird.f32 %v257
    %vm266 = vweird.f32 %v259
    %vm267 = vmor %vm265, %vm266
    %v268 = vsel %vm267, %v259, %v264
    %v269 = vrsqrt.pop %v258
    %v270 = vmul.f32 %v269, %v258
    %v271 = vmul.f32 %v270, %v269
    %v272 = vmul.f32 0.5, %v271
    %v273 = vsub.f32 1.5, %v272
    %v274 = vmul.f32 %v269, %v273
    %vm275 = vweird.f32 %v258
    %vm276 = vweird.f32 %v269
    %vm277 = vmor %vm275, %vm276
    %v278 = vsel %vm277, %v269, %v274
    %v279 = vmul.f32 %v247, %v268
    %v280 = vmul.f32 %v248, %v278
    %v282 = vperm.slane %v239, 0
    %v284 = vmul.f32 %v279, %v282
    %v285 = vmul.f32 %v280, %v282
    %v287 = vperm.slane %v240, 0
    %v289 = vadd.f32 %v284, %v287
    %v290 = vadd.f32 %v285, %v287
    %v291 = vpack.c.bf16 %v289, %v289
    %v292 = vpack.c.bf16 %v290, %v290
    %v293 = vld [vmem:[%s7] sm:$0xf]
    %v294 = vld [vmem:[%s7 + $0x4] sm:$0xf]
    %v295 = vld [vmem:[%s7 + $0x8] sm:$0xf]
    %v296 = vld [vmem:[%s7 + $0xc] sm:$0xf]
    %v297 = vld [vmem:[%s7 + $0x10] sm:$0xf]
    %v298 = vld [vmem:[%s7 + $0x14] sm:$0xf]
    %v299 = vld [vmem:[%s7 + $0x18] sm:$0xf]
    %v300 = vld [vmem:[%s7 + $0x1c] sm:$0xf]
    %v301 = vld [vmem:[%s7 + $0x20] sm:$0xf]
    %v302 = vld [vmem:[%s7 + $0x24] sm:$0xf]
    %v303 = vld [vmem:[%s7 + $0x28] sm:$0xf]
    %v304 = vld [vmem:[%s7 + $0x2c] sm:$0xf]
    %v305 = vld [vmem:[%s7 + $0x30] sm:$0xf]
    %v306 = vld [vmem:[%s7 + $0x34] sm:$0xf]
    %v307 = vld [vmem:[%s7 + $0x38] sm:$0xf]
    %v308 = vld [vmem:[%s7 + $0x3c] sm:$0xf]
    %v309 = vld [vmem:[%s7 + $0x40] sm:$0xf]
    %v310 = vld [vmem:[%s7 + $0x44] sm:$0xf]
    %v311 = vld [vmem:[%s7 + $0x48] sm:$0xf]
    %v312 = vld [vmem:[%s7 + $0x4c] sm:$0xf]
    %v313 = vld [vmem:[%s7 + $0x50] sm:$0xf]
    %v314 = vld [vmem:[%s7 + $0x54] sm:$0xf]
    %v315 = vld [vmem:[%s7 + $0x58] sm:$0xf]
    %v316 = vld [vmem:[%s7 + $0x5c] sm:$0xf]
    %v317 = vld [vmem:[%s7 + $0x60] sm:$0xf]
    %v318 = vld [vmem:[%s7 + $0x64] sm:$0xf]
    %v319 = vld [vmem:[%s7 + $0x68] sm:$0xf]
    %v320 = vld [vmem:[%s7 + $0x6c] sm:$0xf]
    %v321 = vld [vmem:[%s7 + $0x70] sm:$0xf]
    %v322 = vld [vmem:[%s7 + $0x74] sm:$0xf]
    %v323 = vld [vmem:[%s7 + $0x78] sm:$0xf]
    %v324 = vld [vmem:[%s7 + $0x7c] sm:$0xf]
    %v325 = vld [vmem:[%s7 + $0x80] sm:$0xf]
    %v326 = vld [vmem:[%s7 + $0x84] sm:$0xf]
    %v327 = vld [vmem:[%s7 + $0x88] sm:$0xf]
    %v328 = vld [vmem:[%s7 + $0x8c] sm:$0xf]
    %v329 = vld [vmem:[%s7 + $0x90] sm:$0xf]
    %v330 = vld [vmem:[%s7 + $0x94] sm:$0xf]
    %v331 = vld [vmem:[%s7 + $0x98] sm:$0xf]
    %v332 = vld [vmem:[%s7 + $0x9c] sm:$0xf]
    %v333 = vld [vmem:[%s7 + $0xa0] sm:$0xf]
    %v334 = vld [vmem:[%s7 + $0xa4] sm:$0xf]
    %v335 = vld [vmem:[%s7 + $0xa8] sm:$0xf]
    %v336 = vld [vmem:[%s7 + $0xac] sm:$0xf]
    %v337 = vld [vmem:[%s7 + $0xb0] sm:$0xf]
    %v338 = vld [vmem:[%s7 + $0xb4] sm:$0xf]
    %v339 = vld [vmem:[%s7 + $0xb8] sm:$0xf]
    %v340 = vld [vmem:[%s7 + $0xbc] sm:$0xf]
    %v341 = vld [vmem:[%s7 + $0xc0] sm:$0xf]
    %v342 = vld [vmem:[%s7 + $0xc4] sm:$0xf]
    %v343 = vld [vmem:[%s7 + $0xc8] sm:$0xf]
    %v344 = vld [vmem:[%s7 + $0xcc] sm:$0xf]
    %v345 = vld [vmem:[%s7 + $0xd0] sm:$0xf]
    %v346 = vld [vmem:[%s7 + $0xd4] sm:$0xf]
    %v347 = vld [vmem:[%s7 + $0xd8] sm:$0xf]
    %v348 = vld [vmem:[%s7 + $0xdc] sm:$0xf]
    %v349 = vld [vmem:[%s7 + $0xe0] sm:$0xf]
    %v350 = vld [vmem:[%s7 + $0xe4] sm:$0xf]
    %v351 = vld [vmem:[%s7 + $0xe8] sm:$0xf]
    %v352 = vld [vmem:[%s7 + $0xec] sm:$0xf]
    %v353 = vld [vmem:[%s7 + $0xf0] sm:$0xf]
    %v354 = vld [vmem:[%s7 + $0xf4] sm:$0xf]
    %v355 = vld [vmem:[%s7 + $0xf8] sm:$0xf]
    %v356 = vld [vmem:[%s7 + $0xfc] sm:$0xf]
    %v357 = vld [vmem:[%s8] sm:$0xf]
    %v358 = vld [vmem:[%s8 + $0x4] sm:$0xf]
    %v359 = vld [vmem:[%s8 + $0x8] sm:$0xf]
    %v360 = vld [vmem:[%s8 + $0xc] sm:$0xf]
    %v361 = vld [vmem:[%s8 + $0x10] sm:$0xf]
    %v362 = vld [vmem:[%s8 + $0x14] sm:$0xf]
    %v363 = vld [vmem:[%s8 + $0x18] sm:$0xf]
    %v364 = vld [vmem:[%s8 + $0x1c] sm:$0xf]
    %v365 = vld [vmem:[%s8 + $0x20] sm:$0xf]
    %v366 = vld [vmem:[%s8 + $0x24] sm:$0xf]
    %v367 = vld [vmem:[%s8 + $0x28] sm:$0xf]
    %v368 = vld [vmem:[%s8 + $0x2c] sm:$0xf]
    %v369 = vld [vmem:[%s8 + $0x30] sm:$0xf]
    %v370 = vld [vmem:[%s8 + $0x34] sm:$0xf]
    %v371 = vld [vmem:[%s8 + $0x38] sm:$0xf]
    %v372 = vld [vmem:[%s8 + $0x3c] sm:$0xf]
    %v373 = vld [vmem:[%s8 + $0x40] sm:$0xf]
    %v374 = vld [vmem:[%s8 + $0x44] sm:$0xf]
    %v375 = vld [vmem:[%s8 + $0x48] sm:$0xf]
    %v376 = vld [vmem:[%s8 + $0x4c] sm:$0xf]
    %v377 = vld [vmem:[%s8 + $0x50] sm:$0xf]
    %v378 = vld [vmem:[%s8 + $0x54] sm:$0xf]
    %v379 = vld [vmem:[%s8 + $0x58] sm:$0xf]
    %v380 = vld [vmem:[%s8 + $0x5c] sm:$0xf]
    %v381 = vld [vmem:[%s8 + $0x60] sm:$0xf]
    %v382 = vld [vmem:[%s8 + $0x64] sm:$0xf]
    %v383 = vld [vmem:[%s8 + $0x68] sm:$0xf]
    %v384 = vld [vmem:[%s8 + $0x6c] sm:$0xf]
    %v385 = vld [vmem:[%s8 + $0x70] sm:$0xf]
    %v386 = vld [vmem:[%s8 + $0x74] sm:$0xf]
    %v387 = vld [vmem:[%s8 + $0x78] sm:$0xf]
    %v388 = vld [vmem:[%s8 + $0x7c] sm:$0xf]
    %v389 = vld [vmem:[%s8 + $0x80] sm:$0xf]
    %v390 = vld [vmem:[%s8 + $0x84] sm:$0xf]
    %v391 = vld [vmem:[%s8 + $0x88] sm:$0xf]
    %v392 = vld [vmem:[%s8 + $0x8c] sm:$0xf]
    %v393 = vld [vmem:[%s8 + $0x90] sm:$0xf]
    %v394 = vld [vmem:[%s8 + $0x94] sm:$0xf]
    %v395 = vld [vmem:[%s8 + $0x98] sm:$0xf]
    %v396 = vld [vmem:[%s8 + $0x9c] sm:$0xf]
    %v397 = vld [vmem:[%s8 + $0xa0] sm:$0xf]
    %v398 = vld [vmem:[%s8 + $0xa4] sm:$0xf]
    %v399 = vld [vmem:[%s8 + $0xa8] sm:$0xf]
    %v400 = vld [vmem:[%s8 + $0xac] sm:$0xf]
    %v401 = vld [vmem:[%s8 + $0xb0] sm:$0xf]
    %v402 = vld [vmem:[%s8 + $0xb4] sm:$0xf]
    %v403 = vld [vmem:[%s8 + $0xb8] sm:$0xf]
    %v404 = vld [vmem:[%s8 + $0xbc] sm:$0xf]
    %v405 = vld [vmem:[%s8 + $0xc0] sm:$0xf]
    %v406 = vld [vmem:[%s8 + $0xc4] sm:$0xf]
    %v407 = vld [vmem:[%s8 + $0xc8] sm:$0xf]
    %v408 = vld [vmem:[%s8 + $0xcc] sm:$0xf]
    %v409 = vld [vmem:[%s8 + $0xd0] sm:$0xf]
    %v410 = vld [vmem:[%s8 + $0xd4] sm:$0xf]
    %v411 = vld [vmem:[%s8 + $0xd8] sm:$0xf]
    %v412 = vld [vmem:[%s8 + $0xdc] sm:$0xf]
    %v413 = vld [vmem:[%s8 + $0xe0] sm:$0xf]
    %v414 = vld [vmem:[%s8 + $0xe4] sm:$0xf]
    %v415 = vld [vmem:[%s8 + $0xe8] sm:$0xf]
    %v416 = vld [vmem:[%s8 + $0xec] sm:$0xf]
    %v417 = vld [vmem:[%s8 + $0xf0] sm:$0xf]
    %v418 = vld [vmem:[%s8 + $0xf4] sm:$0xf]
    %v419 = vld [vmem:[%s8 + $0xf8] sm:$0xf]
    %v420 = vld [vmem:[%s8 + $0xfc] sm:$0xf]
    %v421 = vld [vmem:[%s9] sm:$0xf]
    %v422 = vld [vmem:[%s9 + $0x4] sm:$0xf]
    %v423 = vld [vmem:[%s9 + $0x8] sm:$0xf]
    %v424 = vld [vmem:[%s9 + $0xc] sm:$0xf]
    %v425 = vld [vmem:[%s9 + $0x10] sm:$0xf]
    %v426 = vld [vmem:[%s9 + $0x14] sm:$0xf]
    %v427 = vld [vmem:[%s9 + $0x18] sm:$0xf]
    %v428 = vld [vmem:[%s9 + $0x1c] sm:$0xf]
    %v429 = vld [vmem:[%s9 + $0x20] sm:$0xf]
    %v430 = vld [vmem:[%s9 + $0x24] sm:$0xf]
    %v431 = vld [vmem:[%s9 + $0x28] sm:$0xf]
    %v432 = vld [vmem:[%s9 + $0x2c] sm:$0xf]
    %v433 = vld [vmem:[%s9 + $0x30] sm:$0xf]
    %v434 = vld [vmem:[%s9 + $0x34] sm:$0xf]
    %v435 = vld [vmem:[%s9 + $0x38] sm:$0xf]
    %v436 = vld [vmem:[%s9 + $0x3c] sm:$0xf]
    %v437 = vld [vmem:[%s9 + $0x40] sm:$0xf]
    %v438 = vld [vmem:[%s9 + $0x44] sm:$0xf]
    %v439 = vld [vmem:[%s9 + $0x48] sm:$0xf]
    %v440 = vld [vmem:[%s9 + $0x4c] sm:$0xf]
    %v441 = vld [vmem:[%s9 + $0x50] sm:$0xf]
    %v442 = vld [vmem:[%s9 + $0x54] sm:$0xf]
    %v443 = vld [vmem:[%s9 + $0x58] sm:$0xf]
    %v444 = vld [vmem:[%s9 + $0x5c] sm:$0xf]
    %v445 = vld [vmem:[%s9 + $0x60] sm:$0xf]
    %v446 = vld [vmem:[%s9 + $0x64] sm:$0xf]
    %v447 = vld [vmem:[%s9 + $0x68] sm:$0xf]
    %v448 = vld [vmem:[%s9 + $0x6c] sm:$0xf]
    %v449 = vld [vmem:[%s9 + $0x70] sm:$0xf]
    %v450 = vld [vmem:[%s9 + $0x74] sm:$0xf]
    %v451 = vld [vmem:[%s9 + $0x78] sm:$0xf]
    %v452 = vld [vmem:[%s9 + $0x7c] sm:$0xf]
    %v453 = vld [vmem:[%s9 + $0x80] sm:$0xf]
    %v454 = vld [vmem:[%s9 + $0x84] sm:$0xf]
    %v455 = vld [vmem:[%s9 + $0x88] sm:$0xf]
    %v456 = vld [vmem:[%s9 + $0x8c] sm:$0xf]
    %v457 = vld [vmem:[%s9 + $0x90] sm:$0xf]
    %v458 = vld [vmem:[%s9 + $0x94] sm:$0xf]
    %v459 = vld [vmem:[%s9 + $0x98] sm:$0xf]
    %v460 = vld [vmem:[%s9 + $0x9c] sm:$0xf]
    %v461 = vld [vmem:[%s9 + $0xa0] sm:$0xf]
    %v462 = vld [vmem:[%s9 + $0xa4] sm:$0xf]
    %v463 = vld [vmem:[%s9 + $0xa8] sm:$0xf]
    %v464 = vld [vmem:[%s9 + $0xac] sm:$0xf]
    %v465 = vld [vmem:[%s9 + $0xb0] sm:$0xf]
    %v466 = vld [vmem:[%s9 + $0xb4] sm:$0xf]
    %v467 = vld [vmem:[%s9 + $0xb8] sm:$0xf]
    %v468 = vld [vmem:[%s9 + $0xbc] sm:$0xf]
    %v469 = vld [vmem:[%s9 + $0xc0] sm:$0xf]
    %v470 = vld [vmem:[%s9 + $0xc4] sm:$0xf]
    %v471 = vld [vmem:[%s9 + $0xc8] sm:$0xf]
    %v472 = vld [vmem:[%s9 + $0xcc] sm:$0xf]
    %v473 = vld [vmem:[%s9 + $0xd0] sm:$0xf]
    %v474 = vld [vmem:[%s9 + $0xd4] sm:$0xf]
    %v475 = vld [vmem:[%s9 + $0xd8] sm:$0xf]
    %v476 = vld [vmem:[%s9 + $0xdc] sm:$0xf]
    %v477 = vld [vmem:[%s9 + $0xe0] sm:$0xf]
    %v478 = vld [vmem:[%s9 + $0xe4] sm:$0xf]
    %v479 = vld [vmem:[%s9 + $0xe8] sm:$0xf]
    %v480 = vld [vmem:[%s9 + $0xec] sm:$0xf]
    %v481 = vld [vmem:[%s9 + $0xf0] sm:$0xf]
    %v482 = vld [vmem:[%s9 + $0xf4] sm:$0xf]
    %v483 = vld [vmem:[%s9 + $0xf8] sm:$0xf]
    %v484 = vld [vmem:[%s9 + $0xfc] sm:$0xf]
    %v485 = vld [vmem:[%s10] sm:$0xf]
    %v486 = vld [vmem:[%s10 + $0x4] sm:$0xf]
    %v487 = vld [vmem:[%s10 + $0x8] sm:$0xf]
    %v488 = vld [vmem:[%s10 + $0xc] sm:$0xf]
    %v489 = vld [vmem:[%s10 + $0x10] sm:$0xf]
    %v490 = vld [vmem:[%s10 + $0x14] sm:$0xf]
    %v491 = vld [vmem:[%s10 + $0x18] sm:$0xf]
    %v492 = vld [vmem:[%s10 + $0x1c] sm:$0xf]
    %v493 = vld [vmem:[%s10 + $0x20] sm:$0xf]
    %v494 = vld [vmem:[%s10 + $0x24] sm:$0xf]
    %v495 = vld [vmem:[%s10 + $0x28] sm:$0xf]
    %v496 = vld [vmem:[%s10 + $0x2c] sm:$0xf]
    %v497 = vld [vmem:[%s10 + $0x30] sm:$0xf]
    %v498 = vld [vmem:[%s10 + $0x34] sm:$0xf]
    %v499 = vld [vmem:[%s10 + $0x38] sm:$0xf]
    %v500 = vld [vmem:[%s10 + $0x3c] sm:$0xf]
    %v503 = vunpack.c.l.b16 %v291
    %v504 = vunpack.c.l.b16 %v292
    %v505 = vpack.c.b16 %v504, %v503
    %v523 = vunpack.c.l.b16 %v293
    %v524 = vunpack.c.l.b16 %v294
    %v525 = vunpack.c.l.b16 %v295
    %v526 = vunpack.c.l.b16 %v296
    %v527 = vunpack.c.l.b16 %v297
    %v528 = vunpack.c.l.b16 %v298
    %v529 = vunpack.c.l.b16 %v299
    %v530 = vunpack.c.l.b16 %v300
    %v531 = vunpack.c.l.b16 %v301
    %v532 = vunpack.c.l.b16 %v302
    %v533 = vunpack.c.l.b16 %v303
    %v534 = vunpack.c.l.b16 %v304
    %v535 = vunpack.c.l.b16 %v305
    %v536 = vunpack.c.l.b16 %v306
    %v537 = vunpack.c.l.b16 %v307
    %v538 = vunpack.c.l.b16 %v308
    %v539 = vpack.c.b16 %v524, %v523
    %v540 = vpack.c.b16 %v526, %v525
    %v541 = vpack.c.b16 %v528, %v527
    %v542 = vpack.c.b16 %v530, %v529
    %v543 = vpack.c.b16 %v532, %v531
    %v544 = vpack.c.b16 %v534, %v533
    %v545 = vpack.c.b16 %v536, %v535
    %v546 = vpack.c.b16 %v538, %v537
    %555 = vmatpush.bf16.msra.mxu0 %v546
    %556 = vmatpush.bf16.msra.mxu0 %v545
    %557 = vmatpush.bf16.msra.mxu0 %v544
    %558 = vmatpush.bf16.msra.mxu0 %v543
    %559 = vmatpush.bf16.msra.mxu0 %v542
    %560 = vmatpush.bf16.msra.mxu0 %v541
    %561 = vmatpush.bf16.msra.mxu0 %v540
    %562 = vmatpush.bf16.msra.mxu0 %v539
    %563 = vmatmul.bf16.gmra.mxu0 %v505
    %v564 = vpop.f32.mrf.mxu0
    %v565 = vadd.f32 0.0, %v564
    %v566 = vpop.f32.mrf.mxu0
    %v567 = vadd.f32 0.0, %v566
    %568 = vdwg.mxu0
    %v585 = vunpack.c.l.b16 %v309
    %v586 = vunpack.c.l.b16 %v310
    %v587 = vunpack.c.l.b16 %v311
    %v588 = vunpack.c.l.b16 %v312
    %v589 = vunpack.c.l.b16 %v313
    %v590 = vunpack.c.l.b16 %v314
    %v591 = vunpack.c.l.b16 %v315
    %v592 = vunpack.c.l.b16 %v316
    %v593 = vunpack.c.l.b16 %v317
    %v594 = vunpack.c.l.b16 %v318
    %v595 = vunpack.c.l.b16 %v319
    %v596 = vunpack.c.l.b16 %v320
    %v597 = vunpack.c.l.b16 %v321
    %v598 = vunpack.c.l.b16 %v322
    %v599 = vunpack.c.l.b16 %v323
    %v600 = vunpack.c.l.b16 %v324
    %v601 = vpack.c.b16 %v586, %v585
    %v602 = vpack.c.b16 %v588, %v587
    %v603 = vpack.c.b16 %v590, %v589
    %v604 = vpack.c.b16 %v592, %v591
    %v605 = vpack.c.b16 %v594, %v593
    %v606 = vpack.c.b16 %v596, %v595
    %v607 = vpack.c.b16 %v598, %v597
    %v608 = vpack.c.b16 %v600, %v599
    %617 = vmatpush.bf16.msra.mxu0 %v608
    %618 = vmatpush.bf16.msra.mxu0 %v607
    %619 = vmatpush.bf16.msra.mxu0 %v606
    %620 = vmatpush.bf16.msra.mxu0 %v605
    %621 = vmatpush.bf16.msra.mxu0 %v604
    %622 = vmatpush.bf16.msra.mxu0 %v603
    %623 = vmatpush.bf16.msra.mxu0 %v602
    %624 = vmatpush.bf16.msra.mxu0 %v601
    %625 = vmatmul.bf16.gmra.mxu0 %v505
    %v626 = vpop.f32.mrf.mxu0
    %v627 = vadd.f32 0.0, %v626
    %v628 = vpop.f32.mrf.mxu0
    %v629 = vadd.f32 0.0, %v628
    %630 = vdwg.mxu0
    %v647 = vunpack.c.l.b16 %v325
    %v648 = vunpack.c.l.b16 %v326
    %v649 = vunpack.c.l.b16 %v327
    %v650 = vunpack.c.l.b16 %v328
    %v651 = vunpack.c.l.b16 %v329
    %v652 = vunpack.c.l.b16 %v330
    %v653 = vunpack.c.l.b16 %v331
    %v654 = vunpack.c.l.b16 %v332
    %v655 = vunpack.c.l.b16 %v333
    %v656 = vunpack.c.l.b16 %v334
    %v657 = vunpack.c.l.b16 %v335
    %v658 = vunpack.c.l.b16 %v336
    %v659 = vunpack.c.l.b16 %v337
    %v660 = vunpack.c.l.b16 %v338
    %v661 = vunpack.c.l.b16 %v339
    %v662 = vunpack.c.l.b16 %v340
    %v663 = vpack.c.b16 %v648, %v647
    %v664 = vpack.c.b16 %v650, %v649
    %v665 = vpack.c.b16 %v652, %v651
    %v666 = vpack.c.b16 %v654, %v653
    %v667 = vpack.c.b16 %v656, %v655
    %v668 = vpack.c.b16 %v658, %v657
    %v669 = vpack.c.b16 %v660, %v659
    %v670 = vpack.c.b16 %v662, %v661
    %679 = vmatpush.bf16.msra.mxu0 %v670
    %680 = vmatpush.bf16.msra.mxu0 %v669
    %681 = vmatpush.bf16.msra.mxu0 %v668
    %682 = vmatpush.bf16.msra.mxu0 %v667
    %683 = vmatpush.bf16.msra.mxu0 %v666
    %684 = vmatpush.bf16.msra.mxu0 %v665
    %685 = vmatpush.bf16.msra.mxu0 %v664
    %686 = vmatpush.bf16.msra.mxu0 %v663
    %687 = vmatmul.bf16.gmra.mxu0 %v505
    %v688 = vpop.f32.mrf.mxu0
    %v689 = vadd.f32 0.0, %v688
    %v690 = vpop.f32.mrf.mxu0
    %v691 = vadd.f32 0.0, %v690
    %692 = vdwg.mxu0
    %v709 = vunpack.c.l.b16 %v341
    %v710 = vunpack.c.l.b16 %v342
    %v711 = vunpack.c.l.b16 %v343
    %v712 = vunpack.c.l.b16 %v344
    %v713 = vunpack.c.l.b16 %v345
    %v714 = vunpack.c.l.b16 %v346
    %v715 = vunpack.c.l.b16 %v347
    %v716 = vunpack.c.l.b16 %v348
    %v717 = vunpack.c.l.b16 %v349
    %v718 = vunpack.c.l.b16 %v350
    %v719 = vunpack.c.l.b16 %v351
    %v720 = vunpack.c.l.b16 %v352
    %v721 = vunpack.c.l.b16 %v353
    %v722 = vunpack.c.l.b16 %v354
    %v723 = vunpack.c.l.b16 %v355
    %v724 = vunpack.c.l.b16 %v356
    %v725 = vpack.c.b16 %v710, %v709
    %v726 = vpack.c.b16 %v712, %v711
    %v727 = vpack.c.b16 %v714, %v713
    %v728 = vpack.c.b16 %v716, %v715
    %v729 = vpack.c.b16 %v718, %v717
    %v730 = vpack.c.b16 %v720, %v719
    %v731 = vpack.c.b16 %v722, %v721
    %v732 = vpack.c.b16 %v724, %v723
    %741 = vmatpush.bf16.msra.mxu0 %v732
    %742 = vmatpush.bf16.msra.mxu0 %v731
    %743 = vmatpush.bf16.msra.mxu0 %v730
    %744 = vmatpush.bf16.msra.mxu0 %v729
    %745 = vmatpush.bf16.msra.mxu0 %v728
    %746 = vmatpush.bf16.msra.mxu0 %v727
    %747 = vmatpush.bf16.msra.mxu0 %v726
    %748 = vmatpush.bf16.msra.mxu0 %v725
    %749 = vmatmul.bf16.gmra.mxu0 %v505
    %v750 = vpop.f32.mrf.mxu0
    %v751 = vadd.f32 0.0, %v750
    %v752 = vpop.f32.mrf.mxu0
    %v753 = vadd.f32 0.0, %v752
    %754 = vdwg.mxu0
    %v757 = vunpack.c.l.b16 %v235
    %v758 = vunpack.c.l.b16 %v236
    %v759 = vpack.c.b16 %v758, %v757
    %v777 = vunpack.c.l.b16 %v357
    %v778 = vunpack.c.l.b16 %v358
    %v779 = vunpack.c.l.b16 %v359
    %v780 = vunpack.c.l.b16 %v360
    %v781 = vunpack.c.l.b16 %v361
    %v782 = vunpack.c.l.b16 %v362
    %v783 = vunpack.c.l.b16 %v363
    %v784 = vunpack.c.l.b16 %v364
    %v785 = vunpack.c.l.b16 %v365
    %v786 = vunpack.c.l.b16 %v366
    %v787 = vunpack.c.l.b16 %v367
    %v788 = vunpack.c.l.b16 %v368
    %v789 = vunpack.c.l.b16 %v369
    %v790 = vunpack.c.l.b16 %v370
    %v791 = vunpack.c.l.b16 %v371
    %v792 = vunpack.c.l.b16 %v372
    %v793 = vpack.c.b16 %v778, %v777
    %v794 = vpack.c.b16 %v780, %v779
    %v795 = vpack.c.b16 %v782, %v781
    %v796 = vpack.c.b16 %v784, %v783
    %v797 = vpack.c.b16 %v786, %v785
    %v798 = vpack.c.b16 %v788, %v787
    %v799 = vpack.c.b16 %v790, %v789
    %v800 = vpack.c.b16 %v792, %v791
    %809 = vmatpush.bf16.msra.mxu0 %v800
    %810 = vmatpush.bf16.msra.mxu0 %v799
    %811 = vmatpush.bf16.msra.mxu0 %v798
    %812 = vmatpush.bf16.msra.mxu0 %v797
    %813 = vmatpush.bf16.msra.mxu0 %v796
    %814 = vmatpush.bf16.msra.mxu0 %v795
    %815 = vmatpush.bf16.msra.mxu0 %v794
    %816 = vmatpush.bf16.msra.mxu0 %v793
    %817 = vmatmul.bf16.gmra.mxu0 %v759
    %v818 = vpop.f32.mrf.mxu0
    %v819 = vadd.f32 0.0, %v818
    %v820 = vpop.f32.mrf.mxu0
    %v821 = vadd.f32 0.0, %v820
    %822 = vdwg.mxu0
    %v839 = vunpack.c.l.b16 %v373
    %v840 = vunpack.c.l.b16 %v374
    %v841 = vunpack.c.l.b16 %v375
    %v842 = vunpack.c.l.b16 %v376
    %v843 = vunpack.c.l.b16 %v377
    %v844 = vunpack.c.l.b16 %v378
    %v845 = vunpack.c.l.b16 %v379
    %v846 = vunpack.c.l.b16 %v380
    %v847 = vunpack.c.l.b16 %v381
    %v848 = vunpack.c.l.b16 %v382
    %v849 = vunpack.c.l.b16 %v383
    %v850 = vunpack.c.l.b16 %v384
    %v851 = vunpack.c.l.b16 %v385
    %v852 = vunpack.c.l.b16 %v386
    %v853 = vunpack.c.l.b16 %v387
    %v854 = vunpack.c.l.b16 %v388
    %v855 = vpack.c.b16 %v840, %v839
    %v856 = vpack.c.b16 %v842, %v841
    %v857 = vpack.c.b16 %v844, %v843
    %v858 = vpack.c.b16 %v846, %v845
    %v859 = vpack.c.b16 %v848, %v847
    %v860 = vpack.c.b16 %v850, %v849
    %v861 = vpack.c.b16 %v852, %v851
    %v862 = vpack.c.b16 %v854, %v853
    %871 = vmatpush.bf16.msra.mxu0 %v862
    %872 = vmatpush.bf16.msra.mxu0 %v861
    %873 = vmatpush.bf16.msra.mxu0 %v860
    %874 = vmatpush.bf16.msra.mxu0 %v859
    %875 = vmatpush.bf16.msra.mxu0 %v858
    %876 = vmatpush.bf16.msra.mxu0 %v857
    %877 = vmatpush.bf16.msra.mxu0 %v856
    %878 = vmatpush.bf16.msra.mxu0 %v855
    %879 = vmatmul.bf16.gmra.mxu0 %v759
    %v880 = vpop.f32.mrf.mxu0
    %v881 = vadd.f32 0.0, %v880
    %v882 = vpop.f32.mrf.mxu0
    %v883 = vadd.f32 0.0, %v882
    %884 = vdwg.mxu0
    %v901 = vunpack.c.l.b16 %v389
    %v902 = vunpack.c.l.b16 %v390
    %v903 = vunpack.c.l.b16 %v391
    %v904 = vunpack.c.l.b16 %v392
    %v905 = vunpack.c.l.b16 %v393
    %v906 = vunpack.c.l.b16 %v394
    %v907 = vunpack.c.l.b16 %v395
    %v908 = vunpack.c.l.b16 %v396
    %v909 = vunpack.c.l.b16 %v397
    %v910 = vunpack.c.l.b16 %v398
    %v911 = vunpack.c.l.b16 %v399
    %v912 = vunpack.c.l.b16 %v400
    %v913 = vunpack.c.l.b16 %v401
    %v914 = vunpack.c.l.b16 %v402
    %v915 = vunpack.c.l.b16 %v403
    %v916 = vunpack.c.l.b16 %v404
    %v917 = vpack.c.b16 %v902, %v901
    %v918 = vpack.c.b16 %v904, %v903
    %v919 = vpack.c.b16 %v906, %v905
    %v920 = vpack.c.b16 %v908, %v907
    %v921 = vpack.c.b16 %v910, %v909
    %v922 = vpack.c.b16 %v912, %v911
    %v923 = vpack.c.b16 %v914, %v913
    %v924 = vpack.c.b16 %v916, %v915
    %933 = vmatpush.bf16.msra.mxu0 %v924
    %934 = vmatpush.bf16.msra.mxu0 %v923
    %935 = vmatpush.bf16.msra.mxu0 %v922
    %936 = vmatpush.bf16.msra.mxu0 %v921
    %937 = vmatpush.bf16.msra.mxu0 %v920
    %938 = vmatpush.bf16.msra.mxu0 %v919
    %939 = vmatpush.bf16.msra.mxu0 %v918
    %940 = vmatpush.bf16.msra.mxu0 %v917
    %941 = vmatmul.bf16.gmra.mxu0 %v759
    %v942 = vpop.f32.mrf.mxu0
    %v943 = vadd.f32 0.0, %v942
    %v944 = vpop.f32.mrf.mxu0
    %v945 = vadd.f32 0.0, %v944
    %946 = vdwg.mxu0
    %v963 = vunpack.c.l.b16 %v405
    %v964 = vunpack.c.l.b16 %v406
    %v965 = vunpack.c.l.b16 %v407
    %v966 = vunpack.c.l.b16 %v408
    %v967 = vunpack.c.l.b16 %v409
    %v968 = vunpack.c.l.b16 %v410
    %v969 = vunpack.c.l.b16 %v411
    %v970 = vunpack.c.l.b16 %v412
    %v971 = vunpack.c.l.b16 %v413
    %v972 = vunpack.c.l.b16 %v414
    %v973 = vunpack.c.l.b16 %v415
    %v974 = vunpack.c.l.b16 %v416
    %v975 = vunpack.c.l.b16 %v417
    %v976 = vunpack.c.l.b16 %v418
    %v977 = vunpack.c.l.b16 %v419
    %v978 = vunpack.c.l.b16 %v420
    %v979 = vpack.c.b16 %v964, %v963
    %v980 = vpack.c.b16 %v966, %v965
    %v981 = vpack.c.b16 %v968, %v967
    %v982 = vpack.c.b16 %v970, %v969
    %v983 = vpack.c.b16 %v972, %v971
    %v984 = vpack.c.b16 %v974, %v973
    %v985 = vpack.c.b16 %v976, %v975
    %v986 = vpack.c.b16 %v978, %v977
    %995 = vmatpush.bf16.msra.mxu0 %v986
    %996 = vmatpush.bf16.msra.mxu0 %v985
    %997 = vmatpush.bf16.msra.mxu0 %v984
    %998 = vmatpush.bf16.msra.mxu0 %v983
    %999 = vmatpush.bf16.msra.mxu0 %v982
    %1000 = vmatpush.bf16.msra.mxu0 %v981
    %1001 = vmatpush.bf16.msra.mxu0 %v980
    %1002 = vmatpush.bf16.msra.mxu0 %v979
    %1003 = vmatmul.bf16.gmra.mxu0 %v759
    %v1004 = vpop.f32.mrf.mxu0
    %v1005 = vadd.f32 0.0, %v1004
    %v1006 = vpop.f32.mrf.mxu0
    %v1007 = vadd.f32 0.0, %v1006
    %1008 = vdwg.mxu0
    %v1025 = vunpack.c.l.b16 %v421
    %v1026 = vunpack.c.l.b16 %v422
    %v1027 = vunpack.c.l.b16 %v423
    %v1028 = vunpack.c.l.b16 %v424
    %v1029 = vunpack.c.l.b16 %v425
    %v1030 = vunpack.c.l.b16 %v426
    %v1031 = vunpack.c.l.b16 %v427
    %v1032 = vunpack.c.l.b16 %v428
    %v1033 = vunpack.c.l.b16 %v429
    %v1034 = vunpack.c.l.b16 %v430
    %v1035 = vunpack.c.l.b16 %v431
    %v1036 = vunpack.c.l.b16 %v432
    %v1037 = vunpack.c.l.b16 %v433
    %v1038 = vunpack.c.l.b16 %v434
    %v1039 = vunpack.c.l.b16 %v435
    %v1040 = vunpack.c.l.b16 %v436
    %v1041 = vpack.c.b16 %v1026, %v1025
    %v1042 = vpack.c.b16 %v1028, %v1027
    %v1043 = vpack.c.b16 %v1030, %v1029
    %v1044 = vpack.c.b16 %v1032, %v1031
    %v1045 = vpack.c.b16 %v1034, %v1033
    %v1046 = vpack.c.b16 %v1036, %v1035
    %v1047 = vpack.c.b16 %v1038, %v1037
    %v1048 = vpack.c.b16 %v1040, %v1039
    %1057 = vmatpush.bf16.msra.mxu0 %v1048
    %1058 = vmatpush.bf16.msra.mxu0 %v1047
    %1059 = vmatpush.bf16.msra.mxu0 %v1046
    %1060 = vmatpush.bf16.msra.mxu0 %v1045
    %1061 = vmatpush.bf16.msra.mxu0 %v1044
    %1062 = vmatpush.bf16.msra.mxu0 %v1043
    %1063 = vmatpush.bf16.msra.mxu0 %v1042
    %1064 = vmatpush.bf16.msra.mxu0 %v1041
    %1065 = vmatmul.bf16.gmra.mxu0 %v759
    %v1066 = vpop.f32.mrf.mxu0
    %v1067 = vadd.f32 0.0, %v1066
    %v1068 = vpop.f32.mrf.mxu0
    %v1069 = vadd.f32 0.0, %v1068
    %1070 = vdwg.mxu0
    %v1087 = vunpack.c.l.b16 %v437
    %v1088 = vunpack.c.l.b16 %v438
    %v1089 = vunpack.c.l.b16 %v439
    %v1090 = vunpack.c.l.b16 %v440
    %v1091 = vunpack.c.l.b16 %v441
    %v1092 = vunpack.c.l.b16 %v442
    %v1093 = vunpack.c.l.b16 %v443
    %v1094 = vunpack.c.l.b16 %v444
    %v1095 = vunpack.c.l.b16 %v445
    %v1096 = vunpack.c.l.b16 %v446
    %v1097 = vunpack.c.l.b16 %v447
    %v1098 = vunpack.c.l.b16 %v448
    %v1099 = vunpack.c.l.b16 %v449
    %v1100 = vunpack.c.l.b16 %v450
    %v1101 = vunpack.c.l.b16 %v451
    %v1102 = vunpack.c.l.b16 %v452
    %v1103 = vpack.c.b16 %v1088, %v1087
    %v1104 = vpack.c.b16 %v1090, %v1089
    %v1105 = vpack.c.b16 %v1092, %v1091
    %v1106 = vpack.c.b16 %v1094, %v1093
    %v1107 = vpack.c.b16 %v1096, %v1095
    %v1108 = vpack.c.b16 %v1098, %v1097
    %v1109 = vpack.c.b16 %v1100, %v1099
    %v1110 = vpack.c.b16 %v1102, %v1101
    %1119 = vmatpush.bf16.msra.mxu0 %v1110
    %1120 = vmatpush.bf16.msra.mxu0 %v1109
    %1121 = vmatpush.bf16.msra.mxu0 %v1108
    %1122 = vmatpush.bf16.msra.mxu0 %v1107
    %1123 = vmatpush.bf16.msra.mxu0 %v1106
    %1124 = vmatpush.bf16.msra.mxu0 %v1105
    %1125 = vmatpush.bf16.msra.mxu0 %v1104
    %1126 = vmatpush.bf16.msra.mxu0 %v1103
    %1127 = vmatmul.bf16.gmra.mxu0 %v759
    %v1128 = vpop.f32.mrf.mxu0
    %v1129 = vadd.f32 0.0, %v1128
    %v1130 = vpop.f32.mrf.mxu0
    %v1131 = vadd.f32 0.0, %v1130
    %1132 = vdwg.mxu0
    %v1149 = vunpack.c.l.b16 %v453
    %v1150 = vunpack.c.l.b16 %v454
    %v1151 = vunpack.c.l.b16 %v455
    %v1152 = vunpack.c.l.b16 %v456
    %v1153 = vunpack.c.l.b16 %v457
    %v1154 = vunpack.c.l.b16 %v458
    %v1155 = vunpack.c.l.b16 %v459
    %v1156 = vunpack.c.l.b16 %v460
    %v1157 = vunpack.c.l.b16 %v461
    %v1158 = vunpack.c.l.b16 %v462
    %v1159 = vunpack.c.l.b16 %v463
    %v1160 = vunpack.c.l.b16 %v464
    %v1161 = vunpack.c.l.b16 %v465
    %v1162 = vunpack.c.l.b16 %v466
    %v1163 = vunpack.c.l.b16 %v467
    %v1164 = vunpack.c.l.b16 %v468
    %v1165 = vpack.c.b16 %v1150, %v1149
    %v1166 = vpack.c.b16 %v1152, %v1151
    %v1167 = vpack.c.b16 %v1154, %v1153
    %v1168 = vpack.c.b16 %v1156, %v1155
    %v1169 = vpack.c.b16 %v1158, %v1157
    %v1170 = vpack.c.b16 %v1160, %v1159
    %v1171 = vpack.c.b16 %v1162, %v1161
    %v1172 = vpack.c.b16 %v1164, %v1163
    %1181 = vmatpush.bf16.msra.mxu0 %v1172
    %1182 = vmatpush.bf16.msra.mxu0 %v1171
    %1183 = vmatpush.bf16.msra.mxu0 %v1170
    %1184 = vmatpush.bf16.msra.mxu0 %v1169
    %1185 = vmatpush.bf16.msra.mxu0 %v1168
    %1186 = vmatpush.bf16.msra.mxu0 %v1167
    %1187 = vmatpush.bf16.msra.mxu0 %v1166
    %1188 = vmatpush.bf16.msra.mxu0 %v1165
    %1189 = vmatmul.bf16.gmra.mxu0 %v759
    %v1190 = vpop.f32.mrf.mxu0
    %v1191 = vadd.f32 0.0, %v1190
    %v1192 = vpop.f32.mrf.mxu0
    %v1193 = vadd.f32 0.0, %v1192
    %1194 = vdwg.mxu0
    %v1211 = vunpack.c.l.b16 %v469
    %v1212 = vunpack.c.l.b16 %v470
    %v1213 = vunpack.c.l.b16 %v471
    %v1214 = vunpack.c.l.b16 %v472
    %v1215 = vunpack.c.l.b16 %v473
    %v1216 = vunpack.c.l.b16 %v474
    %v1217 = vunpack.c.l.b16 %v475
    %v1218 = vunpack.c.l.b16 %v476
    %v1219 = vunpack.c.l.b16 %v477
    %v1220 = vunpack.c.l.b16 %v478
    %v1221 = vunpack.c.l.b16 %v479
    %v1222 = vunpack.c.l.b16 %v480
    %v1223 = vunpack.c.l.b16 %v481
    %v1224 = vunpack.c.l.b16 %v482
    %v1225 = vunpack.c.l.b16 %v483
    %v1226 = vunpack.c.l.b16 %v484
    %v1227 = vpack.c.b16 %v1212, %v1211
    %v1228 = vpack.c.b16 %v1214, %v1213
    %v1229 = vpack.c.b16 %v1216, %v1215
    %v1230 = vpack.c.b16 %v1218, %v1217
    %v1231 = vpack.c.b16 %v1220, %v1219
    %v1232 = vpack.c.b16 %v1222, %v1221
    %v1233 = vpack.c.b16 %v1224, %v1223
    %v1234 = vpack.c.b16 %v1226, %v1225
    %1243 = vmatpush.bf16.msra.mxu0 %v1234
    %1244 = vmatpush.bf16.msra.mxu0 %v1233
    %1245 = vmatpush.bf16.msra.mxu0 %v1232
    %1246 = vmatpush.bf16.msra.mxu0 %v1231
    %1247 = vmatpush.bf16.msra.mxu0 %v1230
    %1248 = vmatpush.bf16.msra.mxu0 %v1229
    %1249 = vmatpush.bf16.msra.mxu0 %v1228
    %1250 = vmatpush.bf16.msra.mxu0 %v1227
    %1251 = vmatmul.bf16.gmra.mxu0 %v759
    %v1252 = vpop.f32.mrf.mxu0
    %v1253 = vadd.f32 0.0, %v1252
    %v1254 = vpop.f32.mrf.mxu0
    %v1255 = vadd.f32 0.0, %v1254
    %1256 = vdwg.mxu0
    %vm1257 = vcmask 261120
    %v1259 = vsel %vm1257, %v565, 0
    %v1262 = vsel %vm1257, %v567, 0
    %v1265 = vsel %vm1257, %v819, 0
    %1267 = vmatpush.xpose.msra.mxu0 0.0
    %1268 = vmatpush.xpose.msra.mxu0 0.0
    %1269 = vmatpush.xpose.msra.mxu0 0.0
    %1270 = vmatpush.xpose.msra.mxu0 0.0
    %1271 = vmatpush.xpose.msra.mxu0 0.0
    %1272 = vmatpush.xpose.msra.mxu0 0.0
    %1273 = vmatpush.xpose.msra.mxu0 0.0
    %1274 = vmatpush.xpose.msra.mxu0 0.0
    %1275 = vmatpush.xpose.msra.mxu0 0.0
    %1276 = vmatpush.xpose.msra.mxu0 0.0
    %1277 = vmatpush.xpose.msra.mxu0 0.0
    %1278 = vmatpush.xpose.msra.mxu0 0.0
    %1279 = vmatpush.xpose.msra.mxu0 0.0
    %1280 = vmatpush.xpose.msra.mxu0 0.0
    %1281 = vmatpush.xpose.msra.mxu0 0.0
    %1282 = vmatpush.xpose.msra.mxu0 %v1265
    %1283 = vmatmul.f32.gmra.mxu0 %v1259
    %v1284 = vpop.f32.mrf.mxu0
    %v1285 = vadd.f32 0.0, %v1284
    %1286 = vmatmul.f32.gmra.mxu0 %v1262
    %v1287 = vpop.f32.mrf.mxu0
    %v1288 = vadd.f32 0.0, %v1287
    %1289 = vdwg.mxu0
    %v1291 = vsel %vm1257, %v627, 0
    %v1294 = vsel %vm1257, %v629, 0
    %v1297 = vsel %vm1257, %v881, 0
    %1299 = vmatpush.xpose.msra.mxu0 0.0
    %1300 = vmatpush.xpose.msra.mxu0 0.0
    %1301 = vmatpush.xpose.msra.mxu0 0.0
    %1302 = vmatpush.xpose.msra.mxu0 0.0
    %1303 = vmatpush.xpose.msra.mxu0 0.0
    %1304 = vmatpush.xpose.msra.mxu0 0.0
    %1305 = vmatpush.xpose.msra.mxu0 0.0
    %1306 = vmatpush.xpose.msra.mxu0 0.0
    %1307 = vmatpush.xpose.msra.mxu0 0.0
    %1308 = vmatpush.xpose.msra.mxu0 0.0
    %1309 = vmatpush.xpose.msra.mxu0 0.0
    %1310 = vmatpush.xpose.msra.mxu0 0.0
    %1311 = vmatpush.xpose.msra.mxu0 0.0
    %1312 = vmatpush.xpose.msra.mxu0 0.0
    %1313 = vmatpush.xpose.msra.mxu0 0.0
    %1314 = vmatpush.xpose.msra.mxu0 %v1297
    %1315 = vmatmul.f32.gmra.mxu0 %v1291
    %v1316 = vpop.f32.mrf.mxu0
    %v1317 = vadd.f32 0.0, %v1316
    %1318 = vmatmul.f32.gmra.mxu0 %v1294
    %v1319 = vpop.f32.mrf.mxu0
    %v1320 = vadd.f32 0.0, %v1319
    %1321 = vdwg.mxu0
    %v1323 = vsel %vm1257, %v689, 0
    %v1326 = vsel %vm1257, %v691, 0
    %v1329 = vsel %vm1257, %v943, 0
    %1331 = vmatpush.xpose.msra.mxu0 0.0
    %1332 = vmatpush.xpose.msra.mxu0 0.0
    %1333 = vmatpush.xpose.msra.mxu0 0.0
    %1334 = vmatpush.xpose.msra.mxu0 0.0
    %1335 = vmatpush.xpose.msra.mxu0 0.0
    %1336 = vmatpush.xpose.msra.mxu0 0.0
    %1337 = vmatpush.xpose.msra.mxu0 0.0
    %1338 = vmatpush.xpose.msra.mxu0 0.0
    %1339 = vmatpush.xpose.msra.mxu0 0.0
    %1340 = vmatpush.xpose.msra.mxu0 0.0
    %1341 = vmatpush.xpose.msra.mxu0 0.0
    %1342 = vmatpush.xpose.msra.mxu0 0.0
    %1343 = vmatpush.xpose.msra.mxu0 0.0
    %1344 = vmatpush.xpose.msra.mxu0 0.0
    %1345 = vmatpush.xpose.msra.mxu0 0.0
    %1346 = vmatpush.xpose.msra.mxu0 %v1329
    %1347 = vmatmul.f32.gmra.mxu0 %v1323
    %v1348 = vpop.f32.mrf.mxu0
    %v1349 = vadd.f32 0.0, %v1348
    %1350 = vmatmul.f32.gmra.mxu0 %v1326
    %v1351 = vpop.f32.mrf.mxu0
    %v1352 = vadd.f32 0.0, %v1351
    %1353 = vdwg.mxu0
    %v1355 = vsel %vm1257, %v751, 0
    %v1358 = vsel %vm1257, %v753, 0
    %v1361 = vsel %vm1257, %v1005, 0
    %1363 = vmatpush.xpose.msra.mxu0 0.0
    %1364 = vmatpush.xpose.msra.mxu0 0.0
    %1365 = vmatpush.xpose.msra.mxu0 0.0
    %1366 = vmatpush.xpose.msra.mxu0 0.0
    %1367 = vmatpush.xpose.msra.mxu0 0.0
    %1368 = vmatpush.xpose.msra.mxu0 0.0
    %1369 = vmatpush.xpose.msra.mxu0 0.0
    %1370 = vmatpush.xpose.msra.mxu0 0.0
    %1371 = vmatpush.xpose.msra.mxu0 0.0
    %1372 = vmatpush.xpose.msra.mxu0 0.0
    %1373 = vmatpush.xpose.msra.mxu0 0.0
    %1374 = vmatpush.xpose.msra.mxu0 0.0
    %1375 = vmatpush.xpose.msra.mxu0 0.0
    %1376 = vmatpush.xpose.msra.mxu0 0.0
    %1377 = vmatpush.xpose.msra.mxu0 0.0
    %1378 = vmatpush.xpose.msra.mxu0 %v1361
    %1379 = vmatmul.f32.gmra.mxu0 %v1355
    %v1380 = vpop.f32.mrf.mxu0
    %v1381 = vadd.f32 0.0, %v1380
    %1382 = vmatmul.f32.gmra.mxu0 %v1358
    %v1383 = vpop.f32.mrf.mxu0
    %v1384 = vadd.f32 0.0, %v1383
    %1385 = vdwg.mxu0
    %v1386 = vmul.f32 %v1285, 0.17677669
    %v1387 = vmul.f32 %v1288, 0.17677669
    %v1388 = vmul.f32 %v1317, 0.17677669
    %v1389 = vmul.f32 %v1320, 0.17677669
    %v1390 = vmul.f32 %v1349, 0.17677669
    %v1391 = vmul.f32 %v1352, 0.17677669
    %v1392 = vmul.f32 %v1381, 0.17677669
    %v1393 = vmul.f32 %v1384, 0.17677669
    %vm1394 = vcmask 64512
    %v1395 = vsel %vm1394, %v1386, -inf
    %1396 = vmax.xlane.f32.xlu0 %v1395
    %v1397 = vpop.xlane.xlu0 %1396
    %v1398 = vsel %vm1394, %v1387, -inf
    %1399 = vmax.xlane.f32.xlu0 %v1398
    %v1400 = vpop.xlane.xlu0 %1399
    %v1401 = vsel %vm1394, %v1388, -inf
    %1402 = vmax.xlane.f32.xlu0 %v1401
    %v1403 = vpop.xlane.xlu0 %1402
    %v1404 = vsel %vm1394, %v1389, -inf
    %1405 = vmax.xlane.f32.xlu0 %v1404
    %v1406 = vpop.xlane.xlu0 %1405
    %v1407 = vsel %vm1394, %v1390, -inf
    %1408 = vmax.xlane.f32.xlu0 %v1407
    %v1409 = vpop.xlane.xlu0 %1408
    %v1410 = vsel %vm1394, %v1391, -inf
    %1411 = vmax.xlane.f32.xlu0 %v1410
    %v1412 = vpop.xlane.xlu0 %1411
    %v1413 = vsel %vm1394, %v1392, -inf
    %1414 = vmax.xlane.f32.xlu0 %v1413
    %v1415 = vpop.xlane.xlu0 %1414
    %v1416 = vsel %vm1394, %v1393, -inf
    %1417 = vmax.xlane.f32.xlu0 %v1416
    %v1418 = vpop.xlane.xlu0 %1417
    %v1419 = vsub.f32 %v1386, %v1397
    %v1420 = vsub.f32 %v1387, %v1400
    %v1421 = vsub.f32 %v1388, %v1403
    %v1422 = vsub.f32 %v1389, %v1406
    %v1423 = vsub.f32 %v1390, %v1409
    %v1424 = vsub.f32 %v1391, %v1412
    %v1425 = vsub.f32 %v1392, %v1415
    %v1426 = vsub.f32 %v1393, %v1418
    %v1427 = vmul.f32 %v1419, 1.442695
    %v1428 = vpow.pop %v1427
    %v1429 = vmul.f32 %v1420, 1.442695
    %v1430 = vpow.pop %v1429
    %v1431 = vmul.f32 %v1421, 1.442695
    %v1432 = vpow.pop %v1431
    %v1433 = vmul.f32 %v1422, 1.442695
    %v1434 = vpow.pop %v1433
    %v1435 = vmul.f32 %v1423, 1.442695
    %v1436 = vpow.pop %v1435
    %v1437 = vmul.f32 %v1424, 1.442695
    %v1438 = vpow.pop %v1437
    %v1439 = vmul.f32 %v1425, 1.442695
    %v1440 = vpow.pop %v1439
    %v1441 = vmul.f32 %v1426, 1.442695
    %v1442 = vpow.pop %v1441
    %v1443 = vsel %vm1394, %v1428, 0.0
    %1444 = vadd.xlane.f32.xlu0 %v1443
    %v1445 = vpop.xlane.xlu0 %1444
    %v1446 = vsel %vm1394, %v1430, 0.0
    %1447 = vadd.xlane.f32.xlu0 %v1446
    %v1448 = vpop.xlane.xlu0 %1447
    %v1449 = vsel %vm1394, %v1432, 0.0
    %1450 = vadd.xlane.f32.xlu0 %v1449
    %v1451 = vpop.xlane.xlu0 %1450
    %v1452 = vsel %vm1394, %v1434, 0.0
    %1453 = vadd.xlane.f32.xlu0 %v1452
    %v1454 = vpop.xlane.xlu0 %1453
    %v1455 = vsel %vm1394, %v1436, 0.0
    %1456 = vadd.xlane.f32.xlu0 %v1455
    %v1457 = vpop.xlane.xlu0 %1456
    %v1458 = vsel %vm1394, %v1438, 0.0
    %1459 = vadd.xlane.f32.xlu0 %v1458
    %v1460 = vpop.xlane.xlu0 %1459
    %v1461 = vsel %vm1394, %v1440, 0.0
    %1462 = vadd.xlane.f32.xlu0 %v1461
    %v1463 = vpop.xlane.xlu0 %1462
    %v1464 = vsel %vm1394, %v1442, 0.0
    %1465 = vadd.xlane.f32.xlu0 %v1464
    %v1466 = vpop.xlane.xlu0 %1465
    %v1467 = vrcp.pop %v1445
    %v1468 = vrcp.pop %v1448
    %v1469 = vrcp.pop %v1451
    %v1470 = vrcp.pop %v1454
    %v1471 = vrcp.pop %v1457
    %v1472 = vrcp.pop %v1460
    %v1473 = vrcp.pop %v1463
    %v1474 = vrcp.pop %v1466
    %v1475 = vmul.f32 %v1428, %v1467
    %v1476 = vmul.f32 %v1430, %v1468
    %v1477 = vmul.f32 %v1432, %v1469
    %v1478 = vmul.f32 %v1434, %v1470
    %v1479 = vmul.f32 %v1436, %v1471
    %v1480 = vmul.f32 %v1438, %v1472
    %v1481 = vmul.f32 %v1440, %v1473
    %v1482 = vmul.f32 %v1442, %v1474
    %v1483 = vpack.c.bf16 %v1475, %v1475
    %v1484 = vpack.c.bf16 %v1476, %v1476
    %v1485 = vpack.c.bf16 %v1477, %v1477
    %v1486 = vpack.c.bf16 %v1478, %v1478
    %v1487 = vpack.c.bf16 %v1479, %v1479
    %v1488 = vpack.c.bf16 %v1480, %v1480
    %v1489 = vpack.c.bf16 %v1481, %v1481
    %v1490 = vpack.c.bf16 %v1482, %v1482
    %v1491 = vpack.c.bf16 %v1067, %v1067
    %v1492 = vpack.c.bf16 %v1129, %v1129
    %v1493 = vpack.c.bf16 %v1191, %v1191
    %v1494 = vpack.c.bf16 %v1253, %v1253
    %v1497 = vunpack.c.l.b16 %v1483
    %v1498 = vunpack.c.l.b16 %v1484
    %v1499 = vpack.c.b16 %v1498, %v1497
    %v1501 = vsel %vm1394, %v1499, 0
    %vm1503 = vcmask 1043456
    %v1505 = vsel %vm1503, %v1491, 0
    %1507 = vmatpush.bf16.msra.mxu0 0
    %1508 = vmatpush.bf16.msra.mxu0 0
    %1509 = vmatpush.bf16.msra.mxu0 0
    %1510 = vmatpush.bf16.msra.mxu0 0
    %1511 = vmatpush.bf16.msra.mxu0 0
    %1512 = vmatpush.bf16.msra.mxu0 0
    %1513 = vmatpush.bf16.msra.mxu0 0
    %1514 = vmatpush.bf16.msra.mxu0 %v1505
    %1515 = vmatmul.bf16.gmra.mxu0 %v1501
    %v1516 = vpop.f32.mrf.mxu0
    %v1517 = vadd.f32 0.0, %v1516
    %v1518 = vpop.f32.mrf.mxu0
    %v1519 = vadd.f32 0.0, %v1518
    %1520 = vdwg.mxu0
    %v1523 = vunpack.c.l.b16 %v1485
    %v1524 = vunpack.c.l.b16 %v1486
    %v1525 = vpack.c.b16 %v1524, %v1523
    %v1527 = vsel %vm1394, %v1525, 0
    %v1530 = vsel %vm1503, %v1492, 0
    %1532 = vmatpush.bf16.msra.mxu0 0
    %1533 = vmatpush.bf16.msra.mxu0 0
    %1534 = vmatpush.bf16.msra.mxu0 0
    %1535 = vmatpush.bf16.msra.mxu0 0
    %1536 = vmatpush.bf16.msra.mxu0 0
    %1537 = vmatpush.bf16.msra.mxu0 0
    %1538 = vmatpush.bf16.msra.mxu0 0
    %1539 = vmatpush.bf16.msra.mxu0 %v1530
    %1540 = vmatmul.bf16.gmra.mxu0 %v1527
    %v1541 = vpop.f32.mrf.mxu0
    %v1542 = vadd.f32 0.0, %v1541
    %v1543 = vpop.f32.mrf.mxu0
    %v1544 = vadd.f32 0.0, %v1543
    %1545 = vdwg.mxu0
    %v1548 = vunpack.c.l.b16 %v1487
    %v1549 = vunpack.c.l.b16 %v1488
    %v1550 = vpack.c.b16 %v1549, %v1548
    %v1552 = vsel %vm1394, %v1550, 0
    %v1555 = vsel %vm1503, %v1493, 0
    %1557 = vmatpush.bf16.msra.mxu0 0
    %1558 = vmatpush.bf16.msra.mxu0 0
    %1559 = vmatpush.bf16.msra.mxu0 0
    %1560 = vmatpush.bf16.msra.mxu0 0
    %1561 = vmatpush.bf16.msra.mxu0 0
    %1562 = vmatpush.bf16.msra.mxu0 0
    %1563 = vmatpush.bf16.msra.mxu0 0
    %1564 = vmatpush.bf16.msra.mxu0 %v1555
    %1565 = vmatmul.bf16.gmra.mxu0 %v1552
    %v1566 = vpop.f32.mrf.mxu0
    %v1567 = vadd.f32 0.0, %v1566
    %v1568 = vpop.f32.mrf.mxu0
    %v1569 = vadd.f32 0.0, %v1568
    %1570 = vdwg.mxu0
    %v1573 = vunpack.c.l.b16 %v1489
    %v1574 = vunpack.c.l.b16 %v1490
    %v1575 = vpack.c.b16 %v1574, %v1573
    %v1577 = vsel %vm1394, %v1575, 0
    %v1580 = vsel %vm1503, %v1494, 0
    %1582 = vmatpush.bf16.msra.mxu0 0
    %1583 = vmatpush.bf16.msra.mxu0 0
    %1584 = vmatpush.bf16.msra.mxu0 0
    %1585 = vmatpush.bf16.msra.mxu0 0
    %1586 = vmatpush.bf16.msra.mxu0 0
    %1587 = vmatpush.bf16.msra.mxu0 0
    %1588 = vmatpush.bf16.msra.mxu0 0
    %1589 = vmatpush.bf16.msra.mxu0 %v1580
    %1590 = vmatmul.bf16.gmra.mxu0 %v1577
    %v1591 = vpop.f32.mrf.mxu0
    %v1592 = vadd.f32 0.0, %v1591
    %v1593 = vpop.f32.mrf.mxu0
    %v1594 = vadd.f32 0.0, %v1593
    %1595 = vdwg.mxu0
    %v1596 = vpack.c.bf16 %v1517, %v1517
    %v1597 = vpack.c.bf16 %v1519, %v1519
    %v1598 = vpack.c.bf16 %v1542, %v1542
    %v1599 = vpack.c.bf16 %v1544, %v1544
    %v1600 = vpack.c.bf16 %v1567, %v1567
    %v1601 = vpack.c.bf16 %v1569, %v1569
    %v1602 = vpack.c.bf16 %v1592, %v1592
    %v1603 = vpack.c.bf16 %v1594, %v1594
    %v1606 = vunpack.c.l.b16 %v1596
    %v1607 = vunpack.c.l.b16 %v1597
    %v1608 = vpack.c.b16 %v1607, %v1606
    %v1613 = vunpack.c.l.b16 %v485
    %v1614 = vunpack.c.l.b16 %v486
    %v1615 = vunpack.c.l.b16 %v487
    %v1616 = vunpack.c.l.b16 %v488
    %v1617 = vpack.c.b16 %v1614, %v1613
    %v1618 = vpack.c.b16 %v1616, %v1615
    %v1622 = vsel %vm1257, %v1608, 0
    %1624 = vmatpush.bf16.msra.mxu0 0
    %1625 = vmatpush.bf16.msra.mxu0 0
    %1626 = vmatpush.bf16.msra.mxu0 0
    %1627 = vmatpush.bf16.msra.mxu0 0
    %1628 = vmatpush.bf16.msra.mxu0 0
    %1629 = vmatpush.bf16.msra.mxu0 0
    %1630 = vmatpush.bf16.msra.mxu0 %v1618
    %1631 = vmatpush.bf16.msra.mxu0 %v1617
    %1632 = vmatmul.bf16.gmra.mxu0 %v1622
    %v1633 = vpop.f32.mrf.mxu0
    %v1634 = vadd.f32 0.0, %v1633
    %v1635 = vpop.f32.mrf.mxu0
    %v1636 = vadd.f32 0.0, %v1635
    %1637 = vdwg.mxu0
    %v1640 = vunpack.c.l.b16 %v1598
    %v1641 = vunpack.c.l.b16 %v1599
    %v1642 = vpack.c.b16 %v1641, %v1640
    %v1647 = vunpack.c.l.b16 %v489
    %v1648 = vunpack.c.l.b16 %v490
    %v1649 = vunpack.c.l.b16 %v491
    %v1650 = vunpack.c.l.b16 %v492
    %v1651 = vpack.c.b16 %v1648, %v1647
    %v1652 = vpack.c.b16 %v1650, %v1649
    %v1656 = vsel %vm1257, %v1642, 0
    %1658 = vmatpush.bf16.msra.mxu0 0
    %1659 = vmatpush.bf16.msra.mxu0 0
    %1660 = vmatpush.bf16.msra.mxu0 0
    %1661 = vmatpush.bf16.msra.mxu0 0
    %1662 = vmatpush.bf16.msra.mxu0 0
    %1663 = vmatpush.bf16.msra.mxu0 0
    %1664 = vmatpush.bf16.msra.mxu0 %v1652
    %1665 = vmatpush.bf16.msra.mxu0 %v1651
    %1666 = vmatmul.bf16.gmra.mxu0 %v1656
    %v1667 = vpop.f32.mrf.mxu0
    %v1668 = vadd.f32 0.0, %v1667
    %v1669 = vpop.f32.mrf.mxu0
    %v1670 = vadd.f32 0.0, %v1669
    %1671 = vdwg.mxu0
    %v1674 = vunpack.c.l.b16 %v1600
    %v1675 = vunpack.c.l.b16 %v1601
    %v1676 = vpack.c.b16 %v1675, %v1674
    %v1681 = vunpack.c.l.b16 %v493
    %v1682 = vunpack.c.l.b16 %v494
    %v1683 = vunpack.c.l.b16 %v495
    %v1684 = vunpack.c.l.b16 %v496
    %v1685 = vpack.c.b16 %v1682, %v1681
    %v1686 = vpack.c.b16 %v1684, %v1683
    %v1690 = vsel %vm1257, %v1676, 0
    %1692 = vmatpush.bf16.msra.mxu0 0
    %1693 = vmatpush.bf16.msra.mxu0 0
    %1694 = vmatpush.bf16.msra.mxu0 0
    %1695 = vmatpush.bf16.msra.mxu0 0
    %1696 = vmatpush.bf16.msra.mxu0 0
    %1697 = vmatpush.bf16.msra.mxu0 0
    %1698 = vmatpush.bf16.msra.mxu0 %v1686
    %1699 = vmatpush.bf16.msra.mxu0 %v1685
    %1700 = vmatmul.bf16.gmra.mxu0 %v1690
    %v1701 = vpop.f32.mrf.mxu0
    %v1702 = vadd.f32 0.0, %v1701
    %v1703 = vpop.f32.mrf.mxu0
    %v1704 = vadd.f32 0.0, %v1703
    %1705 = vdwg.mxu0
    %v1708 = vunpack.c.l.b16 %v1602
    %v1709 = vunpack.c.l.b16 %v1603
    %v1710 = vpack.c.b16 %v1709, %v1708
    %v1715 = vunpack.c.l.b16 %v497
    %v1716 = vunpack.c.l.b16 %v498
    %v1717 = vunpack.c.l.b16 %v499
    %v1718 = vunpack.c.l.b16 %v500
    %v1719 = vpack.c.b16 %v1716, %v1715
    %v1720 = vpack.c.b16 %v1718, %v1717
    %v1724 = vsel %vm1257, %v1710, 0
    %1726 = vmatpush.bf16.msra.mxu0 0
    %1727 = vmatpush.bf16.msra.mxu0 0
    %1728 = vmatpush.bf16.msra.mxu0 0
    %1729 = vmatpush.bf16.msra.mxu0 0
    %1730 = vmatpush.bf16.msra.mxu0 0
    %1731 = vmatpush.bf16.msra.mxu0 0
    %1732 = vmatpush.bf16.msra.mxu0 %v1720
    %1733 = vmatpush.bf16.msra.mxu0 %v1719
    %1734 = vmatmul.bf16.gmra.mxu0 %v1724
    %v1735 = vpop.f32.mrf.mxu0
    %v1736 = vadd.f32 0.0, %v1735
    %v1737 = vpop.f32.mrf.mxu0
    %v1738 = vadd.f32 0.0, %v1737
    %1739 = vdwg.mxu0
    %v1740 = vadd.f32 %v1634, %v1668
    %v1741 = vadd.f32 %v1740, %v1702
    %v1742 = vadd.f32 %v1741, %v1736
    %v1743 = vadd.f32 %v1636, %v1670
    %v1744 = vadd.f32 %v1743, %v1704
    %v1745 = vadd.f32 %v1744, %v1738
    %v1746 = vadd.f32 %v1742, %v237
    %v1747 = vadd.f32 %v1745, %v238
    %v1749 = vsel %vm1257, %v821, 0
    %1751 = vmatpush.xpose.msra.mxu0 0.0
    %1752 = vmatpush.xpose.msra.mxu0 0.0
    %1753 = vmatpush.xpose.msra.mxu0 0.0
    %1754 = vmatpush.xpose.msra.mxu0 0.0
    %1755 = vmatpush.xpose.msra.mxu0 0.0
    %1756 = vmatpush.xpose.msra.mxu0 0.0
    %1757 = vmatpush.xpose.msra.mxu0 0.0
    %1758 = vmatpush.xpose.msra.mxu0 0.0
    %1759 = vmatpush.xpose.msra.mxu0 0.0
    %1760 = vmatpush.xpose.msra.mxu0 0.0
    %1761 = vmatpush.xpose.msra.mxu0 0.0
    %1762 = vmatpush.xpose.msra.mxu0 0.0
    %1763 = vmatpush.xpose.msra.mxu0 0.0
    %1764 = vmatpush.xpose.msra.mxu0 0.0
    %1765 = vmatpush.xpose.msra.mxu0 0.0
    %1766 = vmatpush.xpose.msra.mxu0 %v1749
    %1767 = vmatmul.f32.gmra.mxu0 %v1259
    %v1768 = vpop.f32.mrf.mxu0
    %v1769 = vadd.f32 0.0, %v1768
    %1770 = vmatmul.f32.gmra.mxu0 %v1262
    %v1771 = vpop.f32.mrf.mxu0
    %v1772 = vadd.f32 0.0, %v1771
    %1773 = vdwg.mxu0
    %v1775 = vsel %vm1257, %v883, 0
    %1777 = vmatpush.xpose.msra.mxu0 0.0
    %1778 = vmatpush.xpose.msra.mxu0 0.0
    %1779 = vmatpush.xpose.msra.mxu0 0.0
    %1780 = vmatpush.xpose.msra.mxu0 0.0
    %1781 = vmatpush.xpose.msra.mxu0 0.0
    %1782 = vmatpush.xpose.msra.mxu0 0.0
    %1783 = vmatpush.xpose.msra.mxu0 0.0
    %1784 = vmatpush.xpose.msra.mxu0 0.0
    %1785 = vmatpush.xpose.msra.mxu0 0.0
    %1786 = vmatpush.xpose.msra.mxu0 0.0
    %1787 = vmatpush.xpose.msra.mxu0 0.0
    %1788 = vmatpush.xpose.msra.mxu0 0.0
    %1789 = vmatpush.xpose.msra.mxu0 0.0
    %1790 = vmatpush.xpose.msra.mxu0 0.0
    %1791 = vmatpush.xpose.msra.mxu0 0.0
    %1792 = vmatpush.xpose.msra.mxu0 %v1775
    %1793 = vmatmul.f32.gmra.mxu0 %v1291
    %v1794 = vpop.f32.mrf.mxu0
    %v1795 = vadd.f32 0.0, %v1794
    %1796 = vmatmul.f32.gmra.mxu0 %v1294
    %v1797 = vpop.f32.mrf.mxu0
    %v1798 = vadd.f32 0.0, %v1797
    %1799 = vdwg.mxu0
    %v1801 = vsel %vm1257, %v945, 0
    %1803 = vmatpush.xpose.msra.mxu0 0.0
    %1804 = vmatpush.xpose.msra.mxu0 0.0
    %1805 = vmatpush.xpose.msra.mxu0 0.0
    %1806 = vmatpush.xpose.msra.mxu0 0.0
    %1807 = vmatpush.xpose.msra.mxu0 0.0
    %1808 = vmatpush.xpose.msra.mxu0 0.0
    %1809 = vmatpush.xpose.msra.mxu0 0.0
    %1810 = vmatpush.xpose.msra.mxu0 0.0
    %1811 = vmatpush.xpose.msra.mxu0 0.0
    %1812 = vmatpush.xpose.msra.mxu0 0.0
    %1813 = vmatpush.xpose.msra.mxu0 0.0
    %1814 = vmatpush.xpose.msra.mxu0 0.0
    %1815 = vmatpush.xpose.msra.mxu0 0.0
    %1816 = vmatpush.xpose.msra.mxu0 0.0
    %1817 = vmatpush.xpose.msra.mxu0 0.0
    %1818 = vmatpush.xpose.msra.mxu0 %v1801
    %1819 = vmatmul.f32.gmra.mxu0 %v1323
    %v1820 = vpop.f32.mrf.mxu0
    %v1821 = vadd.f32 0.0, %v1820
    %1822 = vmatmul.f32.gmra.mxu0 %v1326
    %v1823 = vpop.f32.mrf.mxu0
    %v1824 = vadd.f32 0.0, %v1823
    %1825 = vdwg.mxu0
    %v1827 = vsel %vm1257, %v1007, 0
    %1829 = vmatpush.xpose.msra.mxu0 0.0
    %1830 = vmatpush.xpose.msra.mxu0 0.0
    %1831 = vmatpush.xpose.msra.mxu0 0.0
    %1832 = vmatpush.xpose.msra.mxu0 0.0
    %1833 = vmatpush.xpose.msra.mxu0 0.0
    %1834 = vmatpush.xpose.msra.mxu0 0.0
    %1835 = vmatpush.xpose.msra.mxu0 0.0
    %1836 = vmatpush.xpose.msra.mxu0 0.0
    %1837 = vmatpush.xpose.msra.mxu0 0.0
    %1838 = vmatpush.xpose.msra.mxu0 0.0
    %1839 = vmatpush.xpose.msra.mxu0 0.0
    %1840 = vmatpush.xpose.msra.mxu0 0.0
    %1841 = vmatpush.xpose.msra.mxu0 0.0
    %1842 = vmatpush.xpose.msra.mxu0 0.0
    %1843 = vmatpush.xpose.msra.mxu0 0.0
    %1844 = vmatpush.xpose.msra.mxu0 %v1827
    %1845 = vmatmul.f32.gmra.mxu0 %v1355
    %v1846 = vpop.f32.mrf.mxu0
    %v1847 = vadd.f32 0.0, %v1846
    %1848 = vmatmul.f32.gmra.mxu0 %v1358
    %v1849 = vpop.f32.mrf.mxu0
    %v1850 = vadd.f32 0.0, %v1849
    %1851 = vdwg.mxu0
    %v1852 = vmul.f32 %v1769, 0.17677669
    %v1853 = vmul.f32 %v1772, 0.17677669
    %v1854 = vmul.f32 %v1795, 0.17677669
    %v1855 = vmul.f32 %v1798, 0.17677669
    %v1856 = vmul.f32 %v1821, 0.17677669
    %v1857 = vmul.f32 %v1824, 0.17677669
    %v1858 = vmul.f32 %v1847, 0.17677669
    %v1859 = vmul.f32 %v1850, 0.17677669
    %v1860 = vsel %vm1394, %v1852, -inf
    %1861 = vmax.xlane.f32.xlu0 %v1860
    %v1862 = vpop.xlane.xlu0 %1861
    %v1863 = vsel %vm1394, %v1853, -inf
    %1864 = vmax.xlane.f32.xlu0 %v1863
    %v1865 = vpop.xlane.xlu0 %1864
    %v1866 = vsel %vm1394, %v1854, -inf
    %1867 = vmax.xlane.f32.xlu0 %v1866
    %v1868 = vpop.xlane.xlu0 %1867
    %v1869 = vsel %vm1394, %v1855, -inf
    %1870 = vmax.xlane.f32.xlu0 %v1869
    %v1871 = vpop.xlane.xlu0 %1870
    %v1872 = vsel %vm1394, %v1856, -inf
    %1873 = vmax.xlane.f32.xlu0 %v1872
    %v1874 = vpop.xlane.xlu0 %1873
    %v1875 = vsel %vm1394, %v1857, -inf
    %1876 = vmax.xlane.f32.xlu0 %v1875
    %v1877 = vpop.xlane.xlu0 %1876
    %v1878 = vsel %vm1394, %v1858, -inf
    %1879 = vmax.xlane.f32.xlu0 %v1878
    %v1880 = vpop.xlane.xlu0 %1879
    %v1881 = vsel %vm1394, %v1859, -inf
    %1882 = vmax.xlane.f32.xlu0 %v1881
    %v1883 = vpop.xlane.xlu0 %1882
    %v1884 = vsub.f32 %v1852, %v1862
    %v1885 = vsub.f32 %v1853, %v1865
    %v1886 = vsub.f32 %v1854, %v1868
    %v1887 = vsub.f32 %v1855, %v1871
    %v1888 = vsub.f32 %v1856, %v1874
    %v1889 = vsub.f32 %v1857, %v1877
    %v1890 = vsub.f32 %v1858, %v1880
    %v1891 = vsub.f32 %v1859, %v1883
    %v1892 = vmul.f32 %v1884, 1.442695
    %v1893 = vpow.pop %v1892
    %v1894 = vmul.f32 %v1885, 1.442695
    %v1895 = vpow.pop %v1894
    %v1896 = vmul.f32 %v1886, 1.442695
    %v1897 = vpow.pop %v1896
    %v1898 = vmul.f32 %v1887, 1.442695
    %v1899 = vpow.pop %v1898
    %v1900 = vmul.f32 %v1888, 1.442695
    %v1901 = vpow.pop %v1900
    %v1902 = vmul.f32 %v1889, 1.442695
    %v1903 = vpow.pop %v1902
    %v1904 = vmul.f32 %v1890, 1.442695
    %v1905 = vpow.pop %v1904
    %v1906 = vmul.f32 %v1891, 1.442695
    %v1907 = vpow.pop %v1906
    %v1908 = vsel %vm1394, %v1893, 0.0
    %1909 = vadd.xlane.f32.xlu0 %v1908
    %v1910 = vpop.xlane.xlu0 %1909
    %v1911 = vsel %vm1394, %v1895, 0.0
    %1912 = vadd.xlane.f32.xlu0 %v1911
    %v1913 = vpop.xlane.xlu0 %1912
    %v1914 = vsel %vm1394, %v1897, 0.0
    %1915 = vadd.xlane.f32.xlu0 %v1914
    %v1916 = vpop.xlane.xlu0 %1915
    %v1917 = vsel %vm1394, %v1899, 0.0
    %1918 = vadd.xlane.f32.xlu0 %v1917
    %v1919 = vpop.xlane.xlu0 %1918
    %v1920 = vsel %vm1394, %v1901, 0.0
    %1921 = vadd.xlane.f32.xlu0 %v1920
    %v1922 = vpop.xlane.xlu0 %1921
    %v1923 = vsel %vm1394, %v1903, 0.0
    %1924 = vadd.xlane.f32.xlu0 %v1923
    %v1925 = vpop.xlane.xlu0 %1924
    %v1926 = vsel %vm1394, %v1905, 0.0
    %1927 = vadd.xlane.f32.xlu0 %v1926
    %v1928 = vpop.xlane.xlu0 %1927
    %v1929 = vsel %vm1394, %v1907, 0.0
    %1930 = vadd.xlane.f32.xlu0 %v1929
    %v1931 = vpop.xlane.xlu0 %1930
    %v1932 = vrcp.pop %v1910
    %v1933 = vrcp.pop %v1913
    %v1934 = vrcp.pop %v1916
    %v1935 = vrcp.pop %v1919
    %v1936 = vrcp.pop %v1922
    %v1937 = vrcp.pop %v1925
    %v1938 = vrcp.pop %v1928
    %v1939 = vrcp.pop %v1931
    %v1940 = vmul.f32 %v1893, %v1932
    %v1941 = vmul.f32 %v1895, %v1933
    %v1942 = vmul.f32 %v1897, %v1934
    %v1943 = vmul.f32 %v1899, %v1935
    %v1944 = vmul.f32 %v1901, %v1936
    %v1945 = vmul.f32 %v1903, %v1937
    %v1946 = vmul.f32 %v1905, %v1938
    %v1947 = vmul.f32 %v1907, %v1939
    %v1948 = vpack.c.bf16 %v1940, %v1940
    %v1949 = vpack.c.bf16 %v1941, %v1941
    %v1950 = vpack.c.bf16 %v1942, %v1942
    %v1951 = vpack.c.bf16 %v1943, %v1943
    %v1952 = vpack.c.bf16 %v1944, %v1944
    %v1953 = vpack.c.bf16 %v1945, %v1945
    %v1954 = vpack.c.bf16 %v1946, %v1946
    %v1955 = vpack.c.bf16 %v1947, %v1947
    %v1956 = vpack.c.bf16 %v1069, %v1069
    %v1957 = vpack.c.bf16 %v1131, %v1131
    %v1958 = vpack.c.bf16 %v1193, %v1193
    %v1959 = vpack.c.bf16 %v1255, %v1255
    %v1962 = vunpack.c.l.b16 %v1948
    %v1963 = vunpack.c.l.b16 %v1949
    %v1964 = vpack.c.b16 %v1963, %v1962
    %v1966 = vsel %vm1394, %v1964, 0
    %v1969 = vsel %vm1503, %v1956, 0
    %1971 = vmatpush.bf16.msra.mxu0 0
    %1972 = vmatpush.bf16.msra.mxu0 0
    %1973 = vmatpush.bf16.msra.mxu0 0
    %1974 = vmatpush.bf16.msra.mxu0 0
    %1975 = vmatpush.bf16.msra.mxu0 0
    %1976 = vmatpush.bf16.msra.mxu0 0
    %1977 = vmatpush.bf16.msra.mxu0 0
    %1978 = vmatpush.bf16.msra.mxu0 %v1969
    %1979 = vmatmul.bf16.gmra.mxu0 %v1966
    %v1980 = vpop.f32.mrf.mxu0
    %v1981 = vadd.f32 0.0, %v1980
    %v1982 = vpop.f32.mrf.mxu0
    %v1983 = vadd.f32 0.0, %v1982
    %1984 = vdwg.mxu0
    %v1987 = vunpack.c.l.b16 %v1950
    %v1988 = vunpack.c.l.b16 %v1951
    %v1989 = vpack.c.b16 %v1988, %v1987
    %v1991 = vsel %vm1394, %v1989, 0
    %v1994 = vsel %vm1503, %v1957, 0
    %1996 = vmatpush.bf16.msra.mxu0 0
    %1997 = vmatpush.bf16.msra.mxu0 0
    %1998 = vmatpush.bf16.msra.mxu0 0
    %1999 = vmatpush.bf16.msra.mxu0 0
    %2000 = vmatpush.bf16.msra.mxu0 0
    %2001 = vmatpush.bf16.msra.mxu0 0
    %2002 = vmatpush.bf16.msra.mxu0 0
    %2003 = vmatpush.bf16.msra.mxu0 %v1994
    %2004 = vmatmul.bf16.gmra.mxu0 %v1991
    %v2005 = vpop.f32.mrf.mxu0
    %v2006 = vadd.f32 0.0, %v2005
    %v2007 = vpop.f32.mrf.mxu0
    %v2008 = vadd.f32 0.0, %v2007
    %2009 = vdwg.mxu0
    %v2012 = vunpack.c.l.b16 %v1952
    %v2013 = vunpack.c.l.b16 %v1953
    %v2014 = vpack.c.b16 %v2013, %v2012
    %v2016 = vsel %vm1394, %v2014, 0
    %v2019 = vsel %vm1503, %v1958, 0
    %2021 = vmatpush.bf16.msra.mxu0 0
    %2022 = vmatpush.bf16.msra.mxu0 0
    %2023 = vmatpush.bf16.msra.mxu0 0
    %2024 = vmatpush.bf16.msra.mxu0 0
    %2025 = vmatpush.bf16.msra.mxu0 0
    %2026 = vmatpush.bf16.msra.mxu0 0
    %2027 = vmatpush.bf16.msra.mxu0 0
    %2028 = vmatpush.bf16.msra.mxu0 %v2019
    %2029 = vmatmul.bf16.gmra.mxu0 %v2016
    %v2030 = vpop.f32.mrf.mxu0
    %v2031 = vadd.f32 0.0, %v2030
    %v2032 = vpop.f32.mrf.mxu0
    %v2033 = vadd.f32 0.0, %v2032
    %2034 = vdwg.mxu0
    %v2037 = vunpack.c.l.b16 %v1954
    %v2038 = vunpack.c.l.b16 %v1955
    %v2039 = vpack.c.b16 %v2038, %v2037
    %v2041 = vsel %vm1394, %v2039, 0
    %v2044 = vsel %vm1503, %v1959, 0
    %2046 = vmatpush.bf16.msra.mxu0 0
    %2047 = vmatpush.bf16.msra.mxu0 0
    %2048 = vmatpush.bf16.msra.mxu0 0
    %2049 = vmatpush.bf16.msra.mxu0 0
    %2050 = vmatpush.bf16.msra.mxu0 0
    %2051 = vmatpush.bf16.msra.mxu0 0
    %2052 = vmatpush.bf16.msra.mxu0 0
    %2053 = vmatpush.bf16.msra.mxu0 %v2044
    %2054 = vmatmul.bf16.gmra.mxu0 %v2041
    %v2055 = vpop.f32.mrf.mxu0
    %v2056 = vadd.f32 0.0, %v2055
    %v2057 = vpop.f32.mrf.mxu0
    %v2058 = vadd.f32 0.0, %v2057
    %2059 = vdwg.mxu0
    %v2060 = vpack.c.bf16 %v1981, %v1981
    %v2061 = vpack.c.bf16 %v1983, %v1983
    %v2062 = vpack.c.bf16 %v2006, %v2006
    %v2063 = vpack.c.bf16 %v2008, %v2008
    %v2064 = vpack.c.bf16 %v2031, %v2031
    %v2065 = vpack.c.bf16 %v2033, %v2033
    %v2066 = vpack.c.bf16 %v2056, %v2056
    %v2067 = vpack.c.bf16 %v2058, %v2058
    %v2070 = vunpack.c.l.b16 %v2060
    %v2071 = vunpack.c.l.b16 %v2061
    %v2072 = vpack.c.b16 %v2071, %v2070
    %v2074 = vsel %vm1257, %v2072, 0
    %2076 = vmatpush.bf16.msra.mxu0 0
    %2077 = vmatpush.bf16.msra.mxu0 0
    %2078 = vmatpush.bf16.msra.mxu0 0
    %2079 = vmatpush.bf16.msra.mxu0 0
    %2080 = vmatpush.bf16.msra.mxu0 0
    %2081 = vmatpush.bf16.msra.mxu0 0
    %2082 = vmatpush.bf16.msra.mxu0 %v1618
    %2083 = vmatpush.bf16.msra.mxu0 %v1617
    %2084 = vmatmul.bf16.gmra.mxu0 %v2074
    %v2085 = vpop.f32.mrf.mxu0
    %v2086 = vadd.f32 0.0, %v2085
    %v2087 = vpop.f32.mrf.mxu0
    %v2088 = vadd.f32 0.0, %v2087
    %2089 = vdwg.mxu0
    %v2092 = vunpack.c.l.b16 %v2062
    %v2093 = vunpack.c.l.b16 %v2063
    %v2094 = vpack.c.b16 %v2093, %v2092
    %v2096 = vsel %vm1257, %v2094, 0
    %2098 = vmatpush.bf16.msra.mxu0 0
    %2099 = vmatpush.bf16.msra.mxu0 0
    %2100 = vmatpush.bf16.msra.mxu0 0
    %2101 = vmatpush.bf16.msra.mxu0 0
    %2102 = vmatpush.bf16.msra.mxu0 0
    %2103 = vmatpush.bf16.msra.mxu0 0
    %2104 = vmatpush.bf16.msra.mxu0 %v1652
    %2105 = vmatpush.bf16.msra.mxu0 %v1651
    %2106 = vmatmul.bf16.gmra.mxu0 %v2096
    %v2107 = vpop.f32.mrf.mxu0
    %v2108 = vadd.f32 0.0, %v2107
    %v2109 = vpop.f32.mrf.mxu0
    %v2110 = vadd.f32 0.0, %v2109
    %2111 = vdwg.mxu0
    %v2114 = vunpack.c.l.b16 %v2064
    %v2115 = vunpack.c.l.b16 %v2065
    %v2116 = vpack.c.b16 %v2115, %v2114
    %v2118 = vsel %vm1257, %v2116, 0
    %2120 = vmatpush.bf16.msra.mxu0 0
    %2121 = vmatpush.bf16.msra.mxu0 0
    %2122 = vmatpush.bf16.msra.mxu0 0
    %2123 = vmatpush.bf16.msra.mxu0 0
    %2124 = vmatpush.bf16.msra.mxu0 0
    %2125 = vmatpush.bf16.msra.mxu0 0
    %2126 = vmatpush.bf16.msra.mxu0 %v1686
    %2127 = vmatpush.bf16.msra.mxu0 %v1685
    %2128 = vmatmul.bf16.gmra.mxu0 %v2118
    %v2129 = vpop.f32.mrf.mxu0
    %v2130 = vadd.f32 0.0, %v2129
    %v2131 = vpop.f32.mrf.mxu0
    %v2132 = vadd.f32 0.0, %v2131
    %2133 = vdwg.mxu0
    %v2136 = vunpack.c.l.b16 %v2066
    %v2137 = vunpack.c.l.b16 %v2067
    %v2138 = vpack.c.b16 %v2137, %v2136
    %v2140 = vsel %vm1257, %v2138, 0
    %2142 = vmatpush.bf16.msra.mxu0 0
    %2143 = vmatpush.bf16.msra.mxu0 0
    %2144 = vmatpush.bf16.msra.mxu0 0
    %2145 = vmatpush.bf16.msra.mxu0 0
    %2146 = vmatpush.bf16.msra.mxu0 0
    %2147 = vmatpush.bf16.msra.mxu0 0
    %2148 = vmatpush.bf16.msra.mxu0 %v1720
    %2149 = vmatpush.bf16.msra.mxu0 %v1719
    %2150 = vmatmul.bf16.gmra.mxu0 %v2140
    %v2151 = vpop.f32.mrf.mxu0
    %v2152 = vadd.f32 0.0, %v2151
    %v2153 = vpop.f32.mrf.mxu0
    %v2154 = vadd.f32 0.0, %v2153
    %2155 = vdwg.mxu0
    %v2156 = vadd.f32 %v2086, %v2108
    %v2157 = vadd.f32 %v2156, %v2130
    %v2158 = vadd.f32 %v2157, %v2152
    %v2159 = vadd.f32 %v2088, %v2110
    %v2160 = vadd.f32 %v2159, %v2132
    %v2161 = vadd.f32 %v2160, %v2154
    %v2162 = vadd.f32 %v2158, %v237
    %v2163 = vadd.f32 %v2161, %v238
    %v2164 = vld [vmem:[%s11] sm:$0x1]
    %v2165 = vld [vmem:[%s12] sm:$0x1]
    %2166 = vadd.xlane.f32.xlu0 %v1746
    %v2167 = vpop.xlane.xlu0 %2166
    %2168 = vadd.xlane.f32.xlu0 %v1747
    %v2169 = vpop.xlane.xlu0 %2168
    %2170 = vadd.xlane.f32.xlu0 %v2162
    %v2171 = vpop.xlane.xlu0 %2170
    %2172 = vadd.xlane.f32.xlu0 %v2163
    %v2173 = vpop.xlane.xlu0 %2172
    %v2174 = vmul.f32 %v2167, %v188
    %v2175 = vmul.f32 %v2169, %v188
    %v2176 = vmul.f32 %v2171, %v188
    %v2177 = vmul.f32 %v2173, %v188
    %v2178 = vsub.f32 %v1746, %v2174
    %v2179 = vsub.f32 %v1747, %v2175
    %v2180 = vsub.f32 %v2162, %v2176
    %v2181 = vsub.f32 %v2163, %v2177
    %v2182 = vmul.f32 %v2178, %v2178
    %v2183 = vmul.f32 %v2179, %v2179
    %v2184 = vmul.f32 %v2180, %v2180
    %v2185 = vmul.f32 %v2181, %v2181
    %2186 = vadd.xlane.f32.xlu0 %v2182
    %v2187 = vpop.xlane.xlu0 %2186
    %2188 = vadd.xlane.f32.xlu0 %v2183
    %v2189 = vpop.xlane.xlu0 %2188
    %2190 = vadd.xlane.f32.xlu0 %v2184
    %v2191 = vpop.xlane.xlu0 %2190
    %2192 = vadd.xlane.f32.xlu0 %v2185
    %v2193 = vpop.xlane.xlu0 %2192
    %v2194 = vmul.f32 %v2187, %v188
    %v2195 = vmul.f32 %v2189, %v188
    %v2196 = vmul.f32 %v2191, %v188
    %v2197 = vmul.f32 %v2193, %v188
    %v2198 = vadd.f32 %v2194, 1e-05
    %v2199 = vadd.f32 %v2195, 1e-05
    %v2200 = vadd.f32 %v2196, 1e-05
    %v2201 = vadd.f32 %v2197, 1e-05
    %v2202 = vrsqrt.pop %v2198
    %v2203 = vmul.f32 %v2202, %v2198
    %v2204 = vmul.f32 %v2203, %v2202
    %v2205 = vmul.f32 0.5, %v2204
    %v2206 = vsub.f32 1.5, %v2205
    %v2207 = vmul.f32 %v2202, %v2206
    %vm2208 = vweird.f32 %v2198
    %vm2209 = vweird.f32 %v2202
    %vm2210 = vmor %vm2208, %vm2209
    %v2211 = vsel %vm2210, %v2202, %v2207
    %v2212 = vrsqrt.pop %v2199
    %v2213 = vmul.f32 %v2212, %v2199
    %v2214 = vmul.f32 %v2213, %v2212
    %v2215 = vmul.f32 0.5, %v2214
    %v2216 = vsub.f32 1.5, %v2215
    %v2217 = vmul.f32 %v2212, %v2216
    %vm2218 = vweird.f32 %v2199
    %vm2219 = vweird.f32 %v2212
    %vm2220 = vmor %vm2218, %vm2219
    %v2221 = vsel %vm2220, %v2212, %v2217
    %v2222 = vrsqrt.pop %v2200
    %v2223 = vmul.f32 %v2222, %v2200
    %v2224 = vmul.f32 %v2223, %v2222
    %v2225 = vmul.f32 0.5, %v2224
    %v2226 = vsub.f32 1.5, %v2225
    %v2227 = vmul.f32 %v2222, %v2226
    %vm2228 = vweird.f32 %v2200
    %vm2229 = vweird.f32 %v2222
    %vm2230 = vmor %vm2228, %vm2229
    %v2231 = vsel %vm2230, %v2222, %v2227
    %v2232 = vrsqrt.pop %v2201
    %v2233 = vmul.f32 %v2232, %v2201
    %v2234 = vmul.f32 %v2233, %v2232
    %v2235 = vmul.f32 0.5, %v2234
    %v2236 = vsub.f32 1.5, %v2235
    %v2237 = vmul.f32 %v2232, %v2236
    %vm2238 = vweird.f32 %v2201
    %vm2239 = vweird.f32 %v2232
    %vm2240 = vmor %vm2238, %vm2239
    %v2241 = vsel %vm2240, %v2232, %v2237
    %v2242 = vmul.f32 %v2178, %v2211
    %v2243 = vmul.f32 %v2179, %v2221
    %v2244 = vmul.f32 %v2180, %v2231
    %v2245 = vmul.f32 %v2181, %v2241
    %v2247 = vperm.slane %v2164, 0
    %v2249 = vmul.f32 %v2242, %v2247
    %v2250 = vmul.f32 %v2243, %v2247
    %v2251 = vmul.f32 %v2244, %v2247
    %v2252 = vmul.f32 %v2245, %v2247
    %v2254 = vperm.slane %v2165, 0
    %v2256 = vadd.f32 %v2249, %v2254
    %v2257 = vadd.f32 %v2250, %v2254
    %v2258 = vadd.f32 %v2251, %v2254
    %v2259 = vadd.f32 %v2252, %v2254
    %v2260 = vpack.c.bf16 %v2257, %v2256
    %v2261 = vpack.c.bf16 %v2259, %v2258
    %v2262 = vld [vmem:[%s13] sm:$0xff]
    %v2263 = vld [vmem:[%s13 + $0x8] sm:$0xff]
    %v2264 = vld [vmem:[%s13 + $0x10] sm:$0xff]
    %v2265 = vld [vmem:[%s13 + $0x18] sm:$0xff]
    %v2266 = vld [vmem:[%s13 + $0x20] sm:$0xff]
    %v2267 = vld [vmem:[%s13 + $0x28] sm:$0xff]
    %v2268 = vld [vmem:[%s13 + $0x30] sm:$0xff]
    %v2269 = vld [vmem:[%s13 + $0x38] sm:$0xff]
    %v2270 = vld [vmem:[%s13 + $0x40] sm:$0xff]
    %v2271 = vld [vmem:[%s13 + $0x48] sm:$0xff]
    %v2272 = vld [vmem:[%s13 + $0x50] sm:$0xff]
    %v2273 = vld [vmem:[%s13 + $0x58] sm:$0xff]
    %v2274 = vld [vmem:[%s13 + $0x60] sm:$0xff]
    %v2275 = vld [vmem:[%s13 + $0x68] sm:$0xff]
    %v2276 = vld [vmem:[%s13 + $0x70] sm:$0xff]
    %v2277 = vld [vmem:[%s13 + $0x78] sm:$0xff]
    %v2278 = vld [vmem:[%s13 + $0x80] sm:$0xff]
    %v2279 = vld [vmem:[%s13 + $0x88] sm:$0xff]
    %v2280 = vld [vmem:[%s13 + $0x90] sm:$0xff]
    %v2281 = vld [vmem:[%s13 + $0x98] sm:$0xff]
    %v2282 = vld [vmem:[%s13 + $0xa0] sm:$0xff]
    %v2283 = vld [vmem:[%s13 + $0xa8] sm:$0xff]
    %v2284 = vld [vmem:[%s13 + $0xb0] sm:$0xff]
    %v2285 = vld [vmem:[%s13 + $0xb8] sm:$0xff]
    %v2286 = vld [vmem:[%s13 + $0xc0] sm:$0xff]
    %v2287 = vld [vmem:[%s13 + $0xc8] sm:$0xff]
    %v2288 = vld [vmem:[%s13 + $0xd0] sm:$0xff]
    %v2289 = vld [vmem:[%s13 + $0xd8] sm:$0xff]
    %v2290 = vld [vmem:[%s13 + $0xe0] sm:$0xff]
    %v2291 = vld [vmem:[%s13 + $0xe8] sm:$0xff]
    %v2292 = vld [vmem:[%s13 + $0xf0] sm:$0xff]
    %v2293 = vld [vmem:[%s13 + $0xf8] sm:$0xff]
    %v2294 = vld [vmem:[%s13 + $0x100] sm:$0xff]
    %v2295 = vld [vmem:[%s13 + $0x108] sm:$0xff]
    %v2296 = vld [vmem:[%s13 + $0x110] sm:$0xff]
    %v2297 = vld [vmem:[%s13 + $0x118] sm:$0xff]
    %v2298 = vld [vmem:[%s13 + $0x120] sm:$0xff]
    %v2299 = vld [vmem:[%s13 + $0x128] sm:$0xff]
    %v2300 = vld [vmem:[%s13 + $0x130] sm:$0xff]
    %v2301 = vld [vmem:[%s13 + $0x138] sm:$0xff]
    %v2302 = vld [vmem:[%s13 + $0x140] sm:$0xff]
    %v2303 = vld [vmem:[%s13 + $0x148] sm:$0xff]
    %v2304 = vld [vmem:[%s13 + $0x150] sm:$0xff]
    %v2305 = vld [vmem:[%s13 + $0x158] sm:$0xff]
    %v2306 = vld [vmem:[%s13 + $0x160] sm:$0xff]
    %v2307 = vld [vmem:[%s13 + $0x168] sm:$0xff]
    %v2308 = vld [vmem:[%s13 + $0x170] sm:$0xff]
    %v2309 = vld [vmem:[%s13 + $0x178] sm:$0xff]
    %v2310 = vld [vmem:[%s13 + $0x180] sm:$0xff]
    %v2311 = vld [vmem:[%s13 + $0x188] sm:$0xff]
    %v2312 = vld [vmem:[%s13 + $0x190] sm:$0xff]
    %v2313 = vld [vmem:[%s13 + $0x198] sm:$0xff]
    %v2314 = vld [vmem:[%s13 + $0x1a0] sm:$0xff]
    %v2315 = vld [vmem:[%s13 + $0x1a8] sm:$0xff]
    %v2316 = vld [vmem:[%s13 + $0x1b0] sm:$0xff]
    %v2317 = vld [vmem:[%s13 + $0x1b8] sm:$0xff]
    %v2318 = vld [vmem:[%s13 + $0x1c0] sm:$0xff]
    %v2319 = vld [vmem:[%s13 + $0x1c8] sm:$0xff]
    %v2320 = vld [vmem:[%s13 + $0x1d0] sm:$0xff]
    %v2321 = vld [vmem:[%s13 + $0x1d8] sm:$0xff]
    %v2322 = vld [vmem:[%s13 + $0x1e0] sm:$0xff]
    %v2323 = vld [vmem:[%s13 + $0x1e8] sm:$0xff]
    %v2324 = vld [vmem:[%s13 + $0x1f0] sm:$0xff]
    %v2325 = vld [vmem:[%s13 + $0x1f8] sm:$0xff]
    %v2326 = vld [vmem:[%s14] sm:$0xff]
    %v2328 = vperm.slane %v2326, 0
    %v2329 = vperm.slane %v2326, 1
    %v2330 = vperm.slane %v2326, 2
    %v2331 = vperm.slane %v2326, 3
    %v2332 = vperm.slane %v2326, 4
    %v2333 = vperm.slane %v2326, 5
    %v2334 = vperm.slane %v2326, 6
    %v2335 = vperm.slane %v2326, 7
    %v2408 = vunpack.c.l.b16 %v2262
    %v2409 = vunpack.c.h.b16 %v2262
    %v2410 = vunpack.c.l.b16 %v2263
    %v2411 = vunpack.c.h.b16 %v2263
    %v2412 = vunpack.c.l.b16 %v2264
    %v2413 = vunpack.c.h.b16 %v2264
    %v2414 = vunpack.c.l.b16 %v2265
    %v2415 = vunpack.c.h.b16 %v2265
    %v2416 = vunpack.c.l.b16 %v2266
    %v2417 = vunpack.c.h.b16 %v2266
    %v2418 = vunpack.c.l.b16 %v2267
    %v2419 = vunpack.c.h.b16 %v2267
    %v2420 = vunpack.c.l.b16 %v2268
    %v2421 = vunpack.c.h.b16 %v2268
    %v2422 = vunpack.c.l.b16 %v2269
    %v2423 = vunpack.c.h.b16 %v2269
    %v2424 = vunpack.c.l.b16 %v2270
    %v2425 = vunpack.c.h.b16 %v2270
    %v2426 = vunpack.c.l.b16 %v2271
    %v2427 = vunpack.c.h.b16 %v2271
    %v2428 = vunpack.c.l.b16 %v2272
    %v2429 = vunpack.c.h.b16 %v2272
    %v2430 = vunpack.c.l.b16 %v2273
    %v2431 = vunpack.c.h.b16 %v2273
    %v2432 = vunpack.c.l.b16 %v2274
    %v2433 = vunpack.c.h.b16 %v2274
    %v2434 = vunpack.c.l.b16 %v2275
    %v2435 = vunpack.c.h.b16 %v2275
    %v2436 = vunpack.c.l.b16 %v2276
    %v2437 = vunpack.c.h.b16 %v2276
    %v2438 = vunpack.c.l.b16 %v2277
    %v2439 = vunpack.c.h.b16 %v2277
    %v2440 = vunpack.c.l.b16 %v2278
    %v2441 = vunpack.c.h.b16 %v2278
    %v2442 = vunpack.c.l.b16 %v2279
    %v2443 = vunpack.c.h.b16 %v2279
    %v2444 = vunpack.c.l.b16 %v2280
    %v2445 = vunpack.c.h.b16 %v2280
    %v2446 = vunpack.c.l.b16 %v2281
    %v2447 = vunpack.c.h.b16 %v2281
    %v2448 = vunpack.c.l.b16 %v2282
    %v2449 = vunpack.c.h.b16 %v2282
    %v2450 = vunpack.c.l.b16 %v2283
    %v2451 = vunpack.c.h.b16 %v2283
    %v2452 = vunpack.c.l.b16 %v2284
    %v2453 = vunpack.c.h.b16 %v2284
    %v2454 = vunpack.c.l.b16 %v2285
    %v2455 = vunpack.c.h.b16 %v2285
    %v2456 = vunpack.c.l.b16 %v2286
    %v2457 = vunpack.c.h.b16 %v2286
    %v2458 = vunpack.c.l.b16 %v2287
    %v2459 = vunpack.c.h.b16 %v2287
    %v2460 = vunpack.c.l.b16 %v2288
    %v2461 = vunpack.c.h.b16 %v2288
    %v2462 = vunpack.c.l.b16 %v2289
    %v2463 = vunpack.c.h.b16 %v2289
    %v2464 = vunpack.c.l.b16 %v2290
    %v2465 = vunpack.c.h.b16 %v2290
    %v2466 = vunpack.c.l.b16 %v2291
    %v2467 = vunpack.c.h.b16 %v2291
    %v2468 = vunpack.c.l.b16 %v2292
    %v2469 = vunpack.c.h.b16 %v2292
    %v2470 = vunpack.c.l.b16 %v2293
    %v2471 = vunpack.c.h.b16 %v2293
    %v2472 = vunpack.c.l.b16 %v2294
    %v2473 = vunpack.c.h.b16 %v2294
    %v2474 = vunpack.c.l.b16 %v2295
    %v2475 = vunpack.c.h.b16 %v2295
    %v2476 = vunpack.c.l.b16 %v2296
    %v2477 = vunpack.c.h.b16 %v2296
    %v2478 = vunpack.c.l.b16 %v2297
    %v2479 = vunpack.c.h.b16 %v2297
    %v2480 = vunpack.c.l.b16 %v2298
    %v2481 = vunpack.c.h.b16 %v2298
    %v2482 = vunpack.c.l.b16 %v2299
    %v2483 = vunpack.c.h.b16 %v2299
    %v2484 = vunpack.c.l.b16 %v2300
    %v2485 = vunpack.c.h.b16 %v2300
    %v2486 = vunpack.c.l.b16 %v2301
    %v2487 = vunpack.c.h.b16 %v2301
    %v2488 = vunpack.c.l.b16 %v2302
    %v2489 = vunpack.c.h.b16 %v2302
    %v2490 = vunpack.c.l.b16 %v2303
    %v2491 = vunpack.c.h.b16 %v2303
    %v2492 = vunpack.c.l.b16 %v2304
    %v2493 = vunpack.c.h.b16 %v2304
    %v2494 = vunpack.c.l.b16 %v2305
    %v2495 = vunpack.c.h.b16 %v2305
    %v2496 = vunpack.c.l.b16 %v2306
    %v2497 = vunpack.c.h.b16 %v2306
    %v2498 = vunpack.c.l.b16 %v2307
    %v2499 = vunpack.c.h.b16 %v2307
    %v2500 = vunpack.c.l.b16 %v2308
    %v2501 = vunpack.c.h.b16 %v2308
    %v2502 = vunpack.c.l.b16 %v2309
    %v2503 = vunpack.c.h.b16 %v2309
    %v2504 = vunpack.c.l.b16 %v2310
    %v2505 = vunpack.c.h.b16 %v2310
    %v2506 = vunpack.c.l.b16 %v2311
    %v2507 = vunpack.c.h.b16 %v2311
    %v2508 = vunpack.c.l.b16 %v2312
    %v2509 = vunpack.c.h.b16 %v2312
    %v2510 = vunpack.c.l.b16 %v2313
    %v2511 = vunpack.c.h.b16 %v2313
    %v2512 = vunpack.c.l.b16 %v2314
    %v2513 = vunpack.c.h.b16 %v2314
    %v2514 = vunpack.c.l.b16 %v2315
    %v2515 = vunpack.c.h.b16 %v2315
    %v2516 = vunpack.c.l.b16 %v2316
    %v2517 = vunpack.c.h.b16 %v2316
    %v2518 = vunpack.c.l.b16 %v2317
    %v2519 = vunpack.c.h.b16 %v2317
    %v2520 = vunpack.c.l.b16 %v2318
    %v2521 = vunpack.c.h.b16 %v2318
    %v2522 = vunpack.c.l.b16 %v2319
    %v2523 = vunpack.c.h.b16 %v2319
    %v2524 = vunpack.c.l.b16 %v2320
    %v2525 = vunpack.c.h.b16 %v2320
    %v2526 = vunpack.c.l.b16 %v2321
    %v2527 = vunpack.c.h.b16 %v2321
    %v2528 = vunpack.c.l.b16 %v2322
    %v2529 = vunpack.c.h.b16 %v2322
    %v2530 = vunpack.c.l.b16 %v2323
    %v2531 = vunpack.c.h.b16 %v2323
    %v2532 = vunpack.c.l.b16 %v2324
    %v2533 = vunpack.c.h.b16 %v2324
    %v2534 = vunpack.c.l.b16 %v2325
    %v2535 = vunpack.c.h.b16 %v2325
    %v2536 = vpack.c.b16 %v2416, %v2408
    %v2537 = vpack.c.b16 %v2417, %v2409
    %v2538 = vpack.c.b16 %v2418, %v2410
    %v2539 = vpack.c.b16 %v2419, %v2411
    %v2540 = vpack.c.b16 %v2420, %v2412
    %v2541 = vpack.c.b16 %v2421, %v2413
    %v2542 = vpack.c.b16 %v2422, %v2414
    %v2543 = vpack.c.b16 %v2423, %v2415
    %v2544 = vpack.c.b16 %v2432, %v2424
    %v2545 = vpack.c.b16 %v2433, %v2425
    %v2546 = vpack.c.b16 %v2434, %v2426
    %v2547 = vpack.c.b16 %v2435, %v2427
    %v2548 = vpack.c.b16 %v2436, %v2428
    %v2549 = vpack.c.b16 %v2437, %v2429
    %v2550 = vpack.c.b16 %v2438, %v2430
    %v2551 = vpack.c.b16 %v2439, %v2431
    %v2552 = vpack.c.b16 %v2448, %v2440
    %v2553 = vpack.c.b16 %v2449, %v2441
    %v2554 = vpack.c.b16 %v2450, %v2442
    %v2555 = vpack.c.b16 %v2451, %v2443
    %v2556 = vpack.c.b16 %v2452, %v2444
    %v2557 = vpack.c.b16 %v2453, %v2445
    %v2558 = vpack.c.b16 %v2454, %v2446
    %v2559 = vpack.c.b16 %v2455, %v2447
    %v2560 = vpack.c.b16 %v2464, %v2456
    %v2561 = vpack.c.b16 %v2465, %v2457
    %v2562 = vpack.c.b16 %v2466, %v2458
    %v2563 = vpack.c.b16 %v2467, %v2459
    %v2564 = vpack.c.b16 %v2468, %v2460
    %v2565 = vpack.c.b16 %v2469, %v2461
    %v2566 = vpack.c.b16 %v2470, %v2462
    %v2567 = vpack.c.b16 %v2471, %v2463
    %v2568 = vpack.c.b16 %v2480, %v2472
    %v2569 = vpack.c.b16 %v2481, %v2473
    %v2570 = vpack.c.b16 %v2482, %v2474
    %v2571 = vpack.c.b16 %v2483, %v2475
    %v2572 = vpack.c.b16 %v2484, %v2476
    %v2573 = vpack.c.b16 %v2485, %v2477
    %v2574 = vpack.c.b16 %v2486, %v2478
    %v2575 = vpack.c.b16 %v2487, %v2479
    %v2576 = vpack.c.b16 %v2496, %v2488
    %v2577 = vpack.c.b16 %v2497, %v2489
    %v2578 = vpack.c.b16 %v2498, %v2490
    %v2579 = vpack.c.b16 %v2499, %v2491
    %v2580 = vpack.c.b16 %v2500, %v2492
    %v2581 = vpack.c.b16 %v2501, %v2493
    %v2582 = vpack.c.b16 %v2502, %v2494
    %v2583 = vpack.c.b16 %v2503, %v2495
    %v2584 = vpack.c.b16 %v2512, %v2504
    %v2585 = vpack.c.b16 %v2513, %v2505
    %v2586 = vpack.c.b16 %v2514, %v2506
    %v2587 = vpack.c.b16 %v2515, %v2507
    %v2588 = vpack.c.b16 %v2516, %v2508
    %v2589 = vpack.c.b16 %v2517, %v2509
    %v2590 = vpack.c.b16 %v2518, %v2510
    %v2591 = vpack.c.b16 %v2519, %v2511
    %v2592 = vpack.c.b16 %v2528, %v2520
    %v2593 = vpack.c.b16 %v2529, %v2521
    %v2594 = vpack.c.b16 %v2530, %v2522
    %v2595 = vpack.c.b16 %v2531, %v2523
    %v2596 = vpack.c.b16 %v2532, %v2524
    %v2597 = vpack.c.b16 %v2533, %v2525
    %v2598 = vpack.c.b16 %v2534, %v2526
    %v2599 = vpack.c.b16 %v2535, %v2527
    %2664 = vmatpush.bf16.msra.mxu0 %v2592
    %2665 = vmatpush.bf16.msra.mxu0 %v2584
    %2666 = vmatpush.bf16.msra.mxu0 %v2576
    %2667 = vmatpush.bf16.msra.mxu0 %v2568
    %2668 = vmatpush.bf16.msra.mxu0 %v2560
    %2669 = vmatpush.bf16.msra.mxu0 %v2552
    %2670 = vmatpush.bf16.msra.mxu0 %v2544
    %2671 = vmatpush.bf16.msra.mxu0 %v2536
    %2672 = vmatmul.bf16.gmra.mxu0 %v2260
    %v2673 = vpop.f32.mrf.mxu0
    %v2674 = vadd.f32 %v2328, %v2673
    %v2675 = vpop.f32.mrf.mxu0
    %v2676 = vadd.f32 %v2328, %v2675
    %2677 = vmatmul.bf16.gmra.mxu0 %v2261
    %v2678 = vpop.f32.mrf.mxu0
    %v2679 = vadd.f32 %v2328, %v2678
    %v2680 = vpop.f32.mrf.mxu0
    %v2681 = vadd.f32 %v2328, %v2680
    %2682 = vdwg.mxu0
    %2683 = vmatpush.bf16.msra.mxu0 %v2593
    %2684 = vmatpush.bf16.msra.mxu0 %v2585
    %2685 = vmatpush.bf16.msra.mxu0 %v2577
    %2686 = vmatpush.bf16.msra.mxu0 %v2569
    %2687 = vmatpush.bf16.msra.mxu0 %v2561
    %2688 = vmatpush.bf16.msra.mxu0 %v2553
    %2689 = vmatpush.bf16.msra.mxu0 %v2545
    %2690 = vmatpush.bf16.msra.mxu0 %v2537
    %2691 = vmatmul.bf16.gmra.mxu0 %v2260
    %v2692 = vpop.f32.mrf.mxu0
    %v2693 = vadd.f32 %v2329, %v2692
    %v2694 = vpop.f32.mrf.mxu0
    %v2695 = vadd.f32 %v2329, %v2694
    %2696 = vmatmul.bf16.gmra.mxu0 %v2261
    %v2697 = vpop.f32.mrf.mxu0
    %v2698 = vadd.f32 %v2329, %v2697
    %v2699 = vpop.f32.mrf.mxu0
    %v2700 = vadd.f32 %v2329, %v2699
    %2701 = vdwg.mxu0
    %2702 = vmatpush.bf16.msra.mxu0 %v2594
    %2703 = vmatpush.bf16.msra.mxu0 %v2586
    %2704 = vmatpush.bf16.msra.mxu0 %v2578
    %2705 = vmatpush.bf16.msra.mxu0 %v2570
    %2706 = vmatpush.bf16.msra.mxu0 %v2562
    %2707 = vmatpush.bf16.msra.mxu0 %v2554
    %2708 = vmatpush.bf16.msra.mxu0 %v2546
    %2709 = vmatpush.bf16.msra.mxu0 %v2538
    %2710 = vmatmul.bf16.gmra.mxu0 %v2260
    %v2711 = vpop.f32.mrf.mxu0
    %v2712 = vadd.f32 %v2330, %v2711
    %v2713 = vpop.f32.mrf.mxu0
    %v2714 = vadd.f32 %v2330, %v2713
    %2715 = vmatmul.bf16.gmra.mxu0 %v2261
    %v2716 = vpop.f32.mrf.mxu0
    %v2717 = vadd.f32 %v2330, %v2716
    %v2718 = vpop.f32.mrf.mxu0
    %v2719 = vadd.f32 %v2330, %v2718
    %2720 = vdwg.mxu0
    %2721 = vmatpush.bf16.msra.mxu0 %v2595
    %2722 = vmatpush.bf16.msra.mxu0 %v2587
    %2723 = vmatpush.bf16.msra.mxu0 %v2579
    %2724 = vmatpush.bf16.msra.mxu0 %v2571
    %2725 = vmatpush.bf16.msra.mxu0 %v2563
    %2726 = vmatpush.bf16.msra.mxu0 %v2555
    %2727 = vmatpush.bf16.msra.mxu0 %v2547
    %2728 = vmatpush.bf16.msra.mxu0 %v2539
    %2729 = vmatmul.bf16.gmra.mxu0 %v2260
    %v2730 = vpop.f32.mrf.mxu0
    %v2731 = vadd.f32 %v2331, %v2730
    %v2732 = vpop.f32.mrf.mxu0
    %v2733 = vadd.f32 %v2331, %v2732
    %2734 = vmatmul.bf16.gmra.mxu0 %v2261
    %v2735 = vpop.f32.mrf.mxu0
    %v2736 = vadd.f32 %v2331, %v2735
    %v2737 = vpop.f32.mrf.mxu0
    %v2738 = vadd.f32 %v2331, %v2737
    %2739 = vdwg.mxu0
    %2740 = vmatpush.bf16.msra.mxu0 %v2596
    %2741 = vmatpush.bf16.msra.mxu0 %v2588
    %2742 = vmatpush.bf16.msra.mxu0 %v2580
    %2743 = vmatpush.bf16.msra.mxu0 %v2572
    %2744 = vmatpush.bf16.msra.mxu0 %v2564
    %2745 = vmatpush.bf16.msra.mxu0 %v2556
    %2746 = vmatpush.bf16.msra.mxu0 %v2548
    %2747 = vmatpush.bf16.msra.mxu0 %v2540
    %2748 = vmatmul.bf16.gmra.mxu0 %v2260
    %v2749 = vpop.f32.mrf.mxu0
    %v2750 = vadd.f32 %v2332, %v2749
    %v2751 = vpop.f32.mrf.mxu0
    %v2752 = vadd.f32 %v2332, %v2751
    %2753 = vmatmul.bf16.gmra.mxu0 %v2261
    %v2754 = vpop.f32.mrf.mxu0
    %v2755 = vadd.f32 %v2332, %v2754
    %v2756 = vpop.f32.mrf.mxu0
    %v2757 = vadd.f32 %v2332, %v2756
    %2758 = vdwg.mxu0
    %2759 = vmatpush.bf16.msra.mxu0 %v2597
    %2760 = vmatpush.bf16.msra.mxu0 %v2589
    %2761 = vmatpush.bf16.msra.mxu0 %v2581
    %2762 = vmatpush.bf16.msra.mxu0 %v2573
    %2763 = vmatpush.bf16.msra.mxu0 %v2565
    %2764 = vmatpush.bf16.msra.mxu0 %v2557
    %2765 = vmatpush.bf16.msra.mxu0 %v2549
    %2766 = vmatpush.bf16.msra.mxu0 %v2541
    %2767 = vmatmul.bf16.gmra.mxu0 %v2260
    %v2768 = vpop.f32.mrf.mxu0
    %v2769 = vadd.f32 %v2333, %v2768
    %v2770 = vpop.f32.mrf.mxu0
    %v2771 = vadd.f32 %v2333, %v2770
    %2772 = vmatmul.bf16.gmra.mxu0 %v2261
    %v2773 = vpop.f32.mrf.mxu0
    %v2774 = vadd.f32 %v2333, %v2773
    %v2775 = vpop.f32.mrf.mxu0
    %v2776 = vadd.f32 %v2333, %v2775
    %2777 = vdwg.mxu0
    %2778 = vmatpush.bf16.msra.mxu0 %v2598
    %2779 = vmatpush.bf16.msra.mxu0 %v2590
    %2780 = vmatpush.bf16.msra.mxu0 %v2582
    %2781 = vmatpush.bf16.msra.mxu0 %v2574
    %2782 = vmatpush.bf16.msra.mxu0 %v2566
    %2783 = vmatpush.bf16.msra.mxu0 %v2558
    %2784 = vmatpush.bf16.msra.mxu0 %v2550
    %2785 = vmatpush.bf16.msra.mxu0 %v2542
    %2786 = vmatmul.bf16.gmra.mxu0 %v2260
    %v2787 = vpop.f32.mrf.mxu0
    %v2788 = vadd.f32 %v2334, %v2787
    %v2789 = vpop.f32.mrf.mxu0
    %v2790 = vadd.f32 %v2334, %v2789
    %2791 = vmatmul.bf16.gmra.mxu0 %v2261
    %v2792 = vpop.f32.mrf.mxu0
    %v2793 = vadd.f32 %v2334, %v2792
    %v2794 = vpop.f32.mrf.mxu0
    %v2795 = vadd.f32 %v2334, %v2794
    %2796 = vdwg.mxu0
    %2797 = vmatpush.bf16.msra.mxu0 %v2599
    %2798 = vmatpush.bf16.msra.mxu0 %v2591
    %2799 = vmatpush.bf16.msra.mxu0 %v2583
    %2800 = vmatpush.bf16.msra.mxu0 %v2575
    %2801 = vmatpush.bf16.msra.mxu0 %v2567
    %2802 = vmatpush.bf16.msra.mxu0 %v2559
    %2803 = vmatpush.bf16.msra.mxu0 %v2551
    %2804 = vmatpush.bf16.msra.mxu0 %v2543
    %2805 = vmatmul.bf16.gmra.mxu0 %v2260
    %v2806 = vpop.f32.mrf.mxu0
    %v2807 = vadd.f32 %v2335, %v2806
    %v2808 = vpop.f32.mrf.mxu0
    %v2809 = vadd.f32 %v2335, %v2808
    %2810 = vmatmul.bf16.gmra.mxu0 %v2261
    %v2811 = vpop.f32.mrf.mxu0
    %v2812 = vadd.f32 %v2335, %v2811
    %v2813 = vpop.f32.mrf.mxu0
    %v2814 = vadd.f32 %v2335, %v2813
    %2815 = vdwg.mxu0
    %v2816 = vmul.f32 %v2750, 0.5
    %v2817 = vmul.f32 %v2769, 0.5
    %v2818 = vmul.f32 %v2788, 0.5
    %v2819 = vmul.f32 %v2807, 0.5
    %v2820 = vmul.f32 %v2752, 0.5
    %v2821 = vmul.f32 %v2771, 0.5
    %v2822 = vmul.f32 %v2790, 0.5
    %v2823 = vmul.f32 %v2809, 0.5
    %v2824 = vmul.f32 %v2755, 0.5
    %v2825 = vmul.f32 %v2774, 0.5
    %v2826 = vmul.f32 %v2793, 0.5
    %v2827 = vmul.f32 %v2812, 0.5
    %v2828 = vmul.f32 %v2757, 0.5
    %v2829 = vmul.f32 %v2776, 0.5
    %v2830 = vmul.f32 %v2795, 0.5
    %v2831 = vmul.f32 %v2814, 0.5
    %v2832 = vmul.f32 %v2750, 0.70710677
    %v2833 = vmul.f32 %v2769, 0.70710677
    %v2834 = vmul.f32 %v2788, 0.70710677
    %v2835 = vmul.f32 %v2807, 0.70710677
    %v2836 = vmul.f32 %v2752, 0.70710677
    %v2837 = vmul.f32 %v2771, 0.70710677
    %v2838 = vmul.f32 %v2790, 0.70710677
    %v2839 = vmul.f32 %v2809, 0.70710677
    %v2840 = vmul.f32 %v2755, 0.70710677
    %v2841 = vmul.f32 %v2774, 0.70710677
    %v2842 = vmul.f32 %v2793, 0.70710677
    %v2843 = vmul.f32 %v2812, 0.70710677
    %v2844 = vmul.f32 %v2757, 0.70710677
    %v2845 = vmul.f32 %v2776, 0.70710677
    %v2846 = vmul.f32 %v2795, 0.70710677
    %v2847 = vmul.f32 %v2814, 0.70710677
    %v2848 = vmul.f32 %v2832, %v2832
    %v2849 = vmin.f32 16.0, %v2848
    %v2850 = vmul.f32 %v2849, 2.1237322e-06
    %v2851 = vadd.f32 %v2850, 0.00028619796
    %v2852 = vmul.f32 %v2849, %v2851
    %v2853 = vadd.f32 %v2852, 0.0036580483
    %v2854 = vmul.f32 %v2849, %v2853
    %v2855 = vadd.f32 %v2854, 0.05243302
    %v2856 = vmul.f32 %v2849, %v2855
    %v2857 = vadd.f32 %v2856, 0.18741608
    %v2858 = vmul.f32 %v2849, %v2857
    %v2859 = vadd.f32 %v2858, 1.1283791
    %v2860 = vmul.f32 %v2832, %v2859
    %v2861 = vmul.f32 %v2849, 3.8918573e-05
    %v2862 = vadd.f32 %v2861, 0.001143296
    %v2863 = vmul.f32 %v2849, %v2862
    %v2864 = vadd.f32 %v2863, 0.014752088
    %v2865 = vmul.f32 %v2849, %v2864
    %v2866 = vadd.f32 %v2865, 0.112945676
    %v2867 = vmul.f32 %v2849, %v2866
    %v2868 = vadd.f32 %v2867, 0.4994258
    %v2869 = vmul.f32 %v2849, %v2868
    %v2870 = vadd.f32 %v2869, 1.0
    %v2871 = vrcp.pop %v2870
    %v2872 = vmul.f32 %v2870, %v2871
    %v2873 = vsub.f32 1.0, %v2872
    %v2874 = vmul.f32 %v2871, %v2873
    %v2875 = vadd.f32 %v2871, %v2874
    %vm2876 = vweird.f32 %v2870
    %vm2877 = vweird.f32 %v2871
    %vm2878 = vmor %vm2876, %vm2877
    %v2879 = vsel %vm2878, %v2871, %v2875
    %v2880 = vand.u32 2147483647, %v2870
    %vm2881 = vcmp.eq.f32.partialorder %v2880, 8.507059e+37
    %v2882 = vand.u32 %v2870, 2147483648
    %v2883 = vor.u32 1.1754944e-38, %v2882
    %v2884 = vsel %vm2881, %v2883, %v2879
    %v2885 = vmul.f32 %v2860, %v2884
    %v2886 = vmin.f32 %v2885, 1.0
    %v2887 = vmax.f32 %v2886, -1.0
    %v2888 = vmul.f32 %v2833, %v2833
    %v2889 = vmin.f32 16.0, %v2888
    %v2890 = vmul.f32 %v2889, 2.1237322e-06
    %v2891 = vadd.f32 %v2890, 0.00028619796
    %v2892 = vmul.f32 %v2889, %v2891
    %v2893 = vadd.f32 %v2892, 0.0036580483
    %v2894 = vmul.f32 %v2889, %v2893
    %v2895 = vadd.f32 %v2894, 0.05243302
    %v2896 = vmul.f32 %v2889, %v2895
    %v2897 = vadd.f32 %v2896, 0.18741608
    %v2898 = vmul.f32 %v2889, %v2897
    %v2899 = vadd.f32 %v2898, 1.1283791
    %v2900 = vmul.f32 %v2833, %v2899
    %v2901 = vmul.f32 %v2889, 3.8918573e-05
    %v2902 = vadd.f32 %v2901, 0.001143296
    %v2903 = vmul.f32 %v2889, %v2902
    %v2904 = vadd.f32 %v2903, 0.014752088
    %v2905 = vmul.f32 %v2889, %v2904
    %v2906 = vadd.f32 %v2905, 0.112945676
    %v2907 = vmul.f32 %v2889, %v2906
    %v2908 = vadd.f32 %v2907, 0.4994258
    %v2909 = vmul.f32 %v2889, %v2908
    %v2910 = vadd.f32 %v2909, 1.0
    %v2911 = vrcp.pop %v2910
    %v2912 = vmul.f32 %v2910, %v2911
    %v2913 = vsub.f32 1.0, %v2912
    %v2914 = vmul.f32 %v2911, %v2913
    %v2915 = vadd.f32 %v2911, %v2914
    %vm2916 = vweird.f32 %v2910
    %vm2917 = vweird.f32 %v2911
    %vm2918 = vmor %vm2916, %vm2917
    %v2919 = vsel %vm2918, %v2911, %v2915
    %v2920 = vand.u32 2147483647, %v2910
    %vm2921 = vcmp.eq.f32.partialorder %v2920, 8.507059e+37
    %v2922 = vand.u32 %v2910, 2147483648
    %v2923 = vor.u32 1.1754944e-38, %v2922
    %v2924 = vsel %vm2921, %v2923, %v2919
    %v2925 = vmul.f32 %v2900, %v2924
    %v2926 = vmin.f32 %v2925, 1.0
    %v2927 = vmax.f32 %v2926, -1.0
    %v2928 = vmul.f32 %v2834, %v2834
    %v2929 = vmin.f32 16.0, %v2928
    %v2930 = vmul.f32 %v2929, 2.1237322e-06
    %v2931 = vadd.f32 %v2930, 0.00028619796
    %v2932 = vmul.f32 %v2929, %v2931
    %v2933 = vadd.f32 %v2932, 0.0036580483
    %v2934 = vmul.f32 %v2929, %v2933
    %v2935 = vadd.f32 %v2934, 0.05243302
    %v2936 = vmul.f32 %v2929, %v2935
    %v2937 = vadd.f32 %v2936, 0.18741608
    %v2938 = vmul.f32 %v2929, %v2937
    %v2939 = vadd.f32 %v2938, 1.1283791
    %v2940 = vmul.f32 %v2834, %v2939
    %v2941 = vmul.f32 %v2929, 3.8918573e-05
    %v2942 = vadd.f32 %v2941, 0.001143296
    %v2943 = vmul.f32 %v2929, %v2942
    %v2944 = vadd.f32 %v2943, 0.014752088
    %v2945 = vmul.f32 %v2929, %v2944
    %v2946 = vadd.f32 %v2945, 0.112945676
    %v2947 = vmul.f32 %v2929, %v2946
    %v2948 = vadd.f32 %v2947, 0.4994258
    %v2949 = vmul.f32 %v2929, %v2948
    %v2950 = vadd.f32 %v2949, 1.0
    %v2951 = vrcp.pop %v2950
    %v2952 = vmul.f32 %v2950, %v2951
    %v2953 = vsub.f32 1.0, %v2952
    %v2954 = vmul.f32 %v2951, %v2953
    %v2955 = vadd.f32 %v2951, %v2954
    %vm2956 = vweird.f32 %v2950
    %vm2957 = vweird.f32 %v2951
    %vm2958 = vmor %vm2956, %vm2957
    %v2959 = vsel %vm2958, %v2951, %v2955
    %v2960 = vand.u32 2147483647, %v2950
    %vm2961 = vcmp.eq.f32.partialorder %v2960, 8.507059e+37
    %v2962 = vand.u32 %v2950, 2147483648
    %v2963 = vor.u32 1.1754944e-38, %v2962
    %v2964 = vsel %vm2961, %v2963, %v2959
    %v2965 = vmul.f32 %v2940, %v2964
    %v2966 = vmin.f32 %v2965, 1.0
    %v2967 = vmax.f32 %v2966, -1.0
    %v2968 = vmul.f32 %v2835, %v2835
    %v2969 = vmin.f32 16.0, %v2968
    %v2970 = vmul.f32 %v2969, 2.1237322e-06
    %v2971 = vadd.f32 %v2970, 0.00028619796
    %v2972 = vmul.f32 %v2969, %v2971
    %v2973 = vadd.f32 %v2972, 0.0036580483
    %v2974 = vmul.f32 %v2969, %v2973
    %v2975 = vadd.f32 %v2974, 0.05243302
    %v2976 = vmul.f32 %v2969, %v2975
    %v2977 = vadd.f32 %v2976, 0.18741608
    %v2978 = vmul.f32 %v2969, %v2977
    %v2979 = vadd.f32 %v2978, 1.1283791
    %v2980 = vmul.f32 %v2835, %v2979
    %v2981 = vmul.f32 %v2969, 3.8918573e-05
    %v2982 = vadd.f32 %v2981, 0.001143296
    %v2983 = vmul.f32 %v2969, %v2982
    %v2984 = vadd.f32 %v2983, 0.014752088
    %v2985 = vmul.f32 %v2969, %v2984
    %v2986 = vadd.f32 %v2985, 0.112945676
    %v2987 = vmul.f32 %v2969, %v2986
    %v2988 = vadd.f32 %v2987, 0.4994258
    %v2989 = vmul.f32 %v2969, %v2988
    %v2990 = vadd.f32 %v2989, 1.0
    %v2991 = vrcp.pop %v2990
    %v2992 = vmul.f32 %v2990, %v2991
    %v2993 = vsub.f32 1.0, %v2992
    %v2994 = vmul.f32 %v2991, %v2993
    %v2995 = vadd.f32 %v2991, %v2994
    %vm2996 = vweird.f32 %v2990
    %vm2997 = vweird.f32 %v2991
    %vm2998 = vmor %vm2996, %vm2997
    %v2999 = vsel %vm2998, %v2991, %v2995
    %v3000 = vand.u32 2147483647, %v2990
    %vm3001 = vcmp.eq.f32.partialorder %v3000, 8.507059e+37
    %v3002 = vand.u32 %v2990, 2147483648
    %v3003 = vor.u32 1.1754944e-38, %v3002
    %v3004 = vsel %vm3001, %v3003, %v2999
    %v3005 = vmul.f32 %v2980, %v3004
    %v3006 = vmin.f32 %v3005, 1.0
    %v3007 = vmax.f32 %v3006, -1.0
    %v3008 = vmul.f32 %v2836, %v2836
    %v3009 = vmin.f32 16.0, %v3008
    %v3010 = vmul.f32 %v3009, 2.1237322e-06
    %v3011 = vadd.f32 %v3010, 0.00028619796
    %v3012 = vmul.f32 %v3009, %v3011
    %v3013 = vadd.f32 %v3012, 0.0036580483
    %v3014 = vmul.f32 %v3009, %v3013
    %v3015 = vadd.f32 %v3014, 0.05243302
    %v3016 = vmul.f32 %v3009, %v3015
    %v3017 = vadd.f32 %v3016, 0.18741608
    %v3018 = vmul.f32 %v3009, %v3017
    %v3019 = vadd.f32 %v3018, 1.1283791
    %v3020 = vmul.f32 %v2836, %v3019
    %v3021 = vmul.f32 %v3009, 3.8918573e-05
    %v3022 = vadd.f32 %v3021, 0.001143296
    %v3023 = vmul.f32 %v3009, %v3022
    %v3024 = vadd.f32 %v3023, 0.014752088
    %v3025 = vmul.f32 %v3009, %v3024
    %v3026 = vadd.f32 %v3025, 0.112945676
    %v3027 = vmul.f32 %v3009, %v3026
    %v3028 = vadd.f32 %v3027, 0.4994258
    %v3029 = vmul.f32 %v3009, %v3028
    %v3030 = vadd.f32 %v3029, 1.0
    %v3031 = vrcp.pop %v3030
    %v3032 = vmul.f32 %v3030, %v3031
    %v3033 = vsub.f32 1.0, %v3032
    %v3034 = vmul.f32 %v3031, %v3033
    %v3035 = vadd.f32 %v3031, %v3034
    %vm3036 = vweird.f32 %v3030
    %vm3037 = vweird.f32 %v3031
    %vm3038 = vmor %vm3036, %vm3037
    %v3039 = vsel %vm3038, %v3031, %v3035
    %v3040 = vand.u32 2147483647, %v3030
    %vm3041 = vcmp.eq.f32.partialorder %v3040, 8.507059e+37
    %v3042 = vand.u32 %v3030, 2147483648
    %v3043 = vor.u32 1.1754944e-38, %v3042
    %v3044 = vsel %vm3041, %v3043, %v3039
    %v3045 = vmul.f32 %v3020, %v3044
    %v3046 = vmin.f32 %v3045, 1.0
    %v3047 = vmax.f32 %v3046, -1.0
    %v3048 = vmul.f32 %v2837, %v2837
    %v3049 = vmin.f32 16.0, %v3048
    %v3050 = vmul.f32 %v3049, 2.1237322e-06
    %v3051 = vadd.f32 %v3050, 0.00028619796
    %v3052 = vmul.f32 %v3049, %v3051
    %v3053 = vadd.f32 %v3052, 0.0036580483
    %v3054 = vmul.f32 %v3049, %v3053
    %v3055 = vadd.f32 %v3054, 0.05243302
    %v3056 = vmul.f32 %v3049, %v3055
    %v3057 = vadd.f32 %v3056, 0.18741608
    %v3058 = vmul.f32 %v3049, %v3057
    %v3059 = vadd.f32 %v3058, 1.1283791
    %v3060 = vmul.f32 %v2837, %v3059
    %v3061 = vmul.f32 %v3049, 3.8918573e-05
    %v3062 = vadd.f32 %v3061, 0.001143296
    %v3063 = vmul.f32 %v3049, %v3062
    %v3064 = vadd.f32 %v3063, 0.014752088
    %v3065 = vmul.f32 %v3049, %v3064
    %v3066 = vadd.f32 %v3065, 0.112945676
    %v3067 = vmul.f32 %v3049, %v3066
    %v3068 = vadd.f32 %v3067, 0.4994258
    %v3069 = vmul.f32 %v3049, %v3068
    %v3070 = vadd.f32 %v3069, 1.0
    %v3071 = vrcp.pop %v3070
    %v3072 = vmul.f32 %v3070, %v3071
    %v3073 = vsub.f32 1.0, %v3072
    %v3074 = vmul.f32 %v3071, %v3073
    %v3075 = vadd.f32 %v3071, %v3074
    %vm3076 = vweird.f32 %v3070
    %vm3077 = vweird.f32 %v3071
    %vm3078 = vmor %vm3076, %vm3077
    %v3079 = vsel %vm3078, %v3071, %v3075
    %v3080 = vand.u32 2147483647, %v3070
    %vm3081 = vcmp.eq.f32.partialorder %v3080, 8.507059e+37
    %v3082 = vand.u32 %v3070, 2147483648
    %v3083 = vor.u32 1.1754944e-38, %v3082
    %v3084 = vsel %vm3081, %v3083, %v3079
    %v3085 = vmul.f32 %v3060, %v3084
    %v3086 = vmin.f32 %v3085, 1.0
    %v3087 = vmax.f32 %v3086, -1.0
    %v3088 = vmul.f32 %v2838, %v2838
    %v3089 = vmin.f32 16.0, %v3088
    %v3090 = vmul.f32 %v3089, 2.1237322e-06
    %v3091 = vadd.f32 %v3090, 0.00028619796
    %v3092 = vmul.f32 %v3089, %v3091
    %v3093 = vadd.f32 %v3092, 0.0036580483
    %v3094 = vmul.f32 %v3089, %v3093
    %v3095 = vadd.f32 %v3094, 0.05243302
    %v3096 = vmul.f32 %v3089, %v3095
    %v3097 = vadd.f32 %v3096, 0.18741608
    %v3098 = vmul.f32 %v3089, %v3097
    %v3099 = vadd.f32 %v3098, 1.1283791
    %v3100 = vmul.f32 %v2838, %v3099
    %v3101 = vmul.f32 %v3089, 3.8918573e-05
    %v3102 = vadd.f32 %v3101, 0.001143296
    %v3103 = vmul.f32 %v3089, %v3102
    %v3104 = vadd.f32 %v3103, 0.014752088
    %v3105 = vmul.f32 %v3089, %v3104
    %v3106 = vadd.f32 %v3105, 0.112945676
    %v3107 = vmul.f32 %v3089, %v3106
    %v3108 = vadd.f32 %v3107, 0.4994258
    %v3109 = vmul.f32 %v3089, %v3108
    %v3110 = vadd.f32 %v3109, 1.0
    %v3111 = vrcp.pop %v3110
    %v3112 = vmul.f32 %v3110, %v3111
    %v3113 = vsub.f32 1.0, %v3112
    %v3114 = vmul.f32 %v3111, %v3113
    %v3115 = vadd.f32 %v3111, %v3114
    %vm3116 = vweird.f32 %v3110
    %vm3117 = vweird.f32 %v3111
    %vm3118 = vmor %vm3116, %vm3117
    %v3119 = vsel %vm3118, %v3111, %v3115
    %v3120 = vand.u32 2147483647, %v3110
    %vm3121 = vcmp.eq.f32.partialorder %v3120, 8.507059e+37
    %v3122 = vand.u32 %v3110, 2147483648
    %v3123 = vor.u32 1.1754944e-38, %v3122
    %v3124 = vsel %vm3121, %v3123, %v3119
    %v3125 = vmul.f32 %v3100, %v3124
    %v3126 = vmin.f32 %v3125, 1.0
    %v3127 = vmax.f32 %v3126, -1.0
    %v3128 = vmul.f32 %v2839, %v2839
    %v3129 = vmin.f32 16.0, %v3128
    %v3130 = vmul.f32 %v3129, 2.1237322e-06
    %v3131 = vadd.f32 %v3130, 0.00028619796
    %v3132 = vmul.f32 %v3129, %v3131
    %v3133 = vadd.f32 %v3132, 0.0036580483
    %v3134 = vmul.f32 %v3129, %v3133
    %v3135 = vadd.f32 %v3134, 0.05243302
    %v3136 = vmul.f32 %v3129, %v3135
    %v3137 = vadd.f32 %v3136, 0.18741608
    %v3138 = vmul.f32 %v3129, %v3137
    %v3139 = vadd.f32 %v3138, 1.1283791
    %v3140 = vmul.f32 %v2839, %v3139
    %v3141 = vmul.f32 %v3129, 3.8918573e-05
    %v3142 = vadd.f32 %v3141, 0.001143296
    %v3143 = vmul.f32 %v3129, %v3142
    %v3144 = vadd.f32 %v3143, 0.014752088
    %v3145 = vmul.f32 %v3129, %v3144
    %v3146 = vadd.f32 %v3145, 0.112945676
    %v3147 = vmul.f32 %v3129, %v3146
    %v3148 = vadd.f32 %v3147, 0.4994258
    %v3149 = vmul.f32 %v3129, %v3148
    %v3150 = vadd.f32 %v3149, 1.0
    %v3151 = vrcp.pop %v3150
    %v3152 = vmul.f32 %v3150, %v3151
    %v3153 = vsub.f32 1.0, %v3152
    %v3154 = vmul.f32 %v3151, %v3153
    %v3155 = vadd.f32 %v3151, %v3154
    %vm3156 = vweird.f32 %v3150
    %vm3157 = vweird.f32 %v3151
    %vm3158 = vmor %vm3156, %vm3157
    %v3159 = vsel %vm3158, %v3151, %v3155
    %v3160 = vand.u32 2147483647, %v3150
    %vm3161 = vcmp.eq.f32.partialorder %v3160, 8.507059e+37
    %v3162 = vand.u32 %v3150, 2147483648
    %v3163 = vor.u32 1.1754944e-38, %v3162
    %v3164 = vsel %vm3161, %v3163, %v3159
    %v3165 = vmul.f32 %v3140, %v3164
    %v3166 = vmin.f32 %v3165, 1.0
    %v3167 = vmax.f32 %v3166, -1.0
    %v3168 = vmul.f32 %v2840, %v2840
    %v3169 = vmin.f32 16.0, %v3168
    %v3170 = vmul.f32 %v3169, 2.1237322e-06
    %v3171 = vadd.f32 %v3170, 0.00028619796
    %v3172 = vmul.f32 %v3169, %v3171
    %v3173 = vadd.f32 %v3172, 0.0036580483
    %v3174 = vmul.f32 %v3169, %v3173
    %v3175 = vadd.f32 %v3174, 0.05243302
    %v3176 = vmul.f32 %v3169, %v3175
    %v3177 = vadd.f32 %v3176, 0.18741608
    %v3178 = vmul.f32 %v3169, %v3177
    %v3179 = vadd.f32 %v3178, 1.1283791
    %v3180 = vmul.f32 %v2840, %v3179
    %v3181 = vmul.f32 %v3169, 3.8918573e-05
    %v3182 = vadd.f32 %v3181, 0.001143296
    %v3183 = vmul.f32 %v3169, %v3182
    %v3184 = vadd.f32 %v3183, 0.014752088
    %v3185 = vmul.f32 %v3169, %v3184
    %v3186 = vadd.f32 %v3185, 0.112945676
    %v3187 = vmul.f32 %v3169, %v3186
    %v3188 = vadd.f32 %v3187, 0.4994258
    %v3189 = vmul.f32 %v3169, %v3188
    %v3190 = vadd.f32 %v3189, 1.0
    %v3191 = vrcp.pop %v3190
    %v3192 = vmul.f32 %v3190, %v3191
    %v3193 = vsub.f32 1.0, %v3192
    %v3194 = vmul.f32 %v3191, %v3193
    %v3195 = vadd.f32 %v3191, %v3194
    %vm3196 = vweird.f32 %v3190
    %vm3197 = vweird.f32 %v3191
    %vm3198 = vmor %vm3196, %vm3197
    %v3199 = vsel %vm3198, %v3191, %v3195
    %v3200 = vand.u32 2147483647, %v3190
    %vm3201 = vcmp.eq.f32.partialorder %v3200, 8.507059e+37
    %v3202 = vand.u32 %v3190, 2147483648
    %v3203 = vor.u32 1.1754944e-38, %v3202
    %v3204 = vsel %vm3201, %v3203, %v3199
    %v3205 = vmul.f32 %v3180, %v3204
    %v3206 = vmin.f32 %v3205, 1.0
    %v3207 = vmax.f32 %v3206, -1.0
    %v3208 = vmul.f32 %v2841, %v2841
    %v3209 = vmin.f32 16.0, %v3208
    %v3210 = vmul.f32 %v3209, 2.1237322e-06
    %v3211 = vadd.f32 %v3210, 0.00028619796
    %v3212 = vmul.f32 %v3209, %v3211
    %v3213 = vadd.f32 %v3212, 0.0036580483
    %v3214 = vmul.f32 %v3209, %v3213
    %v3215 = vadd.f32 %v3214, 0.05243302
    %v3216 = vmul.f32 %v3209, %v3215
    %v3217 = vadd.f32 %v3216, 0.18741608
    %v3218 = vmul.f32 %v3209, %v3217
    %v3219 = vadd.f32 %v3218, 1.1283791
    %v3220 = vmul.f32 %v2841, %v3219
    %v3221 = vmul.f32 %v3209, 3.8918573e-05
    %v3222 = vadd.f32 %v3221, 0.001143296
    %v3223 = vmul.f32 %v3209, %v3222
    %v3224 = vadd.f32 %v3223, 0.014752088
    %v3225 = vmul.f32 %v3209, %v3224
    %v3226 = vadd.f32 %v3225, 0.112945676
    %v3227 = vmul.f32 %v3209, %v3226
    %v3228 = vadd.f32 %v3227, 0.4994258
    %v3229 = vmul.f32 %v3209, %v3228
    %v3230 = vadd.f32 %v3229, 1.0
    %v3231 = vrcp.pop %v3230
    %v3232 = vmul.f32 %v3230, %v3231
    %v3233 = vsub.f32 1.0, %v3232
    %v3234 = vmul.f32 %v3231, %v3233
    %v3235 = vadd.f32 %v3231, %v3234
    %vm3236 = vweird.f32 %v3230
    %vm3237 = vweird.f32 %v3231
    %vm3238 = vmor %vm3236, %vm3237
    %v3239 = vsel %vm3238, %v3231, %v3235
    %v3240 = vand.u32 2147483647, %v3230
    %vm3241 = vcmp.eq.f32.partialorder %v3240, 8.507059e+37
    %v3242 = vand.u32 %v3230, 2147483648
    %v3243 = vor.u32 1.1754944e-38, %v3242
    %v3244 = vsel %vm3241, %v3243, %v3239
    %v3245 = vmul.f32 %v3220, %v3244
    %v3246 = vmin.f32 %v3245, 1.0
    %v3247 = vmax.f32 %v3246, -1.0
    %v3248 = vmul.f32 %v2842, %v2842
    %v3249 = vmin.f32 16.0, %v3248
    %v3250 = vmul.f32 %v3249, 2.1237322e-06
    %v3251 = vadd.f32 %v3250, 0.00028619796
    %v3252 = vmul.f32 %v3249, %v3251
    %v3253 = vadd.f32 %v3252, 0.0036580483
    %v3254 = vmul.f32 %v3249, %v3253
    %v3255 = vadd.f32 %v3254, 0.05243302
    %v3256 = vmul.f32 %v3249, %v3255
    %v3257 = vadd.f32 %v3256, 0.18741608
    %v3258 = vmul.f32 %v3249, %v3257
    %v3259 = vadd.f32 %v3258, 1.1283791
    %v3260 = vmul.f32 %v2842, %v3259
    %v3261 = vmul.f32 %v3249, 3.8918573e-05
    %v3262 = vadd.f32 %v3261, 0.001143296
    %v3263 = vmul.f32 %v3249, %v3262
    %v3264 = vadd.f32 %v3263, 0.014752088
    %v3265 = vmul.f32 %v3249, %v3264
    %v3266 = vadd.f32 %v3265, 0.112945676
    %v3267 = vmul.f32 %v3249, %v3266
    %v3268 = vadd.f32 %v3267, 0.4994258
    %v3269 = vmul.f32 %v3249, %v3268
    %v3270 = vadd.f32 %v3269, 1.0
    %v3271 = vrcp.pop %v3270
    %v3272 = vmul.f32 %v3270, %v3271
    %v3273 = vsub.f32 1.0, %v3272
    %v3274 = vmul.f32 %v3271, %v3273
    %v3275 = vadd.f32 %v3271, %v3274
    %vm3276 = vweird.f32 %v3270
    %vm3277 = vweird.f32 %v3271
    %vm3278 = vmor %vm3276, %vm3277
    %v3279 = vsel %vm3278, %v3271, %v3275
    %v3280 = vand.u32 2147483647, %v3270
    %vm3281 = vcmp.eq.f32.partialorder %v3280, 8.507059e+37
    %v3282 = vand.u32 %v3270, 2147483648
    %v3283 = vor.u32 1.1754944e-38, %v3282
    %v3284 = vsel %vm3281, %v3283, %v3279
    %v3285 = vmul.f32 %v3260, %v3284
    %v3286 = vmin.f32 %v3285, 1.0
    %v3287 = vmax.f32 %v3286, -1.0
    %v3288 = vmul.f32 %v2843, %v2843
    %v3289 = vmin.f32 16.0, %v3288
    %v3290 = vmul.f32 %v3289, 2.1237322e-06
    %v3291 = vadd.f32 %v3290, 0.00028619796
    %v3292 = vmul.f32 %v3289, %v3291
    %v3293 = vadd.f32 %v3292, 0.0036580483
    %v3294 = vmul.f32 %v3289, %v3293
    %v3295 = vadd.f32 %v3294, 0.05243302
    %v3296 = vmul.f32 %v3289, %v3295
    %v3297 = vadd.f32 %v3296, 0.18741608
    %v3298 = vmul.f32 %v3289, %v3297
    %v3299 = vadd.f32 %v3298, 1.1283791
    %v3300 = vmul.f32 %v2843, %v3299
    %v3301 = vmul.f32 %v3289, 3.8918573e-05
    %v3302 = vadd.f32 %v3301, 0.001143296
    %v3303 = vmul.f32 %v3289, %v3302
    %v3304 = vadd.f32 %v3303, 0.014752088
    %v3305 = vmul.f32 %v3289, %v3304
    %v3306 = vadd.f32 %v3305, 0.112945676
    %v3307 = vmul.f32 %v3289, %v3306
    %v3308 = vadd.f32 %v3307, 0.4994258
    %v3309 = vmul.f32 %v3289, %v3308
    %v3310 = vadd.f32 %v3309, 1.0
    %v3311 = vrcp.pop %v3310
    %v3312 = vmul.f32 %v3310, %v3311
    %v3313 = vsub.f32 1.0, %v3312
    %v3314 = vmul.f32 %v3311, %v3313
    %v3315 = vadd.f32 %v3311, %v3314
    %vm3316 = vweird.f32 %v3310
    %vm3317 = vweird.f32 %v3311
    %vm3318 = vmor %vm3316, %vm3317
    %v3319 = vsel %vm3318, %v3311, %v3315
    %v3320 = vand.u32 2147483647, %v3310
    %vm3321 = vcmp.eq.f32.partialorder %v3320, 8.507059e+37
    %v3322 = vand.u32 %v3310, 2147483648
    %v3323 = vor.u32 1.1754944e-38, %v3322
    %v3324 = vsel %vm3321, %v3323, %v3319
    %v3325 = vmul.f32 %v3300, %v3324
    %v3326 = vmin.f32 %v3325, 1.0
    %v3327 = vmax.f32 %v3326, -1.0
    %v3328 = vmul.f32 %v2844, %v2844
    %v3329 = vmin.f32 16.0, %v3328
    %v3330 = vmul.f32 %v3329, 2.1237322e-06
    %v3331 = vadd.f32 %v3330, 0.00028619796
    %v3332 = vmul.f32 %v3329, %v3331
    %v3333 = vadd.f32 %v3332, 0.0036580483
    %v3334 = vmul.f32 %v3329, %v3333
    %v3335 = vadd.f32 %v3334, 0.05243302
    %v3336 = vmul.f32 %v3329, %v3335
    %v3337 = vadd.f32 %v3336, 0.18741608
    %v3338 = vmul.f32 %v3329, %v3337
    %v3339 = vadd.f32 %v3338, 1.1283791
    %v3340 = vmul.f32 %v2844, %v3339
    %v3341 = vmul.f32 %v3329, 3.8918573e-05
    %v3342 = vadd.f32 %v3341, 0.001143296
    %v3343 = vmul.f32 %v3329, %v3342
    %v3344 = vadd.f32 %v3343, 0.014752088
    %v3345 = vmul.f32 %v3329, %v3344
    %v3346 = vadd.f32 %v3345, 0.112945676
    %v3347 = vmul.f32 %v3329, %v3346
    %v3348 = vadd.f32 %v3347, 0.4994258
    %v3349 = vmul.f32 %v3329, %v3348
    %v3350 = vadd.f32 %v3349, 1.0
    %v3351 = vrcp.pop %v3350
    %v3352 = vmul.f32 %v3350, %v3351
    %v3353 = vsub.f32 1.0, %v3352
    %v3354 = vmul.f32 %v3351, %v3353
    %v3355 = vadd.f32 %v3351, %v3354
    %vm3356 = vweird.f32 %v3350
    %vm3357 = vweird.f32 %v3351
    %vm3358 = vmor %vm3356, %vm3357
    %v3359 = vsel %vm3358, %v3351, %v3355
    %v3360 = vand.u32 2147483647, %v3350
    %vm3361 = vcmp.eq.f32.partialorder %v3360, 8.507059e+37
    %v3362 = vand.u32 %v3350, 2147483648
    %v3363 = vor.u32 1.1754944e-38, %v3362
    %v3364 = vsel %vm3361, %v3363, %v3359
    %v3365 = vmul.f32 %v3340, %v3364
    %v3366 = vmin.f32 %v3365, 1.0
    %v3367 = vmax.f32 %v3366, -1.0
    %v3368 = vmul.f32 %v2845, %v2845
    %v3369 = vmin.f32 16.0, %v3368
    %v3370 = vmul.f32 %v3369, 2.1237322e-06
    %v3371 = vadd.f32 %v3370, 0.00028619796
    %v3372 = vmul.f32 %v3369, %v3371
    %v3373 = vadd.f32 %v3372, 0.0036580483
    %v3374 = vmul.f32 %v3369, %v3373
    %v3375 = vadd.f32 %v3374, 0.05243302
    %v3376 = vmul.f32 %v3369, %v3375
    %v3377 = vadd.f32 %v3376, 0.18741608
    %v3378 = vmul.f32 %v3369, %v3377
    %v3379 = vadd.f32 %v3378, 1.1283791
    %v3380 = vmul.f32 %v2845, %v3379
    %v3381 = vmul.f32 %v3369, 3.8918573e-05
    %v3382 = vadd.f32 %v3381, 0.001143296
    %v3383 = vmul.f32 %v3369, %v3382
    %v3384 = vadd.f32 %v3383, 0.014752088
    %v3385 = vmul.f32 %v3369, %v3384
    %v3386 = vadd.f32 %v3385, 0.112945676
    %v3387 = vmul.f32 %v3369, %v3386
    %v3388 = vadd.f32 %v3387, 0.4994258
    %v3389 = vmul.f32 %v3369, %v3388
    %v3390 = vadd.f32 %v3389, 1.0
    %v3391 = vrcp.pop %v3390
    %v3392 = vmul.f32 %v3390, %v3391
    %v3393 = vsub.f32 1.0, %v3392
    %v3394 = vmul.f32 %v3391, %v3393
    %v3395 = vadd.f32 %v3391, %v3394
    %vm3396 = vweird.f32 %v3390
    %vm3397 = vweird.f32 %v3391
    %vm3398 = vmor %vm3396, %vm3397
    %v3399 = vsel %vm3398, %v3391, %v3395
    %v3400 = vand.u32 2147483647, %v3390
    %vm3401 = vcmp.eq.f32.partialorder %v3400, 8.507059e+37
    %v3402 = vand.u32 %v3390, 2147483648
    %v3403 = vor.u32 1.1754944e-38, %v3402
    %v3404 = vsel %vm3401, %v3403, %v3399
    %v3405 = vmul.f32 %v3380, %v3404
    %v3406 = vmin.f32 %v3405, 1.0
    %v3407 = vmax.f32 %v3406, -1.0
    %v3408 = vmul.f32 %v2846, %v2846
    %v3409 = vmin.f32 16.0, %v3408
    %v3410 = vmul.f32 %v3409, 2.1237322e-06
    %v3411 = vadd.f32 %v3410, 0.00028619796
    %v3412 = vmul.f32 %v3409, %v3411
    %v3413 = vadd.f32 %v3412, 0.0036580483
    %v3414 = vmul.f32 %v3409, %v3413
    %v3415 = vadd.f32 %v3414, 0.05243302
    %v3416 = vmul.f32 %v3409, %v3415
    %v3417 = vadd.f32 %v3416, 0.18741608
    %v3418 = vmul.f32 %v3409, %v3417
    %v3419 = vadd.f32 %v3418, 1.1283791
    %v3420 = vmul.f32 %v2846, %v3419
    %v3421 = vmul.f32 %v3409, 3.8918573e-05
    %v3422 = vadd.f32 %v3421, 0.001143296
    %v3423 = vmul.f32 %v3409, %v3422
    %v3424 = vadd.f32 %v3423, 0.014752088
    %v3425 = vmul.f32 %v3409, %v3424
    %v3426 = vadd.f32 %v3425, 0.112945676
    %v3427 = vmul.f32 %v3409, %v3426
    %v3428 = vadd.f32 %v3427, 0.4994258
    %v3429 = vmul.f32 %v3409, %v3428
    %v3430 = vadd.f32 %v3429, 1.0
    %v3431 = vrcp.pop %v3430
    %v3432 = vmul.f32 %v3430, %v3431
    %v3433 = vsub.f32 1.0, %v3432
    %v3434 = vmul.f32 %v3431, %v3433
    %v3435 = vadd.f32 %v3431, %v3434
    %vm3436 = vweird.f32 %v3430
    %vm3437 = vweird.f32 %v3431
    %vm3438 = vmor %vm3436, %vm3437
    %v3439 = vsel %vm3438, %v3431, %v3435
    %v3440 = vand.u32 2147483647, %v3430
    %vm3441 = vcmp.eq.f32.partialorder %v3440, 8.507059e+37
    %v3442 = vand.u32 %v3430, 2147483648
    %v3443 = vor.u32 1.1754944e-38, %v3442
    %v3444 = vsel %vm3441, %v3443, %v3439
    %v3445 = vmul.f32 %v3420, %v3444
    %v3446 = vmin.f32 %v3445, 1.0
    %v3447 = vmax.f32 %v3446, -1.0
    %v3448 = vmul.f32 %v2847, %v2847
    %v3449 = vmin.f32 16.0, %v3448
    %v3450 = vmul.f32 %v3449, 2.1237322e-06
    %v3451 = vadd.f32 %v3450, 0.00028619796
    %v3452 = vmul.f32 %v3449, %v3451
    %v3453 = vadd.f32 %v3452, 0.0036580483
    %v3454 = vmul.f32 %v3449, %v3453
    %v3455 = vadd.f32 %v3454, 0.05243302
    %v3456 = vmul.f32 %v3449, %v3455
    %v3457 = vadd.f32 %v3456, 0.18741608
    %v3458 = vmul.f32 %v3449, %v3457
    %v3459 = vadd.f32 %v3458, 1.1283791
    %v3460 = vmul.f32 %v2847, %v3459
    %v3461 = vmul.f32 %v3449, 3.8918573e-05
    %v3462 = vadd.f32 %v3461, 0.001143296
    %v3463 = vmul.f32 %v3449, %v3462
    %v3464 = vadd.f32 %v3463, 0.014752088
    %v3465 = vmul.f32 %v3449, %v3464
    %v3466 = vadd.f32 %v3465, 0.112945676
    %v3467 = vmul.f32 %v3449, %v3466
    %v3468 = vadd.f32 %v3467, 0.4994258
    %v3469 = vmul.f32 %v3449, %v3468
    %v3470 = vadd.f32 %v3469, 1.0
    %v3471 = vrcp.pop %v3470
    %v3472 = vmul.f32 %v3470, %v3471
    %v3473 = vsub.f32 1.0, %v3472
    %v3474 = vmul.f32 %v3471, %v3473
    %v3475 = vadd.f32 %v3471, %v3474
    %vm3476 = vweird.f32 %v3470
    %vm3477 = vweird.f32 %v3471
    %vm3478 = vmor %vm3476, %vm3477
    %v3479 = vsel %vm3478, %v3471, %v3475
    %v3480 = vand.u32 2147483647, %v3470
    %vm3481 = vcmp.eq.f32.partialorder %v3480, 8.507059e+37
    %v3482 = vand.u32 %v3470, 2147483648
    %v3483 = vor.u32 1.1754944e-38, %v3482
    %v3484 = vsel %vm3481, %v3483, %v3479
    %v3485 = vmul.f32 %v3460, %v3484
    %v3486 = vmin.f32 %v3485, 1.0
    %v3487 = vmax.f32 %v3486, -1.0
    %v3488 = vadd.f32 %v2887, 1.0
    %v3489 = vadd.f32 %v2927, 1.0
    %v3490 = vadd.f32 %v2967, 1.0
    %v3491 = vadd.f32 %v3007, 1.0
    %v3492 = vadd.f32 %v3047, 1.0
    %v3493 = vadd.f32 %v3087, 1.0
    %v3494 = vadd.f32 %v3127, 1.0
    %v3495 = vadd.f32 %v3167, 1.0
    %v3496 = vadd.f32 %v3207, 1.0
    %v3497 = vadd.f32 %v3247, 1.0
    %v3498 = vadd.f32 %v3287, 1.0
    %v3499 = vadd.f32 %v3327, 1.0
    %v3500 = vadd.f32 %v3367, 1.0
    %v3501 = vadd.f32 %v3407, 1.0
    %v3502 = vadd.f32 %v3447, 1.0
    %v3503 = vadd.f32 %v3487, 1.0
    %v3504 = vmul.f32 %v2816, %v3488
    %v3505 = vmul.f32 %v2817, %v3489
    %v3506 = vmul.f32 %v2818, %v3490
    %v3507 = vmul.f32 %v2819, %v3491
    %v3508 = vmul.f32 %v2820, %v3492
    %v3509 = vmul.f32 %v2821, %v3493
    %v3510 = vmul.f32 %v2822, %v3494
    %v3511 = vmul.f32 %v2823, %v3495
    %v3512 = vmul.f32 %v2824, %v3496
    %v3513 = vmul.f32 %v2825, %v3497
    %v3514 = vmul.f32 %v2826, %v3498
    %v3515 = vmul.f32 %v2827, %v3499
    %v3516 = vmul.f32 %v2828, %v3500
    %v3517 = vmul.f32 %v2829, %v3501
    %v3518 = vmul.f32 %v2830, %v3502
    %v3519 = vmul.f32 %v2831, %v3503
    %v3520 = vmul.f32 %v2674, %v3504
    %v3521 = vmul.f32 %v2693, %v3505
    %v3522 = vmul.f32 %v2712, %v3506
    %v3523 = vmul.f32 %v2731, %v3507
    %v3524 = vmul.f32 %v2676, %v3508
    %v3525 = vmul.f32 %v2695, %v3509
    %v3526 = vmul.f32 %v2714, %v3510
    %v3527 = vmul.f32 %v2733, %v3511
    %v3528 = vmul.f32 %v2679, %v3512
    %v3529 = vmul.f32 %v2698, %v3513
    %v3530 = vmul.f32 %v2717, %v3514
    %v3531 = vmul.f32 %v2736, %v3515
    %v3532 = vmul.f32 %v2681, %v3516
    %v3533 = vmul.f32 %v2700, %v3517
    %v3534 = vmul.f32 %v2719, %v3518
    %v3535 = vmul.f32 %v2738, %v3519
    %v3536 = vpack.c.bf16 %v3524, %v3520
    %v3537 = vpack.c.bf16 %v3525, %v3521
    %v3538 = vpack.c.bf16 %v3526, %v3522
    %v3539 = vpack.c.bf16 %v3527, %v3523
    %v3540 = vpack.c.bf16 %v3532, %v3528
    %v3541 = vpack.c.bf16 %v3533, %v3529
    %v3542 = vpack.c.bf16 %v3534, %v3530
    %v3543 = vpack.c.bf16 %v3535, %v3531
    %v3544 = vld [vmem:[%s15] sm:$0xf]
    %v3545 = vld [vmem:[%s15 + $0x4] sm:$0xf]
    %v3546 = vld [vmem:[%s15 + $0x8] sm:$0xf]
    %v3547 = vld [vmem:[%s15 + $0xc] sm:$0xf]
    %v3548 = vld [vmem:[%s15 + $0x10] sm:$0xf]
    %v3549 = vld [vmem:[%s15 + $0x14] sm:$0xf]
    %v3550 = vld [vmem:[%s15 + $0x18] sm:$0xf]
    %v3551 = vld [vmem:[%s15 + $0x1c] sm:$0xf]
    %v3552 = vld [vmem:[%s15 + $0x20] sm:$0xf]
    %v3553 = vld [vmem:[%s15 + $0x24] sm:$0xf]
    %v3554 = vld [vmem:[%s15 + $0x28] sm:$0xf]
    %v3555 = vld [vmem:[%s15 + $0x2c] sm:$0xf]
    %v3556 = vld [vmem:[%s15 + $0x30] sm:$0xf]
    %v3557 = vld [vmem:[%s15 + $0x34] sm:$0xf]
    %v3558 = vld [vmem:[%s15 + $0x38] sm:$0xf]
    %v3559 = vld [vmem:[%s15 + $0x3c] sm:$0xf]
    %v3560 = vld [vmem:[%s15 + $0x40] sm:$0xf]
    %v3561 = vld [vmem:[%s15 + $0x44] sm:$0xf]
    %v3562 = vld [vmem:[%s15 + $0x48] sm:$0xf]
    %v3563 = vld [vmem:[%s15 + $0x4c] sm:$0xf]
    %v3564 = vld [vmem:[%s15 + $0x50] sm:$0xf]
    %v3565 = vld [vmem:[%s15 + $0x54] sm:$0xf]
    %v3566 = vld [vmem:[%s15 + $0x58] sm:$0xf]
    %v3567 = vld [vmem:[%s15 + $0x5c] sm:$0xf]
    %v3568 = vld [vmem:[%s15 + $0x60] sm:$0xf]
    %v3569 = vld [vmem:[%s15 + $0x64] sm:$0xf]
    %v3570 = vld [vmem:[%s15 + $0x68] sm:$0xf]
    %v3571 = vld [vmem:[%s15 + $0x6c] sm:$0xf]
    %v3572 = vld [vmem:[%s15 + $0x70] sm:$0xf]
    %v3573 = vld [vmem:[%s15 + $0x74] sm:$0xf]
    %v3574 = vld [vmem:[%s15 + $0x78] sm:$0xf]
    %v3575 = vld [vmem:[%s15 + $0x7c] sm:$0xf]
    %v3576 = vld [vmem:[%s15 + $0x80] sm:$0xf]
    %v3577 = vld [vmem:[%s15 + $0x84] sm:$0xf]
    %v3578 = vld [vmem:[%s15 + $0x88] sm:$0xf]
    %v3579 = vld [vmem:[%s15 + $0x8c] sm:$0xf]
    %v3580 = vld [vmem:[%s15 + $0x90] sm:$0xf]
    %v3581 = vld [vmem:[%s15 + $0x94] sm:$0xf]
    %v3582 = vld [vmem:[%s15 + $0x98] sm:$0xf]
    %v3583 = vld [vmem:[%s15 + $0x9c] sm:$0xf]
    %v3584 = vld [vmem:[%s15 + $0xa0] sm:$0xf]
    %v3585 = vld [vmem:[%s15 + $0xa4] sm:$0xf]
    %v3586 = vld [vmem:[%s15 + $0xa8] sm:$0xf]
    %v3587 = vld [vmem:[%s15 + $0xac] sm:$0xf]
    %v3588 = vld [vmem:[%s15 + $0xb0] sm:$0xf]
    %v3589 = vld [vmem:[%s15 + $0xb4] sm:$0xf]
    %v3590 = vld [vmem:[%s15 + $0xb8] sm:$0xf]
    %v3591 = vld [vmem:[%s15 + $0xbc] sm:$0xf]
    %v3592 = vld [vmem:[%s15 + $0xc0] sm:$0xf]
    %v3593 = vld [vmem:[%s15 + $0xc4] sm:$0xf]
    %v3594 = vld [vmem:[%s15 + $0xc8] sm:$0xf]
    %v3595 = vld [vmem:[%s15 + $0xcc] sm:$0xf]
    %v3596 = vld [vmem:[%s15 + $0xd0] sm:$0xf]
    %v3597 = vld [vmem:[%s15 + $0xd4] sm:$0xf]
    %v3598 = vld [vmem:[%s15 + $0xd8] sm:$0xf]
    %v3599 = vld [vmem:[%s15 + $0xdc] sm:$0xf]
    %v3600 = vld [vmem:[%s15 + $0xe0] sm:$0xf]
    %v3601 = vld [vmem:[%s15 + $0xe4] sm:$0xf]
    %v3602 = vld [vmem:[%s15 + $0xe8] sm:$0xf]
    %v3603 = vld [vmem:[%s15 + $0xec] sm:$0xf]
    %v3604 = vld [vmem:[%s15 + $0xf0] sm:$0xf]
    %v3605 = vld [vmem:[%s15 + $0xf4] sm:$0xf]
    %v3606 = vld [vmem:[%s15 + $0xf8] sm:$0xf]
    %v3607 = vld [vmem:[%s15 + $0xfc] sm:$0xf]
    %v3608 = vld [vmem:[#allocation14] sm:$0x1]
    %v3610 = vperm.slane %v3608, 0
    %v3676 = vunpack.c.l.b16 %v3544
    %v3677 = vunpack.c.l.b16 %v3545
    %v3678 = vunpack.c.l.b16 %v3546
    %v3679 = vunpack.c.l.b16 %v3547
    %v3680 = vunpack.c.l.b16 %v3548
    %v3681 = vunpack.c.l.b16 %v3549
    %v3682 = vunpack.c.l.b16 %v3550
    %v3683 = vunpack.c.l.b16 %v3551
    %v3684 = vunpack.c.l.b16 %v3552
    %v3685 = vunpack.c.l.b16 %v3553
    %v3686 = vunpack.c.l.b16 %v3554
    %v3687 = vunpack.c.l.b16 %v3555
    %v3688 = vunpack.c.l.b16 %v3556
    %v3689 = vunpack.c.l.b16 %v3557
    %v3690 = vunpack.c.l.b16 %v3558
    %v3691 = vunpack.c.l.b16 %v3559
    %v3692 = vunpack.c.l.b16 %v3560
    %v3693 = vunpack.c.l.b16 %v3561
    %v3694 = vunpack.c.l.b16 %v3562
    %v3695 = vunpack.c.l.b16 %v3563
    %v3696 = vunpack.c.l.b16 %v3564
    %v3697 = vunpack.c.l.b16 %v3565
    %v3698 = vunpack.c.l.b16 %v3566
    %v3699 = vunpack.c.l.b16 %v3567
    %v3700 = vunpack.c.l.b16 %v3568
    %v3701 = vunpack.c.l.b16 %v3569
    %v3702 = vunpack.c.l.b16 %v3570
    %v3703 = vunpack.c.l.b16 %v3571
    %v3704 = vunpack.c.l.b16 %v3572
    %v3705 = vunpack.c.l.b16 %v3573
    %v3706 = vunpack.c.l.b16 %v3574
    %v3707 = vunpack.c.l.b16 %v3575
    %v3708 = vunpack.c.l.b16 %v3576
    %v3709 = vunpack.c.l.b16 %v3577
    %v3710 = vunpack.c.l.b16 %v3578
    %v3711 = vunpack.c.l.b16 %v3579
    %v3712 = vunpack.c.l.b16 %v3580
    %v3713 = vunpack.c.l.b16 %v3581
    %v3714 = vunpack.c.l.b16 %v3582
    %v3715 = vunpack.c.l.b16 %v3583
    %v3716 = vunpack.c.l.b16 %v3584
    %v3717 = vunpack.c.l.b16 %v3585
    %v3718 = vunpack.c.l.b16 %v3586
    %v3719 = vunpack.c.l.b16 %v3587
    %v3720 = vunpack.c.l.b16 %v3588
    %v3721 = vunpack.c.l.b16 %v3589
    %v3722 = vunpack.c.l.b16 %v3590
    %v3723 = vunpack.c.l.b16 %v3591
    %v3724 = vunpack.c.l.b16 %v3592
    %v3725 = vunpack.c.l.b16 %v3593
    %v3726 = vunpack.c.l.b16 %v3594
    %v3727 = vunpack.c.l.b16 %v3595
    %v3728 = vunpack.c.l.b16 %v3596
    %v3729 = vunpack.c.l.b16 %v3597
    %v3730 = vunpack.c.l.b16 %v3598
    %v3731 = vunpack.c.l.b16 %v3599
    %v3732 = vunpack.c.l.b16 %v3600
    %v3733 = vunpack.c.l.b16 %v3601
    %v3734 = vunpack.c.l.b16 %v3602
    %v3735 = vunpack.c.l.b16 %v3603
    %v3736 = vunpack.c.l.b16 %v3604
    %v3737 = vunpack.c.l.b16 %v3605
    %v3738 = vunpack.c.l.b16 %v3606
    %v3739 = vunpack.c.l.b16 %v3607
    %v3740 = vpack.c.b16 %v3677, %v3676
    %v3741 = vpack.c.b16 %v3679, %v3678
    %v3742 = vpack.c.b16 %v3681, %v3680
    %v3743 = vpack.c.b16 %v3683, %v3682
    %v3744 = vpack.c.b16 %v3685, %v3684
    %v3745 = vpack.c.b16 %v3687, %v3686
    %v3746 = vpack.c.b16 %v3689, %v3688
    %v3747 = vpack.c.b16 %v3691, %v3690
    %v3748 = vpack.c.b16 %v3693, %v3692
    %v3749 = vpack.c.b16 %v3695, %v3694
    %v3750 = vpack.c.b16 %v3697, %v3696
    %v3751 = vpack.c.b16 %v3699, %v3698
    %v3752 = vpack.c.b16 %v3701, %v3700
    %v3753 = vpack.c.b16 %v3703, %v3702
    %v3754 = vpack.c.b16 %v3705, %v3704
    %v3755 = vpack.c.b16 %v3707, %v3706
    %v3756 = vpack.c.b16 %v3709, %v3708
    %v3757 = vpack.c.b16 %v3711, %v3710
    %v3758 = vpack.c.b16 %v3713, %v3712
    %v3759 = vpack.c.b16 %v3715, %v3714
    %v3760 = vpack.c.b16 %v3717, %v3716
    %v3761 = vpack.c.b16 %v3719, %v3718
    %v3762 = vpack.c.b16 %v3721, %v3720
    %v3763 = vpack.c.b16 %v3723, %v3722
    %v3764 = vpack.c.b16 %v3725, %v3724
    %v3765 = vpack.c.b16 %v3727, %v3726
    %v3766 = vpack.c.b16 %v3729, %v3728
    %v3767 = vpack.c.b16 %v3731, %v3730
    %v3768 = vpack.c.b16 %v3733, %v3732
    %v3769 = vpack.c.b16 %v3735, %v3734
    %v3770 = vpack.c.b16 %v3737, %v3736
    %v3771 = vpack.c.b16 %v3739, %v3738
    %3804 = vmatpush.bf16.msra.mxu0 %v3747
    %3805 = vmatpush.bf16.msra.mxu0 %v3746
    %3806 = vmatpush.bf16.msra.mxu0 %v3745
    %3807 = vmatpush.bf16.msra.mxu0 %v3744
    %3808 = vmatpush.bf16.msra.mxu0 %v3743
    %3809 = vmatpush.bf16.msra.mxu0 %v3742
    %3810 = vmatpush.bf16.msra.mxu0 %v3741
    %3811 = vmatpush.bf16.msra.mxu0 %v3740
    %3812 = vmatmul.bf16.gmra.mxu0 %v3536
    %v3813 = vpop.f32.mrf.mxu0
    %v3814 = vadd.f32 %v3610, %v3813
    %v3815 = vpop.f32.mrf.mxu0
    %v3816 = vadd.f32 %v3610, %v3815
    %3817 = vmatmul.bf16.gmra.mxu0 %v3540
    %v3818 = vpop.f32.mrf.mxu0
    %v3819 = vadd.f32 %v3610, %v3818
    %v3820 = vpop.f32.mrf.mxu0
    %v3821 = vadd.f32 %v3610, %v3820
    %3822 = vdwg.mxu0
    %3823 = vmatpush.bf16.msra.mxu0 %v3755
    %3824 = vmatpush.bf16.msra.mxu0 %v3754
    %3825 = vmatpush.bf16.msra.mxu0 %v3753
    %3826 = vmatpush.bf16.msra.mxu0 %v3752
    %3827 = vmatpush.bf16.msra.mxu0 %v3751
    %3828 = vmatpush.bf16.msra.mxu0 %v3750
    %3829 = vmatpush.bf16.msra.mxu0 %v3749
    %3830 = vmatpush.bf16.msra.mxu0 %v3748
    %3831 = vmatmul.bf16.gmra.mxu0 %v3537
    %v3832 = vpop.f32.mrf.mxu0
    %v3833 = vadd.f32 %v3814, %v3832
    %v3834 = vpop.f32.mrf.mxu0
    %v3835 = vadd.f32 %v3816, %v3834
    %3836 = vmatmul.bf16.gmra.mxu0 %v3541
    %v3837 = vpop.f32.mrf.mxu0
    %v3838 = vadd.f32 %v3819, %v3837
    %v3839 = vpop.f32.mrf.mxu0
    %v3840 = vadd.f32 %v3821, %v3839
    %3841 = vdwg.mxu0
    %3842 = vmatpush.bf16.msra.mxu0 %v3763
    %3843 = vmatpush.bf16.msra.mxu0 %v3762
    %3844 = vmatpush.bf16.msra.mxu0 %v3761
    %3845 = vmatpush.bf16.msra.mxu0 %v3760
    %3846 = vmatpush.bf16.msra.mxu0 %v3759
    %3847 = vmatpush.bf16.msra.mxu0 %v3758
    %3848 = vmatpush.bf16.msra.mxu0 %v3757
    %3849 = vmatpush.bf16.msra.mxu0 %v3756
    %3850 = vmatmul.bf16.gmra.mxu0 %v3538
    %v3851 = vpop.f32.mrf.mxu0
    %v3852 = vadd.f32 %v3833, %v3851
    %v3853 = vpop.f32.mrf.mxu0
    %v3854 = vadd.f32 %v3835, %v3853
    %3855 = vmatmul.bf16.gmra.mxu0 %v3542
    %v3856 = vpop.f32.mrf.mxu0
    %v3857 = vadd.f32 %v3838, %v3856
    %v3858 = vpop.f32.mrf.mxu0
    %v3859 = vadd.f32 %v3840, %v3858
    %3860 = vdwg.mxu0
    %3861 = vmatpush.bf16.msra.mxu0 %v3771
    %3862 = vmatpush.bf16.msra.mxu0 %v3770
    %3863 = vmatpush.bf16.msra.mxu0 %v3769
    %3864 = vmatpush.bf16.msra.mxu0 %v3768
    %3865 = vmatpush.bf16.msra.mxu0 %v3767
    %3866 = vmatpush.bf16.msra.mxu0 %v3766
    %3867 = vmatpush.bf16.msra.mxu0 %v3765
    %3868 = vmatpush.bf16.msra.mxu0 %v3764
    %3869 = vmatmul.bf16.gmra.mxu0 %v3539
    %v3870 = vpop.f32.mrf.mxu0
    %v3871 = vadd.f32 %v3852, %v3870
    %v3872 = vpop.f32.mrf.mxu0
    %v3873 = vadd.f32 %v3854, %v3872
    %3874 = vmatmul.bf16.gmra.mxu0 %v3543
    %v3875 = vpop.f32.mrf.mxu0
    %v3876 = vadd.f32 %v3857, %v3875
    %v3877 = vpop.f32.mrf.mxu0
    %v3878 = vadd.f32 %v3859, %v3877
    %3879 = vdwg.mxu0
    %v3880 = vadd.f32 %v1746, %v3871
    %v3881 = vadd.f32 %v1747, %v3873
    %v3882 = vadd.f32 %v2162, %v3876
    %v3883 = vadd.f32 %v2163, %v3878
    %v3884 = vadd.f32 %v3880, %v3881
    %v3885 = vrot.slane %v3884, 4
    %v3886 = vadd.f32 %v3884, %v3885
    %v3887 = vrot.slane %v3886, 2
    %v3888 = vadd.f32 %v3886, %v3887
    %v3889 = vrot.slane %v3888, 1
    %v3890 = vadd.f32 %v3888, %v3889
    %v3891 = vrcp.pop 16.0
    %v3892 = vmul.f32 16.0, %v3891
    %v3893 = vsub.f32 1.0, %v3892
    %v3894 = vmul.f32 %v3891, %v3893
    %v3895 = vadd.f32 %v3891, %v3894
    %vm3896 = vweird.f32 %v3891
    %v3897 = vsel %vm3896, %v3891, %v3895
    %v3898 = vmul.f32 %v3890, %v3897
    %v3899 = vmul.f32 %v3898, %v3898
    %3900 = vadd.xlane.f32.xlu0 %v3899
    %v3901 = vpop.xlane.xlu0 %3900
    %v3902 = vmax.f32 %v3901, 1e-24
    %v3903 = vrsqrt.pop %v3902
    %v3904 = vmul.f32 %v3903, %v3902
    %v3905 = vmul.f32 %v3904, %v3903
    %v3906 = vmul.f32 0.5, %v3905
    %v3907 = vsub.f32 1.5, %v3906
    %v3908 = vmul.f32 %v3903, %v3907
    %vm3909 = vweird.f32 %v3902
    %vm3910 = vweird.f32 %v3903
    %vm3911 = vmor %vm3909, %vm3910
    %v3912 = vsel %vm3911, %v3903, %v3908
    %v3913 = vmul.f32 %v3898, %v3912
    %v3914 = vadd.f32 %v3882, %v3883
    %v3915 = vrot.slane %v3914, 4
    %v3916 = vadd.f32 %v3914, %v3915
    %v3917 = vrot.slane %v3916, 2
    %v3918 = vadd.f32 %v3916, %v3917
    %v3919 = vrot.slane %v3918, 1
    %v3920 = vadd.f32 %v3918, %v3919
    %v3921 = vmul.f32 %v3920, %v3897
    %v3922 = vmul.f32 %v3921, %v3921
    %3923 = vadd.xlane.f32.xlu0 %v3922
    %v3924 = vpop.xlane.xlu0 %3923
    %v3925 = vmax.f32 %v3924, 1e-24
    %v3926 = vrsqrt.pop %v3925
    %v3927 = vmul.f32 %v3926, %v3925
    %v3928 = vmul.f32 %v3927, %v3926
    %v3929 = vmul.f32 0.5, %v3928
    %v3930 = vsub.f32 1.5, %v3929
    %v3931 = vmul.f32 %v3926, %v3930
    %vm3932 = vweird.f32 %v3925
    %vm3933 = vweird.f32 %v3926
    %vm3934 = vmor %vm3932, %vm3933
    %v3935 = vsel %vm3934, %v3926, %v3931
    %v3936 = vmul.f32 %v3921, %v3935
    %vm3937 = vcmask 1040384
    %v3938 = vsel %vm3937, %v3913, %v3936
    %3939 = vst [vmem:[#allocation16] sm:$0x3] %v3938
    // Predicated region
    $region102: #{tpu_custom_call.1} parent=1 // pred_check
      _
    $region103: #{tpu_custom_call.1} parent=1 // pred_check_branch
      %3941 = sbr.rel (0) target = $region105
    $region104: #{tpu_custom_call.1} parent=1 // pred_region
      %3943 = vsyncadd [#allocation4], 0
      %s3945 = sshll.u32 [#allocation16], 4
      %s3946 = int_to_ptr.vmem [resolvable:$true] %s3945
      %s3947 = sshll.u32 %s17, 4
      %s3948 = int_to_ptr.hbm [resolvable:$true] %s3947
      %3950 = dma.vmem_to_hbm [thread:$0]  %s3946, 32, %s3948, [#allocation4]
    $region105: #{tpu_custom_call.1} parent=1 // pred_fallthru
      _
    // Predicated region
    $region106: #{tpu_custom_call.1} parent=1 // pred_check
      _
    $region107: #{tpu_custom_call.1} parent=1 // pred_check_branch
      %3952 = sbr.rel (0) target = $region109
    $region108: #{tpu_custom_call.1} parent=1 // pred_region
      %3954 = dma.done [#allocation4], 32
    $region109: #{tpu_custom_call.1} parent=1 // pred_fallthru
      _
    %3955 = vsyncpa [#allocation3], 1
    %3956 = vsyncpa [#allocation6], 1
    %3957 = vsyncpa [#allocation9], 1
    %3958 = vsyncpa [#allocation12], 1
    %3959 = vsyncpa [#allocation15], 1
    %3960 = vsyncpa [#allocation4], 1

</llo_original>
